<compile_context>
chip_gen: v6e
topology: v6e:2x2x1
jax: 0.10.0
libtpu: 0.0.40
codegen_flags: <defaults>
</compile_context>

<pallas_src>
import functools

import jax
import jax.numpy as jnp
from jax.experimental import pallas as pl
from jax.experimental.pallas import tpu as pltpu


def _pick_tile(dim, candidates):
    for c in candidates:
        if c <= dim and dim % c == 0:
            return c
    return dim


@functools.lru_cache(maxsize=None)
def _vmem_limit():
    # Derive scoped VMEM budget per generation: 3/4 of physical, capped at 96 MiB
    # (=> ~48 MiB on v7x's 64 MiB, 96 MiB on v5e/v6e's 128 MiB).
    cap = 128 * 1024 * 1024
    try:
        info = pltpu.get_tpu_info()
        cap = int(getattr(info, "vmem_capacity_bytes", cap) or cap)
    except Exception:
        pass
    return min((cap * 3) // 4, 96 * 1024 * 1024)


# ----------------------------------------------------------------------------
# Pallas kernels
# ----------------------------------------------------------------------------
def _groupnorm_kernel(x_ref, o_ref, *, eps):
    # One row per (batch, group): block (rt, L), L = (C // G) * H * W.
    # Affine (gamma/beta) is folded into the proj_in weights.
    x = x_ref[...]                                            # (rt, L) f32
    mean = jnp.mean(x, axis=-1, keepdims=True)
    var = jnp.mean(jnp.square(x - mean), axis=-1, keepdims=True)
    o_ref[...] = ((x - mean) * jax.lax.rsqrt(var + eps)).astype(o_ref.dtype)


def _matmul_kernel(*refs, fuse_residual):
    # General K-tiled matmul with f32 accumulator; epilogue fuses bias (+ residual).
    if fuse_residual:
        x_ref, w_ref, b_ref, r_ref, o_ref, acc_ref = refs
    else:
        x_ref, w_ref, b_ref, o_ref, acc_ref = refs
        r_ref = None
    k = pl.program_id(2)

    @pl.when(k == 0)
    def _():
        acc_ref[...] = jnp.zeros(acc_ref.shape, acc_ref.dtype)

    acc_ref[...] += jnp.dot(x_ref[...].astype(w_ref.dtype), w_ref[...],
                            preferred_element_type=jnp.float32)

    @pl.when(k == pl.num_programs(2) - 1)
    def _():
        out = acc_ref[...] + b_ref[...]
        if r_ref is not None:
            out = out + r_ref[...]
        o_ref[...] = out.astype(o_ref.dtype)


def _ln_matmul_kernel(x_ref, g_ref, b_ref, w_ref, o_ref, *, eps):
    # LayerNorm prologue fused into a matmul; full K fits one tile (2-D grid).
    x = x_ref[...]                                            # (tm, K) f32
    mean = jnp.mean(x, axis=-1, keepdims=True)
    var = jnp.mean(jnp.square(x - mean), axis=-1, keepdims=True)
    xn = ((x - mean) * jax.lax.rsqrt(var + eps) * g_ref[...] + b_ref[...])
    o_ref[...] = jnp.dot(xn.astype(w_ref.dtype), w_ref[...],
                         preferred_element_type=jnp.float32).astype(o_ref.dtype)


def _ln_matmul_geglu_kernel(x_ref, g_ref, b_ref, wa_ref, wg_ref, ba_ref, bg_ref,
                            o_ref, *, eps):
    # LayerNorm prologue + GEGLU epilogue fused around the FF w1 matmul.
    x = x_ref[...]                                            # (tm, K) f32
    mean = jnp.mean(x, axis=-1, keepdims=True)
    var = jnp.mean(jnp.square(x - mean), axis=-1, keepdims=True)
    xn = ((x - mean) * jax.lax.rsqrt(var + eps) * g_ref[...] + b_ref[...]).astype(wa_ref.dtype)
    a = jnp.dot(xn, wa_ref[...], preferred_element_type=jnp.float32) + ba_ref[...]
    gate = jnp.dot(xn, wg_ref[...], preferred_element_type=jnp.float32) + bg_ref[...]
    # TODO(synk): PyTorch F.gelu default is exact (erf); tanh approximation is used
    # in-kernel because Mosaic erf lowering availability varies across versions.
    o_ref[...] = (a * jax.nn.gelu(gate, approximate=True)).astype(o_ref.dtype)


def _flash_mha_kernel(q_ref, k_ref, v_ref, o_ref, m_sc, l_sc, acc_sc):
    # Head-batched online softmax.  Blocks: (1, heads, tq|tkv, d_head) bf16.
    # Scale (1/sqrt(d_head)) is folded into wq, so no per-step VPU multiply.
    kv = pl.program_id(2)

    @pl.when(kv == 0)
    def _():
        m_sc[...] = jnp.full(m_sc.shape, -jnp.inf, dtype=m_sc.dtype)
        l_sc[...] = jnp.zeros(l_sc.shape, l_sc.dtype)
        acc_sc[...] = jnp.zeros(acc_sc.shape, acc_sc.dtype)

    q = q_ref[0]                                              # (heads, tq, d)
    k = k_ref[0]                                              # (heads, tkv, d)
    v = v_ref[0]

    s = jnp.einsum('hqd,hkd->hqk', q, k,
                   preferred_element_type=jnp.float32)        # (heads, tq, tkv)
    m_prev = m_sc[...]
    m_new = jnp.maximum(m_prev, jnp.max(s, axis=-1, keepdims=True))
    alpha = jnp.exp(m_prev - m_new)
    p = jnp.exp(s - m_new)
    l_sc[...] = alpha * l_sc[...] + jnp.sum(p, axis=-1, keepdims=True)
    acc_sc[...] = alpha * acc_sc[...] + jnp.einsum(
        'hqk,hkd->hqd', p.astype(v.dtype), v, preferred_element_type=jnp.float32)
    m_sc[...] = m_new

    @pl.when(kv == pl.num_programs(2) - 1)
    def _():
        inv_l = pl.reciprocal(l_sc[...], approx=True)
        o_ref[0] = (acc_sc[...] * inv_l).astype(o_ref.dtype)


# ----------------------------------------------------------------------------
# Pallas wrappers
# ----------------------------------------------------------------------------
def group_norm_pallas(xg, eps=1e-5):
    R, L = xg.shape                                           # R = B * 32 groups
    rt = _pick_tile(R, (16, 8, 4, 2, 1))
    return pl.pallas_call(
        functools.partial(_groupnorm_kernel, eps=eps),
        out_shape=jax.ShapeDtypeStruct((R, L), jnp.bfloat16),
        grid=(R // rt,),
        in_specs=[pl.BlockSpec((rt, L), lambda i: (i, 0))],
        out_specs=pl.BlockSpec((rt, L), lambda i: (i, 0)),
        compiler_params=pltpu.CompilerParams(
            dimension_semantics=("parallel",), vmem_limit_bytes=_vmem_limit()),
    )(xg.astype(jnp.float32))


def matmul_pallas(x, w, b, residual=None, out_dtype=jnp.float32):
    """out = x @ w + b [+ residual].  w is bf16; f32 accumulation in-kernel."""
    M, K = x.shape
    Kw, N = w.shape
    assert K == Kw
    tm = _pick_tile(M, (512, 256, 128, 64, 32, 16, 8))
    tn = _pick_tile(N, (1024, 512, 256, 128))
    tk = _pick_tile(K, (1024, 512, 256, 128))

    in_specs = [
        pl.BlockSpec((tm, tk), lambda i, j, k: (i, k)),
        pl.BlockSpec((tk, tn), lambda i, j, k: (k, j)),
        pl.BlockSpec((1, tn), lambda i, j, k: (0, j)),
    ]
    args = [x, w, b.reshape(1, N)]
    if residual is not None:
        in_specs.append(pl.BlockSpec((tm, tn), lambda i, j, k: (i, j)))
        args.append(residual)

    return pl.pallas_call(
        functools.partial(_matmul_kernel, fuse_residual=residual is not None),
        out_shape=jax.ShapeDtypeStruct((M, N), out_dtype),
        grid=(M // tm, N // tn, K // tk),
        in_specs=in_specs,
        out_specs=pl.BlockSpec((tm, tn), lambda i, j, k: (i, j)),
        scratch_shapes=[pltpu.VMEM((tm, tn), jnp.float32)],
        compiler_params=pltpu.CompilerParams(
            dimension_semantics=("parallel", "parallel", "arbitrary"),
            vmem_limit_bytes=_vmem_limit()),
    )(*args)


def ln_matmul_pallas(x, gamma, beta, w, out_dtype=jnp.bfloat16, eps=1e-5):
    """LayerNorm(x) @ w with the LN fused as a matmul prologue (full K in one tile)."""
    M, K = x.shape
    Kw, N = w.shape
    assert K == Kw
    # TODO(synk): assumes the model dim fits a single K tile (true for SD widths);
    # a standalone-LN fallback would be needed for very large K.
    tm = _pick_tile(M, (512, 256, 128, 64, 32, 16, 8))
    tn = _pick_tile(N, (1024, 512, 256, 128))
    return pl.pallas_call(
        functools.partial(_ln_matmul_kernel, eps=eps),
        out_shape=jax.ShapeDtypeStruct((M, N), out_dtype),
        grid=(M // tm, N // tn),
        in_specs=[
            pl.BlockSpec((tm, K), lambda i, j: (i, 0)),
            pl.BlockSpec((1, K), lambda i, j: (0, 0)),
            pl.BlockSpec((1, K), lambda i, j: (0, 0)),
            pl.BlockSpec((K, tn), lambda i, j: (0, j)),
        ],
        out_specs=pl.BlockSpec((tm, tn), lambda i, j: (i, j)),
        compiler_params=pltpu.CompilerParams(
            dimension_semantics=("parallel", "parallel"),
            vmem_limit_bytes=_vmem_limit()),
    )(x, gamma.reshape(1, K), beta.reshape(1, K), w)


def ln_matmul_geglu_pallas(x, gamma, beta, w1, b1, out_dtype=jnp.bfloat16, eps=1e-5):
    """GEGLU FF first stage: gelu-gated product of two column halves of w1, with the
    preceding LayerNorm fused as a prologue.  w1: (K, 2F); output (M, F)."""
    M, K = x.shape
    Kw, N2 = w1.shape
    assert K == Kw and N2 % 2 == 0
    F = N2 // 2
    tm = _pick_tile(M, (256, 128, 64, 32, 16, 8))
    tn = _pick_tile(F, (512, 256, 128))
    njb = F // tn                                             # block offset of gate cols
    b1 = b1.reshape(1, N2)
    return pl.pallas_call(
        functools.partial(_ln_matmul_geglu_kernel, eps=eps),
        out_shape=jax.ShapeDtypeStruct((M, F), out_dtype),
        grid=(M // tm, F // tn),
        in_specs=[
            pl.BlockSpec((tm, K), lambda i, j: (i, 0)),
            pl.BlockSpec((1, K), lambda i, j: (0, 0)),
            pl.BlockSpec((1, K), lambda i, j: (0, 0)),
            pl.BlockSpec((K, tn), lambda i, j: (0, j)),                  # w_a
            pl.BlockSpec((K, tn), lambda i, j, o=njb: (0, j + o)),       # w_gate
            pl.BlockSpec((1, tn), lambda i, j: (0, j)),                  # b_a
            pl.BlockSpec((1, tn), lambda i, j, o=njb: (0, j + o)),       # b_gate
        ],
        out_specs=pl.BlockSpec((tm, tn), lambda i, j: (i, j)),
        compiler_params=pltpu.CompilerParams(
            dimension_semantics=("parallel", "parallel"),
            vmem_limit_bytes=_vmem_limit()),
    )(x, gamma.reshape(1, K), beta.reshape(1, K), w1, w1, b1, b1)


def flash_attention_pallas(qkv_h, *, B, heads, d_head, N):
    """qkv_h: (3B, heads, N, d_head) bf16 head-major slab (q rows [0:B], k [B:2B],
    v [2B:3B]).  Returns (B, heads, N, d_head) bf16."""
    tq = _pick_tile(N, (256, 128, 64, 32, 16, 8))
    tkv = _pick_tile(N, (512, 256, 128, 64, 32, 16, 8))
    return pl.pallas_call(
        _flash_mha_kernel,
        out_shape=jax.ShapeDtypeStruct((B, heads, N, d_head), jnp.bfloat16),
        grid=(B, N // tq, N // tkv),
        in_specs=[
            pl.BlockSpec((1, heads, tq, d_head), lambda b, qi, kv: (b, 0, qi, 0)),
            pl.BlockSpec((1, heads, tkv, d_head),
                         lambda b, qi, kv, off=B: (off + b, 0, kv, 0)),
            pl.BlockSpec((1, heads, tkv, d_head),
                         lambda b, qi, kv, off=2 * B: (off + b, 0, kv, 0)),
        ],
        out_specs=pl.BlockSpec((1, heads, tq, d_head), lambda b, qi, kv: (b, 0, qi, 0)),
        scratch_shapes=[
            pltpu.VMEM((heads, tq, 1), jnp.float32),      # running max
            pltpu.VMEM((heads, tq, 1), jnp.float32),      # running sum
            pltpu.VMEM((heads, tq, d_head), jnp.float32), # output accumulator
        ],
        compiler_params=pltpu.CompilerParams(
            dimension_semantics=("parallel", "parallel", "arbitrary"),
            vmem_limit_bytes=_vmem_limit()),
    )(qkv_h, qkv_h, qkv_h)


# ----------------------------------------------------------------------------
# Model building blocks
# ----------------------------------------------------------------------------
def attention_block(h, attn_p, ln_g, ln_b, B, heads, d_head):
    # LayerNorm + fused QKV projection (scale folded into wq) -> bf16 QKV slab.
    M = h.shape[0]
    inner = heads * d_head
    N = M // B
    qkv = ln_matmul_pallas(h, ln_g, ln_b, attn_p["wqkv"], out_dtype=jnp.bfloat16)
    # Head-major HBM layout for the flash kernel (one bf16 transpose pass; the
    # fused QKV is never split / re-cast).
    qkv_h = (qkv.reshape(B, N, 3, heads, d_head)
             .transpose(2, 0, 3, 1, 4)
             .reshape(3 * B, heads, N, d_head))
    o = flash_attention_pallas(qkv_h, B=B, heads=heads, d_head=d_head, N=N)
    o_tok = o.transpose(0, 2, 1, 3).reshape(M, inner)          # bf16 tokens
    # to_out projection with fused bias + residual add (residual stream stays f32).
    return matmul_pallas(o_tok, attn_p["wo"], attn_p["bo"], residual=h,
                         out_dtype=jnp.float32)


def spatial_transformer(x, params, *, n_heads, d_head):
    B, C, H, W = x.shape
    HW = H * W
    G = 32
    x_in = x

    # GroupNorm(32, C): normalization only; affine folded into proj_in weights.
    xg = x.reshape(B * G, (C // G) * HW)
    xn = group_norm_pallas(xg)                                  # bf16 (B*G, L)
    # TODO(synk): NCHW<->token rearranges kept in XLA; could be folded into the
    # proj_in / proj_out BlockSpec index_maps.
    tokens = xn.reshape(B, C, HW).transpose(0, 2, 1).reshape(B * HW, C)

    # proj_in 1x1 conv (GN affine pre-folded) -> f32 residual stream h.
    h = matmul_pallas(tokens, params["proj_in_w"], params["proj_in_b"],
                      out_dtype=jnp.float32)

    for blk in params["blocks"]:
        h = attention_block(h, blk["attn1"], blk["ln1_g"], blk["ln1_b"],
                            B, n_heads, d_head)
        # context=None in the reference forward -> attn2 attends to x itself.
        h = attention_block(h, blk["attn2"], blk["ln2_g"], blk["ln2_b"],
                            B, n_heads, d_head)
        # FeedForward: LN3 + GEGLU fused around w1; w2 with fused bias + residual.
        ff_mid = ln_matmul_geglu_pallas(h, blk["ln3_g"], blk["ln3_b"],
                                        blk["ff"]["w1"], blk["ff"]["b1"],
                                        out_dtype=jnp.bfloat16)
        h = matmul_pallas(ff_mid, blk["ff"]["w2"], blk["ff"]["b2"], residual=h,
                          out_dtype=jnp.float32)

    # proj_out: zero-initialized 1x1 conv (commutes with the rearrange).
    out_tok = matmul_pallas(h, params["proj_out_w"], params["proj_out_b"],
                            out_dtype=jnp.float32)
    out = out_tok.reshape(B, HW, C).transpose(0, 2, 1).reshape(B, C, H, W)
    return out + x_in


# ----------------------------------------------------------------------------
# Parameters: PyTorch-layout init + one-time fusion/casting (outside jit)
# ----------------------------------------------------------------------------
def init_params(key, in_channels, n_heads, d_head, depth=1, context_dim=None):
    inner = n_heads * d_head
    ctx = context_dim if context_dim is not None else inner
    ff_inner = inner * 4
    keys = iter(jax.random.split(key, 256))

    def w(shape, scale=0.05):
        return scale * jax.random.normal(next(keys), shape, jnp.float32)

    params = {
        "gn_g": jnp.ones((in_channels,), jnp.float32),
        "gn_b": jnp.zeros((in_channels,), jnp.float32),
        # conv/linear weights stored as (in, out) so forward is x @ W + b
        "proj_in_w": w((in_channels, inner)),
        "proj_in_b": w((inner,)),
        "proj_out_w": jnp.zeros((inner, in_channels), jnp.float32),  # zero_module
        "proj_out_b": jnp.zeros((in_channels,), jnp.float32),
        "blocks": [],
    }
    for _ in range(depth):
        blk = {
            "ln1_g": jnp.ones((inner,), jnp.float32), "ln1_b": jnp.zeros((inner,), jnp.float32),
            "ln2_g": jnp.ones((inner,), jnp.float32), "ln2_b": jnp.zeros((inner,), jnp.float32),
            "ln3_g": jnp.ones((inner,), jnp.float32), "ln3_b": jnp.zeros((inner,), jnp.float32),
            "attn1": {
                "wq": w((inner, inner)), "wk": w((inner, inner)), "wv": w((inner, inner)),
                "wo": w((inner, inner)), "bo": w((inner,)),
            },
            "attn2": {
                "wq": w((inner, inner)), "wk": w((ctx, inner)), "wv": w((ctx, inner)),
                "wo": w((inner, inner)), "bo": w((inner,)),
            },
            "ff": {
                "w1": w((inner, 2 * ff_inner)), "b1": w((2 * ff_inner,)),
                "w2": w((ff_inner, inner)), "b2": w((inner,)),
            },
        }
        params["blocks"].append(blk)
    return params


def prepare_params(p, n_heads, d_head):
    """One-time (outside jit) weight fusion: fold GN affine into proj_in, fold the
    attention scale into wq, concatenate wq/wk/wv, pre-cast matmul weights to bf16."""
    scale = d_head ** -0.5

    def attn(a):
        # TODO(synk): fused QKV assumes self-attention (context=None in the forward);
        # a true cross-attention context would need a separate q / kv projection path.
        assert a["wk"].shape[0] == a["wq"].shape[0]
        wqkv = jnp.concatenate([a["wq"] * scale, a["wk"], a["wv"]], axis=1)
        return {"wqkv": wqkv.astype(jnp.bfloat16),
                "wo": a["wo"].astype(jnp.bfloat16),
                "bo": a["bo"].astype(jnp.float32)}

    out = {
        "proj_in_w": (p["proj_in_w"] * p["gn_g"][:, None]).astype(jnp.bfloat16),
        "proj_in_b": (p["proj_in_b"] + p["gn_b"] @ p["proj_in_w"]).astype(jnp.float32),
        "proj_out_w": p["proj_out_w"].astype(jnp.bfloat16),
        "proj_out_b": p["proj_out_b"].astype(jnp.float32),
        "blocks": [],
    }
    for blk in p["blocks"]:
        out["blocks"].append({
            "ln1_g": blk["ln1_g"], "ln1_b": blk["ln1_b"],
            "ln2_g": blk["ln2_g"], "ln2_b": blk["ln2_b"],
            "ln3_g": blk["ln3_g"], "ln3_b": blk["ln3_b"],
            "attn1": attn(blk["attn1"]),
            "attn2": attn(blk["attn2"]),
            "ff": {"w1": blk["ff"]["w1"].astype(jnp.bfloat16),
                   "b1": blk["ff"]["b1"].astype(jnp.float32),
                   "w2": blk["ff"]["w2"].astype(jnp.bfloat16),
                   "b2": blk["ff"]["b2"].astype(jnp.float32)},
        })
    return out


# ----------------------------------------------------------------------------
if __name__ == "__main__":
    key = jax.random.PRNGKey(0)
    kx, kp = jax.random.split(key)

    # GroupNorm(32, C) requires C % 32 == 0
    B, C, H, W = 2, 32, 8, 8
    n_heads, d_head = 2, 16          # inner_dim = 32

    x = jax.random.normal(kx, (B, C, H, W), jnp.float32)
    raw = init_params(kp, C, n_heads, d_head, depth=1, context_dim=None)
    params = prepare_params(raw, n_heads, d_head)    # weight fusion outside jit

    fwd = jax.jit(functools.partial(spatial_transformer, n_heads=n_heads, d_head=d_head))
    out = jax.block_until_ready(fwd(x, params))

    assert out.shape == x.shape and out.dtype == jnp.float32
    # proj_out is zero-initialized (zero_module) => forward must return the input.
    assert bool(jnp.allclose(out, x)), "zero-init proj_out residual check failed"
    print("KERNEL_OK")
</pallas_src>

<mosaic_0001>
module attributes {stable_mosaic.version = 11 : i64} {
  func.func @_groupnorm_kernel(%arg0: i32, %arg1: memref<16x64xf32, #tpu.memory_space<vmem>>, %arg2: memref<16x64xbf16, #tpu.memory_space<vmem>>) attributes {dimension_semantics = [#tpu.dimension_semantics<parallel>], iteration_bounds = array<i64: 4>, scalar_prefetch = 0 : i64, scratch_operands = 0 : i64, tpu.core_type = #tpu.core_type<tc>, window_params = [{transform_indices = @transform_0, window_bounds = array<i64: 16, 64>}, {transform_indices = @transform_1, window_bounds = array<i64: 16, 64>}]} {
    %c0 = arith.constant 0 : index
    %c0_0 = arith.constant 0 : index
    %0 = vector.load %arg1[%c0, %c0_0] : memref<16x64xf32, #tpu.memory_space<vmem>>, vector<16x64xf32>
    %cst = arith.constant dense<0.000000e+00> : vector<16xf32>
    %1 = vector.multi_reduction <add>, %0, %cst [1] : vector<16x64xf32> to vector<16xf32>
    %2 = vector.shape_cast %1 : vector<16xf32> to vector<16x1xf32>
    %cst_1 = arith.constant 6.400000e+01 : f32
    %3 = vector.broadcast %cst_1 : f32 to vector<16x1xf32>
    %4 = arith.divf %2, %3 : vector<16x1xf32>
    %5 = vector.broadcast %4 : vector<16x1xf32> to vector<16x64xf32>
    %6 = arith.subf %0, %5 : vector<16x64xf32>
    %7 = arith.mulf %6, %6 : vector<16x64xf32>
    %cst_2 = arith.constant dense<0.000000e+00> : vector<16xf32>
    %8 = vector.multi_reduction <add>, %7, %cst_2 [1] : vector<16x64xf32> to vector<16xf32>
    %9 = vector.shape_cast %8 : vector<16xf32> to vector<16x1xf32>
    %cst_3 = arith.constant 6.400000e+01 : f32
    %10 = vector.broadcast %cst_3 : f32 to vector<16x1xf32>
    %11 = arith.divf %9, %10 : vector<16x1xf32>
    %12 = vector.broadcast %4 : vector<16x1xf32> to vector<16x64xf32>
    %13 = arith.subf %0, %12 : vector<16x64xf32>
    %cst_4 = arith.constant 9.99999974E-6 : f32
    %14 = vector.broadcast %cst_4 : f32 to vector<16x1xf32>
    %15 = arith.addf %11, %14 : vector<16x1xf32>
    %16 = math.rsqrt %15 : vector<16x1xf32>
    %17 = vector.broadcast %16 : vector<16x1xf32> to vector<16x64xf32>
    %18 = arith.mulf %13, %17 : vector<16x64xf32>
    %19 = arith.truncf %18 : vector<16x64xf32> to vector<16x64xbf16>
    %c0_5 = arith.constant 0 : index
    %c0_6 = arith.constant 0 : index
    %20 = vector.load %arg2[%c0_5, %c0_6] : memref<16x64xbf16, #tpu.memory_space<vmem>>, vector<16x64xbf16>
    tpu.vector_store %arg2[%c0_5, %c0_6], %19 {strides = array<i32>} : memref<16x64xbf16, #tpu.memory_space<vmem>>, vector<16x64xbf16>,
    return
  }
  func.func @transform_0(%arg0: i32) -> (i32, i32) {
    %c0_i32 = arith.constant 0 : i32
    %c0_i32_0 = arith.constant 0 : i32
    return %arg0, %c0_i32 : i32, i32
  }
  func.func @transform_1(%arg0: i32) -> (i32, i32) {
    %c0_i32 = arith.constant 0 : i32
    %c0_i32_0 = arith.constant 0 : i32
    return %arg0, %c0_i32 : i32, i32
  }
}

module attributes {stable_mosaic.version = 11 : i64} {
  func.func @_ln_matmul_kernel(%arg0: i32, %arg1: i32, %arg2: memref<128x32xf32, #tpu.memory_space<vmem>>, %arg3: memref<1x32xf32, #tpu.memory_space<vmem>>, %arg4: memref<1x32xf32, #tpu.memory_space<vmem>>, %arg5: memref<32x96xbf16, #tpu.memory_space<vmem>>, %arg6: memref<128x96xbf16, #tpu.memory_space<vmem>>) attributes {dimension_semantics = [#tpu.dimension_semantics<parallel>, #tpu.dimension_semantics<parallel>], iteration_bounds = array<i64: 1, 1>, scalar_prefetch = 0 : i64, scratch_operands = 0 : i64, tpu.core_type = #tpu.core_type<tc>, window_params = [{transform_indices = @transform_0, window_bounds = array<i64: 128, 32>}, {pipeline_mode = #tpu.pipeline_mode<synchronous>, transform_indices = @transform_1, window_bounds = array<i64: 1, 32>}, {pipeline_mode = #tpu.pipeline_mode<synchronous>, transform_indices = @transform_2, window_bounds = array<i64: 1, 32>}, {transform_indices = @transform_3, window_bounds = array<i64: 32, 96>}, {transform_indices = @transform_4, window_bounds = array<i64: 128, 96>}]} {
    %c0 = arith.constant 0 : index
    %c0_0 = arith.constant 0 : index
    %0 = vector.load %arg2[%c0, %c0_0] : memref<128x32xf32, #tpu.memory_space<vmem>>, vector<128x32xf32>
    %cst = arith.constant dense<0.000000e+00> : vector<128xf32>
    %1 = vector.multi_reduction <add>, %0, %cst [1] : vector<128x32xf32> to vector<128xf32>
    %2 = vector.shape_cast %1 : vector<128xf32> to vector<128x1xf32>
    %cst_1 = arith.constant 3.200000e+01 : f32
    %3 = vector.broadcast %cst_1 : f32 to vector<128x1xf32>
    %4 = arith.divf %2, %3 : vector<128x1xf32>
    %5 = vector.broadcast %4 : vector<128x1xf32> to vector<128x32xf32>
    %6 = arith.subf %0, %5 : vector<128x32xf32>
    %7 = arith.mulf %6, %6 : vector<128x32xf32>
    %cst_2 = arith.constant dense<0.000000e+00> : vector<128xf32>
    %8 = vector.multi_reduction <add>, %7, %cst_2 [1] : vector<128x32xf32> to vector<128xf32>
    %9 = vector.shape_cast %8 : vector<128xf32> to vector<128x1xf32>
    %cst_3 = arith.constant 3.200000e+01 : f32
    %10 = vector.broadcast %cst_3 : f32 to vector<128x1xf32>
    %11 = arith.divf %9, %10 : vector<128x1xf32>
    %12 = vector.broadcast %4 : vector<128x1xf32> to vector<128x32xf32>
    %13 = arith.subf %0, %12 : vector<128x32xf32>
    %cst_4 = arith.constant 9.99999974E-6 : f32
    %14 = vector.broadcast %cst_4 : f32 to vector<128x1xf32>
    %15 = arith.addf %11, %14 : vector<128x1xf32>
    %16 = math.rsqrt %15 : vector<128x1xf32>
    %17 = vector.broadcast %16 : vector<128x1xf32> to vector<128x32xf32>
    %18 = arith.mulf %13, %17 : vector<128x32xf32>
    %c0_5 = arith.constant 0 : index
    %c0_6 = arith.constant 0 : index
    %19 = vector.load %arg3[%c0_5, %c0_6] : memref<1x32xf32, #tpu.memory_space<vmem>>, vector<1x32xf32>
    %20 = vector.broadcast %19 : vector<1x32xf32> to vector<128x32xf32>
    %21 = arith.mulf %18, %20 : vector<128x32xf32>
    %c0_7 = arith.constant 0 : index
    %c0_8 = arith.constant 0 : index
    %22 = vector.load %arg4[%c0_7, %c0_8] : memref<1x32xf32, #tpu.memory_space<vmem>>, vector<1x32xf32>
    %23 = vector.broadcast %22 : vector<1x32xf32> to vector<128x32xf32>
    %24 = arith.addf %21, %23 : vector<128x32xf32>
    %25 = arith.truncf %24 : vector<128x32xf32> to vector<128x32xbf16>
    %c0_9 = arith.constant 0 : index
    %c0_10 = arith.constant 0 : index
    %26 = vector.load %arg5[%c0_9, %c0_10] : memref<32x96xbf16, #tpu.memory_space<vmem>>, vector<32x96xbf16>
    %cst_11 = arith.constant dense<0.000000e+00> : vector<128x96xf32>
    %27 = tpu.matmul %25, %26, %cst_11 {dimension_numbers = #tpu.dot_dimension_numbers<[1], [0], [0], [1], [0, 0, 1, 1], [], []>} : vector<128x32xbf16>, vector<32x96xbf16>, vector<128x96xf32> -> vector<128x96xf32>
    %28 = arith.truncf %27 : vector<128x96xf32> to vector<128x96xbf16>
    %c0_12 = arith.constant 0 : index
    %c0_13 = arith.constant 0 : index
    %29 = vector.load %arg6[%c0_12, %c0_13] : memref<128x96xbf16, #tpu.memory_space<vmem>>, vector<128x96xbf16>
    tpu.vector_store %arg6[%c0_12, %c0_13], %28 {strides = array<i32>} : memref<128x96xbf16, #tpu.memory_space<vmem>>, vector<128x96xbf16>,
    return
  }
  func.func @transform_0(%arg0: i32, %arg1: i32) -> (i32, i32) {
    %c0_i32 = arith.constant 0 : i32
    %c0_i32_0 = arith.constant 0 : i32
    return %arg0, %c0_i32 : i32, i32
  }
  func.func @transform_1(%arg0: i32, %arg1: i32) -> (i32, i32) {
    %c0_i32 = arith.constant 0 : i32
    %c0_i32_0 = arith.constant 0 : i32
    %c0_i32_1 = arith.constant 0 : i32
    return %c0_i32, %c0_i32_0 : i32, i32
  }
  func.func @transform_2(%arg0: i32, %arg1: i32) -> (i32, i32) {
    %c0_i32 = arith.constant 0 : i32
    %c0_i32_0 = arith.constant 0 : i32
    %c0_i32_1 = arith.constant 0 : i32
    return %c0_i32, %c0_i32_0 : i32, i32
  }
  func.func @transform_3(%arg0: i32, %arg1: i32) -> (i32, i32) {
    %c0_i32 = arith.constant 0 : i32
    %c0_i32_0 = arith.constant 0 : i32
    return %c0_i32, %arg1 : i32, i32
  }
  func.func @transform_4(%arg0: i32, %arg1: i32) -> (i32, i32) {
    %c0_i32 = arith.constant 0 : i32
    return %arg0, %arg1 : i32, i32
  }
}

module attributes {stable_mosaic.version = 11 : i64} {
  func.func @_matmul_kernel(%arg0: i32, %arg1: i32, %arg2: i32, %arg3: memref<128x32xbf16, #tpu.memory_space<vmem>>, %arg4: memref<32x32xbf16, #tpu.memory_space<vmem>>, %arg5: memref<1x32xf32, #tpu.memory_space<vmem>>, %arg6: memref<128x32xf32, #tpu.memory_space<vmem>>, %arg7: memref<128x32xf32, #tpu.memory_space<vmem>>) attributes {dimension_semantics = [#tpu.dimension_semantics<parallel>, #tpu.dimension_semantics<parallel>, #tpu.dimension_semantics<arbitrary>], iteration_bounds = array<i64: 1, 1, 1>, scalar_prefetch = 0 : i64, scratch_operands = 1 : i64, tpu.core_type = #tpu.core_type<tc>, window_params = [{transform_indices = @transform_0, window_bounds = array<i64: 128, 32>}, {transform_indices = @transform_1, window_bounds = array<i64: 32, 32>}, {transform_indices = @transform_2, window_bounds = array<i64: 1, 32>}, {transform_indices = @transform_3, window_bounds = array<i64: 128, 32>}]} {
    %c0_i32 = arith.constant 0 : i32
    %0 = arith.cmpi eq, %arg2, %c0_i32 : i32
    %1 = arith.extui %0 : i1 to i32
    %c0_i32_0 = arith.constant 0 : i32
    %2 = arith.cmpi ne, %1, %c0_i32_0 : i32
    scf.if %2 {
      %cst_10 = arith.constant 0.000000e+00 : f32
      %12 = vector.broadcast %cst_10 : f32 to vector<128x32xf32>
      %c0_11 = arith.constant 0 : index
      %c0_12 = arith.constant 0 : index
      %13 = vector.load %arg7[%c0_11, %c0_12] : memref<128x32xf32, #tpu.memory_space<vmem>>, vector<128x32xf32>
      tpu.vector_store %arg7[%c0_11, %c0_12], %12 {strides = array<i32>} : memref<128x32xf32, #tpu.memory_space<vmem>>, vector<128x32xf32>,
    } else {
    }
    %c0 = arith.constant 0 : index
    %c0_1 = arith.constant 0 : index
    %3 = vector.load %arg7[%c0, %c0_1] : memref<128x32xf32, #tpu.memory_space<vmem>>, vector<128x32xf32>
    %c0_2 = arith.constant 0 : index
    %c0_3 = arith.constant 0 : index
    %4 = vector.load %arg3[%c0_2, %c0_3] : memref<128x32xbf16, #tpu.memory_space<vmem>>, vector<128x32xbf16>
    %c0_4 = arith.constant 0 : index
    %c0_5 = arith.constant 0 : index
    %5 = vector.load %arg4[%c0_4, %c0_5] : memref<32x32xbf16, #tpu.memory_space<vmem>>, vector<32x32xbf16>
    %cst = arith.constant dense<0.000000e+00> : vector<128x32xf32>
    %6 = tpu.matmul %4, %5, %cst {dimension_numbers = #tpu.dot_dimension_numbers<[1], [0], [0], [1], [0, 0, 1, 1], [], []>} : vector<128x32xbf16>, vector<32x32xbf16>, vector<128x32xf32> -> vector<128x32xf32>
    %7 = arith.addf %3, %6 : vector<128x32xf32>
    %c0_6 = arith.constant 0 : index
    %c0_7 = arith.constant 0 : index
    %8 = vector.load %arg7[%c0_6, %c0_7] : memref<128x32xf32, #tpu.memory_space<vmem>>, vector<128x32xf32>
    tpu.vector_store %arg7[%c0_6, %c0_7], %7 {strides = array<i32>} : memref<128x32xf32, #tpu.memory_space<vmem>>, vector<128x32xf32>,
    %c0_i32_8 = arith.constant 0 : i32
    %9 = arith.cmpi eq, %arg2, %c0_i32_8 : i32
    %10 = arith.extui %9 : i1 to i32
    %c0_i32_9 = arith.constant 0 : i32
    %11 = arith.cmpi ne, %10, %c0_i32_9 : i32
    scf.if %11 {
      %c0_10 = arith.constant 0 : index
      %c0_11 = arith.constant 0 : index
      %12 = vector.load %arg7[%c0_10, %c0_11] : memref<128x32xf32, #tpu.memory_space<vmem>>, vector<128x32xf32>
      %c0_12 = arith.constant 0 : index
      %c0_13 = arith.constant 0 : index
      %13 = vector.load %arg5[%c0_12, %c0_13] : memref<1x32xf32, #tpu.memory_space<vmem>>, vector<1x32xf32>
      %14 = vector.broadcast %13 : vector<1x32xf32> to vector<128x32xf32>
      %15 = arith.addf %12, %14 : vector<128x32xf32>
      %c0_14 = arith.constant 0 : index
      %c0_15 = arith.constant 0 : index
      %16 = vector.load %arg6[%c0_14, %c0_15] : memref<128x32xf32, #tpu.memory_space<vmem>>, vector<128x32xf32>
      tpu.vector_store %arg6[%c0_14, %c0_15], %15 {strides = array<i32>} : memref<128x32xf32, #tpu.memory_space<vmem>>, vector<128x32xf32>,
    } else {
    }
    return
  }
  func.func @transform_0(%arg0: i32, %arg1: i32, %arg2: i32) -> (i32, i32) {
    %c0_i32 = arith.constant 0 : i32
    return %arg0, %arg2 : i32, i32
  }
  func.func @transform_1(%arg0: i32, %arg1: i32, %arg2: i32) -> (i32, i32) {
    %c0_i32 = arith.constant 0 : i32
    return %arg2, %arg1 : i32, i32
  }
  func.func @transform_2(%arg0: i32, %arg1: i32, %arg2: i32) -> (i32, i32) {
    %c0_i32 = arith.constant 0 : i32
    %c0_i32_0 = arith.constant 0 : i32
    return %c0_i32, %arg1 : i32, i32
  }
  func.func @transform_3(%arg0: i32, %arg1: i32, %arg2: i32) -> (i32, i32) {
    %c0_i32 = arith.constant 0 : i32
    return %arg0, %arg1 : i32, i32
  }
}

module attributes {stable_mosaic.version = 11 : i64} {
  func.func @_flash_mha_kernel(%arg0: i32, %arg1: i32, %arg2: i32, %arg3: memref<1x2x64x16xbf16, #tpu.memory_space<vmem>>, %arg4: memref<1x2x64x16xbf16, #tpu.memory_space<vmem>>, %arg5: memref<1x2x64x16xbf16, #tpu.memory_space<vmem>>, %arg6: memref<1x2x64x16xbf16, #tpu.memory_space<vmem>>, %arg7: memref<2x64x1xf32, #tpu.memory_space<vmem>>, %arg8: memref<2x64x1xf32, #tpu.memory_space<vmem>>, %arg9: memref<2x64x16xf32, #tpu.memory_space<vmem>>) attributes {dimension_semantics = [#tpu.dimension_semantics<parallel>, #tpu.dimension_semantics<parallel>, #tpu.dimension_semantics<arbitrary>], iteration_bounds = array<i64: 2, 1, 1>, scalar_prefetch = 0 : i64, scratch_operands = 3 : i64, tpu.core_type = #tpu.core_type<tc>, window_params = [{transform_indices = @transform_0, window_bounds = array<i64: 1, 2, 64, 16>}, {transform_indices = @transform_1, window_bounds = array<i64: 1, 2, 64, 16>}, {transform_indices = @transform_2, window_bounds = array<i64: 1, 2, 64, 16>}, {transform_indices = @transform_3, window_bounds = array<i64: 1, 2, 64, 16>}]} {
    %c0_i32 = arith.constant 0 : i32
    %0 = arith.cmpi eq, %arg2, %c0_i32 : i32
    %1 = arith.extui %0 : i1 to i32
    %c0_i32_0 = arith.constant 0 : i32
    %2 = arith.cmpi ne, %1, %c0_i32_0 : i32
    scf.if %2 {
      %cst_35 = arith.constant 0xFF800000 : f32
      %36 = vector.broadcast %cst_35 : f32 to vector<2x64x1xf32>
      %c0_36 = arith.constant 0 : index
      %c0_37 = arith.constant 0 : index
      %c0_38 = arith.constant 0 : index
      %37 = vector.load %arg7[%c0_36, %c0_37, %c0_38] : memref<2x64x1xf32, #tpu.memory_space<vmem>>, vector<2x64x1xf32>
      tpu.vector_store %arg7[%c0_36, %c0_37, %c0_38], %36 {strides = array<i32>} : memref<2x64x1xf32, #tpu.memory_space<vmem>>, vector<2x64x1xf32>,
      %cst_39 = arith.constant 0.000000e+00 : f32
      %38 = vector.broadcast %cst_39 : f32 to vector<2x64x1xf32>
      %c0_40 = arith.constant 0 : index
      %c0_41 = arith.constant 0 : index
      %c0_42 = arith.constant 0 : index
      %39 = vector.load %arg8[%c0_40, %c0_41, %c0_42] : memref<2x64x1xf32, #tpu.memory_space<vmem>>, vector<2x64x1xf32>
      tpu.vector_store %arg8[%c0_40, %c0_41, %c0_42], %38 {strides = array<i32>} : memref<2x64x1xf32, #tpu.memory_space<vmem>>, vector<2x64x1xf32>,
      %cst_43 = arith.constant 0.000000e+00 : f32
      %40 = vector.broadcast %cst_43 : f32 to vector<2x64x16xf32>
      %c0_44 = arith.constant 0 : index
      %c0_45 = arith.constant 0 : index
      %c0_46 = arith.constant 0 : index
      %41 = vector.load %arg9[%c0_44, %c0_45, %c0_46] : memref<2x64x16xf32, #tpu.memory_space<vmem>>, vector<2x64x16xf32>
      tpu.vector_store %arg9[%c0_44, %c0_45, %c0_46], %40 {strides = array<i32>} : memref<2x64x16xf32, #tpu.memory_space<vmem>>, vector<2x64x16xf32>,
    } else {
    }
    %c0 = arith.constant 0 : index
    %c0_1 = arith.constant 0 : index
    %c0_2 = arith.constant 0 : index
    %c0_3 = arith.constant 0 : index
    %3 = vector.load %arg3[%c0, %c0_1, %c0_2, %c0_3] : memref<1x2x64x16xbf16, #tpu.memory_space<vmem>>, vector<1x2x64x16xbf16>
    %4 = vector.shape_cast %3 : vector<1x2x64x16xbf16> to vector<2x64x16xbf16>
    %c0_4 = arith.constant 0 : index
    %c0_5 = arith.constant 0 : index
    %c0_6 = arith.constant 0 : index
    %c0_7 = arith.constant 0 : index
    %5 = vector.load %arg4[%c0_4, %c0_5, %c0_6, %c0_7] : memref<1x2x64x16xbf16, #tpu.memory_space<vmem>>, vector<1x2x64x16xbf16>
    %6 = vector.shape_cast %5 : vector<1x2x64x16xbf16> to vector<2x64x16xbf16>
    %c0_8 = arith.constant 0 : index
    %c0_9 = arith.constant 0 : index
    %c0_10 = arith.constant 0 : index
    %c0_11 = arith.constant 0 : index
    %7 = vector.load %arg5[%c0_8, %c0_9, %c0_10, %c0_11] : memref<1x2x64x16xbf16, #tpu.memory_space<vmem>>, vector<1x2x64x16xbf16>
    %8 = vector.shape_cast %7 : vector<1x2x64x16xbf16> to vector<2x64x16xbf16>
    "tpu.trace_start"() <{level = 10 : i32, message = "hqd,hkd->hqk"}> : () -> ()
    %cst = arith.constant dense<0.000000e+00> : vector<2x64x64xf32>
    %9 = tpu.matmul %4, %6, %cst {dimension_numbers = #tpu.dot_dimension_numbers<[2], [2], [1], [1], [0, 0, 0, 1, 1, 1], [0], [0]>} : vector<2x64x16xbf16>, vector<2x64x16xbf16>, vector<2x64x64xf32> -> vector<2x64x64xf32>
    "tpu.trace_stop"() : () -> ()
    %c0_12 = arith.constant 0 : index
    %c0_13 = arith.constant 0 : index
    %c0_14 = arith.constant 0 : index
    %10 = vector.load %arg7[%c0_12, %c0_13, %c0_14] : memref<2x64x1xf32, #tpu.memory_space<vmem>>, vector<2x64x1xf32>
    %cst_15 = arith.constant dense<0xFF800000> : vector<2x64xf32>
    %11 = vector.multi_reduction <maximumf>, %9, %cst_15 [2] : vector<2x64x64xf32> to vector<2x64xf32>
    %12 = vector.shape_cast %11 : vector<2x64xf32> to vector<2x64x1xf32>
    %13 = arith.maximumf %10, %12 : vector<2x64x1xf32>
    %14 = arith.subf %10, %13 : vector<2x64x1xf32>
    %15 = math.exp %14 : vector<2x64x1xf32>
    %16 = vector.broadcast %13 : vector<2x64x1xf32> to vector<2x64x64xf32>
    %17 = arith.subf %9, %16 : vector<2x64x64xf32>
    %18 = math.exp %17 : vector<2x64x64xf32>
    %c0_16 = arith.constant 0 : index
    %c0_17 = arith.constant 0 : index
    %c0_18 = arith.constant 0 : index
    %19 = vector.load %arg8[%c0_16, %c0_17, %c0_18] : memref<2x64x1xf32, #tpu.memory_space<vmem>>, vector<2x64x1xf32>
    %20 = arith.mulf %15, %19 : vector<2x64x1xf32>
    %cst_19 = arith.constant dense<0.000000e+00> : vector<2x64xf32>
    %21 = vector.multi_reduction <add>, %18, %cst_19 [2] : vector<2x64x64xf32> to vector<2x64xf32>
    %22 = vector.shape_cast %21 : vector<2x64xf32> to vector<2x64x1xf32>
    %23 = arith.addf %20, %22 : vector<2x64x1xf32>
    %c0_20 = arith.constant 0 : index
    %c0_21 = arith.constant 0 : index
    %c0_22 = arith.constant 0 : index
    %24 = vector.load %arg8[%c0_20, %c0_21, %c0_22] : memref<2x64x1xf32, #tpu.memory_space<vmem>>, vector<2x64x1xf32>
    tpu.vector_store %arg8[%c0_20, %c0_21, %c0_22], %23 {strides = array<i32>} : memref<2x64x1xf32, #tpu.memory_space<vmem>>, vector<2x64x1xf32>,
    %c0_23 = arith.constant 0 : index
    %c0_24 = arith.constant 0 : index
    %c0_25 = arith.constant 0 : index
    %25 = vector.load %arg9[%c0_23, %c0_24, %c0_25] : memref<2x64x16xf32, #tpu.memory_space<vmem>>, vector<2x64x16xf32>
    %26 = vector.broadcast %15 : vector<2x64x1xf32> to vector<2x64x16xf32>
    %27 = arith.mulf %26, %25 : vector<2x64x16xf32>
    %28 = arith.truncf %18 : vector<2x64x64xf32> to vector<2x64x64xbf16>
    "tpu.trace_start"() <{level = 10 : i32, message = "hqk,hkd->hqd"}> : () -> ()
    %cst_26 = arith.constant dense<0.000000e+00> : vector<2x64x16xf32>
    %29 = tpu.matmul %28, %8, %cst_26 {dimension_numbers = #tpu.dot_dimension_numbers<[2], [1], [1], [2], [0, 0, 0, 1, 1, 2], [0], [0]>} : vector<2x64x64xbf16>, vector<2x64x16xbf16>, vector<2x64x16xf32> -> vector<2x64x16xf32>
    "tpu.trace_stop"() : () -> ()
    %30 = arith.addf %27, %29 : vector<2x64x16xf32>
    %c0_27 = arith.constant 0 : index
    %c0_28 = arith.constant 0 : index
    %c0_29 = arith.constant 0 : index
    %31 = vector.load %arg9[%c0_27, %c0_28, %c0_29] : memref<2x64x16xf32, #tpu.memory_space<vmem>>, vector<2x64x16xf32>
    tpu.vector_store %arg9[%c0_27, %c0_28, %c0_29], %30 {strides = array<i32>} : memref<2x64x16xf32, #tpu.memory_space<vmem>>, vector<2x64x16xf32>,
    %c0_30 = arith.constant 0 : index
    %c0_31 = arith.constant 0 : index
    %c0_32 = arith.constant 0 : index
    %32 = vector.load %arg7[%c0_30, %c0_31, %c0_32] : memref<2x64x1xf32, #tpu.memory_space<vmem>>, vector<2x64x1xf32>
    tpu.vector_store %arg7[%c0_30, %c0_31, %c0_32], %13 {strides = array<i32>} : memref<2x64x1xf32, #tpu.memory_space<vmem>>, vector<2x64x1xf32>,
    %c0_i32_33 = arith.constant 0 : i32
    %33 = arith.cmpi eq, %arg2, %c0_i32_33 : i32
    %34 = arith.extui %33 : i1 to i32
    %c0_i32_34 = arith.constant 0 : i32
    %35 = arith.cmpi ne, %34, %c0_i32_34 : i32
    scf.if %35 {
      %c0_35 = arith.constant 0 : index
      %c0_36 = arith.constant 0 : index
      %c0_37 = arith.constant 0 : index
      %36 = vector.load %arg8[%c0_35, %c0_36, %c0_37] : memref<2x64x1xf32, #tpu.memory_space<vmem>>, vector<2x64x1xf32>
      %37 = tpu.reciprocal %36 {approx = true} : vector<2x64x1xf32> -> vector<2x64x1xf32>
      %c0_38 = arith.constant 0 : index
      %c0_39 = arith.constant 0 : index
      %c0_40 = arith.constant 0 : index
      %38 = vector.load %arg9[%c0_38, %c0_39, %c0_40] : memref<2x64x16xf32, #tpu.memory_space<vmem>>, vector<2x64x16xf32>
      %39 = vector.broadcast %37 : vector<2x64x1xf32> to vector<2x64x16xf32>
      %40 = arith.mulf %38, %39 : vector<2x64x16xf32>
      %41 = arith.truncf %40 : vector<2x64x16xf32> to vector<2x64x16xbf16>
      %c0_41 = arith.constant 0 : index
      %c0_42 = arith.constant 0 : index
      %c0_43 = arith.constant 0 : index
      %c0_44 = arith.constant 0 : index
      %42 = vector.load %arg6[%c0_41, %c0_42, %c0_43, %c0_44] : memref<1x2x64x16xbf16, #tpu.memory_space<vmem>>, vector<1x2x64x16xbf16>
      %43 = vector.shape_cast %42 : vector<1x2x64x16xbf16> to vector<2x64x16xbf16>
      %44 = vector.shape_cast %41 : vector<2x64x16xbf16> to vector<1x2x64x16xbf16>
      tpu.vector_store %arg6[%c0_41, %c0_42, %c0_43, %c0_44], %44 {strides = array<i32>} : memref<1x2x64x16xbf16, #tpu.memory_space<vmem>>, vector<1x2x64x16xbf16>,
    } else {
    }
    return
  }
  func.func @transform_0(%arg0: i32, %arg1: i32, %arg2: i32) -> (i32, i32, i32, i32) {
    %c0_i32 = arith.constant 0 : i32
    %c0_i32_0 = arith.constant 0 : i32
    %c0_i32_1 = arith.constant 0 : i32
    return %arg0, %c0_i32, %arg1, %c0_i32_0 : i32, i32, i32, i32
  }
  func.func @transform_1(%arg0: i32, %arg1: i32, %arg2: i32) -> (i32, i32, i32, i32) {
    %c2_i32 = arith.constant 2 : i32
    %0 = arith.addi %c2_i32, %arg0 : i32
    %c0_i32 = arith.constant 0 : i32
    %c0_i32_0 = arith.constant 0 : i32
    %c0_i32_1 = arith.constant 0 : i32
    return %0, %c0_i32, %arg2, %c0_i32_0 : i32, i32, i32, i32
  }
  func.func @transform_2(%arg0: i32, %arg1: i32, %arg2: i32) -> (i32, i32, i32, i32) {
    %c4_i32 = arith.constant 4 : i32
    %0 = arith.addi %c4_i32, %arg0 : i32
    %c0_i32 = arith.constant 0 : i32
    %c0_i32_0 = arith.constant 0 : i32
    %c0_i32_1 = arith.constant 0 : i32
    return %0, %c0_i32, %arg2, %c0_i32_0 : i32, i32, i32, i32
  }
  func.func @transform_3(%arg0: i32, %arg1: i32, %arg2: i32) -> (i32, i32, i32, i32) {
    %c0_i32 = arith.constant 0 : i32
    %c0_i32_0 = arith.constant 0 : i32
    %c0_i32_1 = arith.constant 0 : i32
    return %arg0, %c0_i32, %arg1, %c0_i32_0 : i32, i32, i32, i32
  }
}

module attributes {stable_mosaic.version = 11 : i64} {
  func.func @_matmul_kernel(%arg0: i32, %arg1: i32, %arg2: i32, %arg3: memref<128x32xbf16, #tpu.memory_space<vmem>>, %arg4: memref<32x32xbf16, #tpu.memory_space<vmem>>, %arg5: memref<1x32xf32, #tpu.memory_space<vmem>>, %arg6: memref<128x32xf32, #tpu.memory_space<vmem>>, %arg7: memref<128x32xf32, #tpu.memory_space<vmem>>, %arg8: memref<128x32xf32, #tpu.memory_space<vmem>>) attributes {dimension_semantics = [#tpu.dimension_semantics<parallel>, #tpu.dimension_semantics<parallel>, #tpu.dimension_semantics<arbitrary>], iteration_bounds = array<i64: 1, 1, 1>, scalar_prefetch = 0 : i64, scratch_operands = 1 : i64, tpu.core_type = #tpu.core_type<tc>, window_params = [{transform_indices = @transform_0, window_bounds = array<i64: 128, 32>}, {transform_indices = @transform_1, window_bounds = array<i64: 32, 32>}, {transform_indices = @transform_2, window_bounds = array<i64: 1, 32>}, {transform_indices = @transform_3, window_bounds = array<i64: 128, 32>}, {transform_indices = @transform_4, window_bounds = array<i64: 128, 32>}]} {
    %c0_i32 = arith.constant 0 : i32
    %0 = arith.cmpi eq, %arg2, %c0_i32 : i32
    %1 = arith.extui %0 : i1 to i32
    %c0_i32_0 = arith.constant 0 : i32
    %2 = arith.cmpi ne, %1, %c0_i32_0 : i32
    scf.if %2 {
      %cst_10 = arith.constant 0.000000e+00 : f32
      %12 = vector.broadcast %cst_10 : f32 to vector<128x32xf32>
      %c0_11 = arith.constant 0 : index
      %c0_12 = arith.constant 0 : index
      %13 = vector.load %arg8[%c0_11, %c0_12] : memref<128x32xf32, #tpu.memory_space<vmem>>, vector<128x32xf32>
      tpu.vector_store %arg8[%c0_11, %c0_12], %12 {strides = array<i32>} : memref<128x32xf32, #tpu.memory_space<vmem>>, vector<128x32xf32>,
    } else {
    }
    %c0 = arith.constant 0 : index
    %c0_1 = arith.constant 0 : index
    %3 = vector.load %arg8[%c0, %c0_1] : memref<128x32xf32, #tpu.memory_space<vmem>>, vector<128x32xf32>
    %c0_2 = arith.constant 0 : index
    %c0_3 = arith.constant 0 : index
    %4 = vector.load %arg3[%c0_2, %c0_3] : memref<128x32xbf16, #tpu.memory_space<vmem>>, vector<128x32xbf16>
    %c0_4 = arith.constant 0 : index
    %c0_5 = arith.constant 0 : index
    %5 = vector.load %arg4[%c0_4, %c0_5] : memref<32x32xbf16, #tpu.memory_space<vmem>>, vector<32x32xbf16>
    %cst = arith.constant dense<0.000000e+00> : vector<128x32xf32>
    %6 = tpu.matmul %4, %5, %cst {dimension_numbers = #tpu.dot_dimension_numbers<[1], [0], [0], [1], [0, 0, 1, 1], [], []>} : vector<128x32xbf16>, vector<32x32xbf16>, vector<128x32xf32> -> vector<128x32xf32>
    %7 = arith.addf %3, %6 : vector<128x32xf32>
    %c0_6 = arith.constant 0 : index
    %c0_7 = arith.constant 0 : index
    %8 = vector.load %arg8[%c0_6, %c0_7] : memref<128x32xf32, #tpu.memory_space<vmem>>, vector<128x32xf32>
    tpu.vector_store %arg8[%c0_6, %c0_7], %7 {strides = array<i32>} : memref<128x32xf32, #tpu.memory_space<vmem>>, vector<128x32xf32>,
    %c0_i32_8 = arith.constant 0 : i32
    %9 = arith.cmpi eq, %arg2, %c0_i32_8 : i32
    %10 = arith.extui %9 : i1 to i32
    %c0_i32_9 = arith.constant 0 : i32
    %11 = arith.cmpi ne, %10, %c0_i32_9 : i32
    scf.if %11 {
      %c0_10 = arith.constant 0 : index
      %c0_11 = arith.constant 0 : index
      %12 = vector.load %arg8[%c0_10, %c0_11] : memref<128x32xf32, #tpu.memory_space<vmem>>, vector<128x32xf32>
      %c0_12 = arith.constant 0 : index
      %c0_13 = arith.constant 0 : index
      %13 = vector.load %arg5[%c0_12, %c0_13] : memref<1x32xf32, #tpu.memory_space<vmem>>, vector<1x32xf32>
      %14 = vector.broadcast %13 : vector<1x32xf32> to vector<128x32xf32>
      %15 = arith.addf %12, %14 : vector<128x32xf32>
      %c0_14 = arith.constant 0 : index
      %c0_15 = arith.constant 0 : index
      %16 = vector.load %arg6[%c0_14, %c0_15] : memref<128x32xf32, #tpu.memory_space<vmem>>, vector<128x32xf32>
      %17 = arith.addf %15, %16 : vector<128x32xf32>
      %c0_16 = arith.constant 0 : index
      %c0_17 = arith.constant 0 : index
      %18 = vector.load %arg7[%c0_16, %c0_17] : memref<128x32xf32, #tpu.memory_space<vmem>>, vector<128x32xf32>
      tpu.vector_store %arg7[%c0_16, %c0_17], %17 {strides = array<i32>} : memref<128x32xf32, #tpu.memory_space<vmem>>, vector<128x32xf32>,
    } else {
    }
    return
  }
  func.func @transform_0(%arg0: i32, %arg1: i32, %arg2: i32) -> (i32, i32) {
    %c0_i32 = arith.constant 0 : i32
    return %arg0, %arg2 : i32, i32
  }
  func.func @transform_1(%arg0: i32, %arg1: i32, %arg2: i32) -> (i32, i32) {
    %c0_i32 = arith.constant 0 : i32
    return %arg2, %arg1 : i32, i32
  }
  func.func @transform_2(%arg0: i32, %arg1: i32, %arg2: i32) -> (i32, i32) {
    %c0_i32 = arith.constant 0 : i32
    %c0_i32_0 = arith.constant 0 : i32
    return %c0_i32, %arg1 : i32, i32
  }
  func.func @transform_3(%arg0: i32, %arg1: i32, %arg2: i32) -> (i32, i32) {
    %c0_i32 = arith.constant 0 : i32
    return %arg0, %arg1 : i32, i32
  }
  func.func @transform_4(%arg0: i32, %arg1: i32, %arg2: i32) -> (i32, i32) {
    %c0_i32 = arith.constant 0 : i32
    return %arg0, %arg1 : i32, i32
  }
}

module attributes {stable_mosaic.version = 11 : i64} {
  func.func @_matmul_kernel(%arg0: i32, %arg1: i32, %arg2: i32, %arg3: memref<128x128xbf16, #tpu.memory_space<vmem>>, %arg4: memref<128x32xbf16, #tpu.memory_space<vmem>>, %arg5: memref<1x32xf32, #tpu.memory_space<vmem>>, %arg6: memref<128x32xf32, #tpu.memory_space<vmem>>, %arg7: memref<128x32xf32, #tpu.memory_space<vmem>>, %arg8: memref<128x32xf32, #tpu.memory_space<vmem>>) attributes {dimension_semantics = [#tpu.dimension_semantics<parallel>, #tpu.dimension_semantics<parallel>, #tpu.dimension_semantics<arbitrary>], iteration_bounds = array<i64: 1, 1, 1>, scalar_prefetch = 0 : i64, scratch_operands = 1 : i64, tpu.core_type = #tpu.core_type<tc>, window_params = [{transform_indices = @transform_0, window_bounds = array<i64: 128, 128>}, {transform_indices = @transform_1, window_bounds = array<i64: 128, 32>}, {transform_indices = @transform_2, window_bounds = array<i64: 1, 32>}, {transform_indices = @transform_3, window_bounds = array<i64: 128, 32>}, {transform_indices = @transform_4, window_bounds = array<i64: 128, 32>}]} {
    %c0_i32 = arith.constant 0 : i32
    %0 = arith.cmpi eq, %arg2, %c0_i32 : i32
    %1 = arith.extui %0 : i1 to i32
    %c0_i32_0 = arith.constant 0 : i32
    %2 = arith.cmpi ne, %1, %c0_i32_0 : i32
    scf.if %2 {
      %cst_10 = arith.constant 0.000000e+00 : f32
      %12 = vector.broadcast %cst_10 : f32 to vector<128x32xf32>
      %c0_11 = arith.constant 0 : index
      %c0_12 = arith.constant 0 : index
      %13 = vector.load %arg8[%c0_11, %c0_12] : memref<128x32xf32, #tpu.memory_space<vmem>>, vector<128x32xf32>
      tpu.vector_store %arg8[%c0_11, %c0_12], %12 {strides = array<i32>} : memref<128x32xf32, #tpu.memory_space<vmem>>, vector<128x32xf32>,
    } else {
    }
    %c0 = arith.constant 0 : index
    %c0_1 = arith.constant 0 : index
    %3 = vector.load %arg8[%c0, %c0_1] : memref<128x32xf32, #tpu.memory_space<vmem>>, vector<128x32xf32>
    %c0_2 = arith.constant 0 : index
    %c0_3 = arith.constant 0 : index
    %4 = vector.load %arg3[%c0_2, %c0_3] : memref<128x128xbf16, #tpu.memory_space<vmem>>, vector<128x128xbf16>
    %c0_4 = arith.constant 0 : index
    %c0_5 = arith.constant 0 : index
    %5 = vector.load %arg4[%c0_4, %c0_5] : memref<128x32xbf16, #tpu.memory_space<vmem>>, vector<128x32xbf16>
    %cst = arith.constant dense<0.000000e+00> : vector<128x32xf32>
    %6 = tpu.matmul %4, %5, %cst {dimension_numbers = #tpu.dot_dimension_numbers<[1], [0], [0], [1], [0, 0, 1, 1], [], []>} : vector<128x128xbf16>, vector<128x32xbf16>, vector<128x32xf32> -> vector<128x32xf32>
    %7 = arith.addf %3, %6 : vector<128x32xf32>
    %c0_6 = arith.constant 0 : index
    %c0_7 = arith.constant 0 : index
    %8 = vector.load %arg8[%c0_6, %c0_7] : memref<128x32xf32, #tpu.memory_space<vmem>>, vector<128x32xf32>
    tpu.vector_store %arg8[%c0_6, %c0_7], %7 {strides = array<i32>} : memref<128x32xf32, #tpu.memory_space<vmem>>, vector<128x32xf32>,
    %c0_i32_8 = arith.constant 0 : i32
    %9 = arith.cmpi eq, %arg2, %c0_i32_8 : i32
    %10 = arith.extui %9 : i1 to i32
    %c0_i32_9 = arith.constant 0 : i32
    %11 = arith.cmpi ne, %10, %c0_i32_9 : i32
    scf.if %11 {
      %c0_10 = arith.constant 0 : index
      %c0_11 = arith.constant 0 : index
      %12 = vector.load %arg8[%c0_10, %c0_11] : memref<128x32xf32, #tpu.memory_space<vmem>>, vector<128x32xf32>
      %c0_12 = arith.constant 0 : index
      %c0_13 = arith.constant 0 : index
      %13 = vector.load %arg5[%c0_12, %c0_13] : memref<1x32xf32, #tpu.memory_space<vmem>>, vector<1x32xf32>
      %14 = vector.broadcast %13 : vector<1x32xf32> to vector<128x32xf32>
      %15 = arith.addf %12, %14 : vector<128x32xf32>
      %c0_14 = arith.constant 0 : index
      %c0_15 = arith.constant 0 : index
      %16 = vector.load %arg6[%c0_14, %c0_15] : memref<128x32xf32, #tpu.memory_space<vmem>>, vector<128x32xf32>
      %17 = arith.addf %15, %16 : vector<128x32xf32>
      %c0_16 = arith.constant 0 : index
      %c0_17 = arith.constant 0 : index
      %18 = vector.load %arg7[%c0_16, %c0_17] : memref<128x32xf32, #tpu.memory_space<vmem>>, vector<128x32xf32>
      tpu.vector_store %arg7[%c0_16, %c0_17], %17 {strides = array<i32>} : memref<128x32xf32, #tpu.memory_space<vmem>>, vector<128x32xf32>,
    } else {
    }
    return
  }
  func.func @transform_0(%arg0: i32, %arg1: i32, %arg2: i32) -> (i32, i32) {
    %c0_i32 = arith.constant 0 : i32
    return %arg0, %arg2 : i32, i32
  }
  func.func @transform_1(%arg0: i32, %arg1: i32, %arg2: i32) -> (i32, i32) {
    %c0_i32 = arith.constant 0 : i32
    return %arg2, %arg1 : i32, i32
  }
  func.func @transform_2(%arg0: i32, %arg1: i32, %arg2: i32) -> (i32, i32) {
    %c0_i32 = arith.constant 0 : i32
    %c0_i32_0 = arith.constant 0 : i32
    return %c0_i32, %arg1 : i32, i32
  }
  func.func @transform_3(%arg0: i32, %arg1: i32, %arg2: i32) -> (i32, i32) {
    %c0_i32 = arith.constant 0 : i32
    return %arg0, %arg1 : i32, i32
  }
  func.func @transform_4(%arg0: i32, %arg1: i32, %arg2: i32) -> (i32, i32) {
    %c0_i32 = arith.constant 0 : i32
    return %arg0, %arg1 : i32, i32
  }
}

module attributes {stable_mosaic.version = 11 : i64} {
  func.func @_ln_matmul_geglu_kernel(%arg0: i32, %arg1: i32, %arg2: memref<128x32xf32, #tpu.memory_space<vmem>>, %arg3: memref<1x32xf32, #tpu.memory_space<vmem>>, %arg4: memref<1x32xf32, #tpu.memory_space<vmem>>, %arg5: memref<32x128xbf16, #tpu.memory_space<vmem>>, %arg6: memref<32x128xbf16, #tpu.memory_space<vmem>>, %arg7: memref<1x128xf32, #tpu.memory_space<vmem>>, %arg8: memref<1x128xf32, #tpu.memory_space<vmem>>, %arg9: memref<128x128xbf16, #tpu.memory_space<vmem>>) attributes {dimension_semantics = [#tpu.dimension_semantics<parallel>, #tpu.dimension_semantics<parallel>], iteration_bounds = array<i64: 1, 1>, scalar_prefetch = 0 : i64, scratch_operands = 0 : i64, tpu.core_type = #tpu.core_type<tc>, window_params = [{transform_indices = @transform_0, window_bounds = array<i64: 128, 32>}, {pipeline_mode = #tpu.pipeline_mode<synchronous>, transform_indices = @transform_1, window_bounds = array<i64: 1, 32>}, {pipeline_mode = #tpu.pipeline_mode<synchronous>, transform_indices = @transform_2, window_bounds = array<i64: 1, 32>}, {transform_indices = @transform_3, window_bounds = array<i64: 32, 128>}, {transform_indices = @transform_4, window_bounds = array<i64: 32, 128>}, {transform_indices = @transform_5, window_bounds = array<i64: 1, 128>}, {transform_indices = @transform_6, window_bounds = array<i64: 1, 128>}, {transform_indices = @transform_7, window_bounds = array<i64: 128, 128>}]} {
    %c0 = arith.constant 0 : index
    %c0_0 = arith.constant 0 : index
    %0 = vector.load %arg2[%c0, %c0_0] : memref<128x32xf32, #tpu.memory_space<vmem>>, vector<128x32xf32>
    %cst = arith.constant dense<0.000000e+00> : vector<128xf32>
    %1 = vector.multi_reduction <add>, %0, %cst [1] : vector<128x32xf32> to vector<128xf32>
    %2 = vector.shape_cast %1 : vector<128xf32> to vector<128x1xf32>
    %cst_1 = arith.constant 3.200000e+01 : f32
    %3 = vector.broadcast %cst_1 : f32 to vector<128x1xf32>
    %4 = arith.divf %2, %3 : vector<128x1xf32>
    %5 = vector.broadcast %4 : vector<128x1xf32> to vector<128x32xf32>
    %6 = arith.subf %0, %5 : vector<128x32xf32>
    %7 = arith.mulf %6, %6 : vector<128x32xf32>
    %cst_2 = arith.constant dense<0.000000e+00> : vector<128xf32>
    %8 = vector.multi_reduction <add>, %7, %cst_2 [1] : vector<128x32xf32> to vector<128xf32>
    %9 = vector.shape_cast %8 : vector<128xf32> to vector<128x1xf32>
    %cst_3 = arith.constant 3.200000e+01 : f32
    %10 = vector.broadcast %cst_3 : f32 to vector<128x1xf32>
    %11 = arith.divf %9, %10 : vector<128x1xf32>
    %12 = vector.broadcast %4 : vector<128x1xf32> to vector<128x32xf32>
    %13 = arith.subf %0, %12 : vector<128x32xf32>
    %cst_4 = arith.constant 9.99999974E-6 : f32
    %14 = vector.broadcast %cst_4 : f32 to vector<128x1xf32>
    %15 = arith.addf %11, %14 : vector<128x1xf32>
    %16 = math.rsqrt %15 : vector<128x1xf32>
    %17 = vector.broadcast %16 : vector<128x1xf32> to vector<128x32xf32>
    %18 = arith.mulf %13, %17 : vector<128x32xf32>
    %c0_5 = arith.constant 0 : index
    %c0_6 = arith.constant 0 : index
    %19 = vector.load %arg3[%c0_5, %c0_6] : memref<1x32xf32, #tpu.memory_space<vmem>>, vector<1x32xf32>
    %20 = vector.broadcast %19 : vector<1x32xf32> to vector<128x32xf32>
    %21 = arith.mulf %18, %20 : vector<128x32xf32>
    %c0_7 = arith.constant 0 : index
    %c0_8 = arith.constant 0 : index
    %22 = vector.load %arg4[%c0_7, %c0_8] : memref<1x32xf32, #tpu.memory_space<vmem>>, vector<1x32xf32>
    %23 = vector.broadcast %22 : vector<1x32xf32> to vector<128x32xf32>
    %24 = arith.addf %21, %23 : vector<128x32xf32>
    %25 = arith.truncf %24 : vector<128x32xf32> to vector<128x32xbf16>
    %c0_9 = arith.constant 0 : index
    %c0_10 = arith.constant 0 : index
    %26 = vector.load %arg5[%c0_9, %c0_10] : memref<32x128xbf16, #tpu.memory_space<vmem>>, vector<32x128xbf16>
    %cst_11 = arith.constant dense<0.000000e+00> : vector<128x128xf32>
    %27 = tpu.matmul %25, %26, %cst_11 {dimension_numbers = #tpu.dot_dimension_numbers<[1], [0], [0], [1], [0, 0, 1, 1], [], []>} : vector<128x32xbf16>, vector<32x128xbf16>, vector<128x128xf32> -> vector<128x128xf32>
    %c0_12 = arith.constant 0 : index
    %c0_13 = arith.constant 0 : index
    %28 = vector.load %arg7[%c0_12, %c0_13] : memref<1x128xf32, #tpu.memory_space<vmem>>, vector<1x128xf32>
    %29 = vector.broadcast %28 : vector<1x128xf32> to vector<128x128xf32>
    %30 = arith.addf %27, %29 : vector<128x128xf32>
    %c0_14 = arith.constant 0 : index
    %c0_15 = arith.constant 0 : index
    %31 = vector.load %arg6[%c0_14, %c0_15] : memref<32x128xbf16, #tpu.memory_space<vmem>>, vector<32x128xbf16>
    %cst_16 = arith.constant dense<0.000000e+00> : vector<128x128xf32>
    %32 = tpu.matmul %25, %31, %cst_16 {dimension_numbers = #tpu.dot_dimension_numbers<[1], [0], [0], [1], [0, 0, 1, 1], [], []>} : vector<128x32xbf16>, vector<32x128xbf16>, vector<128x128xf32> -> vector<128x128xf32>
    %c0_17 = arith.constant 0 : index
    %c0_18 = arith.constant 0 : index
    %33 = vector.load %arg8[%c0_17, %c0_18] : memref<1x128xf32, #tpu.memory_space<vmem>>, vector<1x128xf32>
    %34 = vector.broadcast %33 : vector<1x128xf32> to vector<128x128xf32>
    %35 = arith.addf %32, %34 : vector<128x128xf32>
    %36 = arith.mulf %35, %35 : vector<128x128xf32>
    %37 = arith.mulf %35, %36 : vector<128x128xf32>
    %cst_19 = arith.constant 4.471500e-02 : f32
    %38 = vector.broadcast %cst_19 : f32 to vector<128x128xf32>
    %39 = arith.mulf %38, %37 : vector<128x128xf32>
    %40 = arith.addf %35, %39 : vector<128x128xf32>
    %cst_20 = arith.constant 0.797884583 : f32
    %41 = vector.broadcast %cst_20 : f32 to vector<128x128xf32>
    %42 = arith.mulf %41, %40 : vector<128x128xf32>
    %43 = math.tanh %42 : vector<128x128xf32>
    %cst_21 = arith.constant 1.000000e+00 : f32
    %44 = vector.broadcast %cst_21 : f32 to vector<128x128xf32>
    %45 = arith.addf %44, %43 : vector<128x128xf32>
    %cst_22 = arith.constant 5.000000e-01 : f32
    %46 = vector.broadcast %cst_22 : f32 to vector<128x128xf32>
    %47 = arith.mulf %46, %45 : vector<128x128xf32>
    %48 = arith.mulf %35, %47 : vector<128x128xf32>
    %49 = arith.mulf %30, %48 : vector<128x128xf32>
    %50 = arith.truncf %49 : vector<128x128xf32> to vector<128x128xbf16>
    %c0_23 = arith.constant 0 : index
    %c0_24 = arith.constant 0 : index
    %51 = vector.load %arg9[%c0_23, %c0_24] : memref<128x128xbf16, #tpu.memory_space<vmem>>, vector<128x128xbf16>
    tpu.vector_store %arg9[%c0_23, %c0_24], %50 {strides = array<i32>} : memref<128x128xbf16, #tpu.memory_space<vmem>>, vector<128x128xbf16>,
    return
  }
  func.func @transform_0(%arg0: i32, %arg1: i32) -> (i32, i32) {
    %c0_i32 = arith.constant 0 : i32
    %c0_i32_0 = arith.constant 0 : i32
    return %arg0, %c0_i32 : i32, i32
  }
  func.func @transform_1(%arg0: i32, %arg1: i32) -> (i32, i32) {
    %c0_i32 = arith.constant 0 : i32
    %c0_i32_0 = arith.constant 0 : i32
    %c0_i32_1 = arith.constant 0 : i32
    return %c0_i32, %c0_i32_0 : i32, i32
  }
  func.func @transform_2(%arg0: i32, %arg1: i32) -> (i32, i32) {
    %c0_i32 = arith.constant 0 : i32
    %c0_i32_0 = arith.constant 0 : i32
    %c0_i32_1 = arith.constant 0 : i32
    return %c0_i32, %c0_i32_0 : i32, i32
  }
  func.func @transform_3(%arg0: i32, %arg1: i32) -> (i32, i32) {
    %c0_i32 = arith.constant 0 : i32
    %c0_i32_0 = arith.constant 0 : i32
    return %c0_i32, %arg1 : i32, i32
  }
  func.func @transform_4(%arg0: i32, %arg1: i32) -> (i32, i32) {
    %c1_i32 = arith.constant 1 : i32
    %0 = arith.addi %arg1, %c1_i32 : i32
    %c0_i32 = arith.constant 0 : i32
    %c0_i32_0 = arith.constant 0 : i32
    return %c0_i32, %0 : i32, i32
  }
  func.func @transform_5(%arg0: i32, %arg1: i32) -> (i32, i32) {
    %c0_i32 = arith.constant 0 : i32
    %c0_i32_0 = arith.constant 0 : i32
    return %c0_i32, %arg1 : i32, i32
  }
  func.func @transform_6(%arg0: i32, %arg1: i32) -> (i32, i32) {
    %c1_i32 = arith.constant 1 : i32
    %0 = arith.addi %arg1, %c1_i32 : i32
    %c0_i32 = arith.constant 0 : i32
    %c0_i32_0 = arith.constant 0 : i32
    return %c0_i32, %0 : i32, i32
  }
  func.func @transform_7(%arg0: i32, %arg1: i32) -> (i32, i32) {
    %c0_i32 = arith.constant 0 : i32
    return %arg0, %arg1 : i32, i32
  }
}

module attributes {stable_mosaic.version = 11 : i64} {
  func.func @_matmul_kernel(%arg0: i32, %arg1: i32, %arg2: i32, %arg3: memref<128x32xf32, #tpu.memory_space<vmem>>, %arg4: memref<32x32xbf16, #tpu.memory_space<vmem>>, %arg5: memref<1x32xf32, #tpu.memory_space<vmem>>, %arg6: memref<128x32xf32, #tpu.memory_space<vmem>>, %arg7: memref<128x32xf32, #tpu.memory_space<vmem>>) attributes {dimension_semantics = [#tpu.dimension_semantics<parallel>, #tpu.dimension_semantics<parallel>, #tpu.dimension_semantics<arbitrary>], iteration_bounds = array<i64: 1, 1, 1>, scalar_prefetch = 0 : i64, scratch_operands = 1 : i64, tpu.core_type = #tpu.core_type<tc>, window_params = [{transform_indices = @transform_0, window_bounds = array<i64: 128, 32>}, {transform_indices = @transform_1, window_bounds = array<i64: 32, 32>}, {transform_indices = @transform_2, window_bounds = array<i64: 1, 32>}, {transform_indices = @transform_3, window_bounds = array<i64: 128, 32>}]} {
    %c0_i32 = arith.constant 0 : i32
    %0 = arith.cmpi eq, %arg2, %c0_i32 : i32
    %1 = arith.extui %0 : i1 to i32
    %c0_i32_0 = arith.constant 0 : i32
    %2 = arith.cmpi ne, %1, %c0_i32_0 : i32
    scf.if %2 {
      %cst_10 = arith.constant 0.000000e+00 : f32
      %13 = vector.broadcast %cst_10 : f32 to vector<128x32xf32>
      %c0_11 = arith.constant 0 : index
      %c0_12 = arith.constant 0 : index
      %14 = vector.load %arg7[%c0_11, %c0_12] : memref<128x32xf32, #tpu.memory_space<vmem>>, vector<128x32xf32>
      tpu.vector_store %arg7[%c0_11, %c0_12], %13 {strides = array<i32>} : memref<128x32xf32, #tpu.memory_space<vmem>>, vector<128x32xf32>,
    } else {
    }
    %c0 = arith.constant 0 : index
    %c0_1 = arith.constant 0 : index
    %3 = vector.load %arg7[%c0, %c0_1] : memref<128x32xf32, #tpu.memory_space<vmem>>, vector<128x32xf32>
    %c0_2 = arith.constant 0 : index
    %c0_3 = arith.constant 0 : index
    %4 = vector.load %arg3[%c0_2, %c0_3] : memref<128x32xf32, #tpu.memory_space<vmem>>, vector<128x32xf32>
    %5 = arith.truncf %4 : vector<128x32xf32> to vector<128x32xbf16>
    %c0_4 = arith.constant 0 : index
    %c0_5 = arith.constant 0 : index
    %6 = vector.load %arg4[%c0_4, %c0_5] : memref<32x32xbf16, #tpu.memory_space<vmem>>, vector<32x32xbf16>
    %cst = arith.constant dense<0.000000e+00> : vector<128x32xf32>
    %7 = tpu.matmul %5, %6, %cst {dimension_numbers = #tpu.dot_dimension_numbers<[1], [0], [0], [1], [0, 0, 1, 1], [], []>} : vector<128x32xbf16>, vector<32x32xbf16>, vector<128x32xf32> -> vector<128x32xf32>
    %8 = arith.addf %3, %7 : vector<128x32xf32>
    %c0_6 = arith.constant 0 : index
    %c0_7 = arith.constant 0 : index
    %9 = vector.load %arg7[%c0_6, %c0_7] : memref<128x32xf32, #tpu.memory_space<vmem>>, vector<128x32xf32>
    tpu.vector_store %arg7[%c0_6, %c0_7], %8 {strides = array<i32>} : memref<128x32xf32, #tpu.memory_space<vmem>>, vector<128x32xf32>,
    %c0_i32_8 = arith.constant 0 : i32
    %10 = arith.cmpi eq, %arg2, %c0_i32_8 : i32
    %11 = arith.extui %10 : i1 to i32
    %c0_i32_9 = arith.constant 0 : i32
    %12 = arith.cmpi ne, %11, %c0_i32_9 : i32
    scf.if %12 {
      %c0_10 = arith.constant 0 : index
      %c0_11 = arith.constant 0 : index
      %13 = vector.load %arg7[%c0_10, %c0_11] : memref<128x32xf32, #tpu.memory_space<vmem>>, vector<128x32xf32>
      %c0_12 = arith.constant 0 : index
      %c0_13 = arith.constant 0 : index
      %14 = vector.load %arg5[%c0_12, %c0_13] : memref<1x32xf32, #tpu.memory_space<vmem>>, vector<1x32xf32>
      %15 = vector.broadcast %14 : vector<1x32xf32> to vector<128x32xf32>
      %16 = arith.addf %13, %15 : vector<128x32xf32>
      %c0_14 = arith.constant 0 : index
      %c0_15 = arith.constant 0 : index
      %17 = vector.load %arg6[%c0_14, %c0_15] : memref<128x32xf32, #tpu.memory_space<vmem>>, vector<128x32xf32>
      tpu.vector_store %arg6[%c0_14, %c0_15], %16 {strides = array<i32>} : memref<128x32xf32, #tpu.memory_space<vmem>>, vector<128x32xf32>,
    } else {
    }
    return
  }
  func.func @transform_0(%arg0: i32, %arg1: i32, %arg2: i32) -> (i32, i32) {
    %c0_i32 = arith.constant 0 : i32
    return %arg0, %arg2 : i32, i32
  }
  func.func @transform_1(%arg0: i32, %arg1: i32, %arg2: i32) -> (i32, i32) {
    %c0_i32 = arith.constant 0 : i32
    return %arg2, %arg1 : i32, i32
  }
  func.func @transform_2(%arg0: i32, %arg1: i32, %arg2: i32) -> (i32, i32) {
    %c0_i32 = arith.constant 0 : i32
    %c0_i32_0 = arith.constant 0 : i32
    return %c0_i32, %arg1 : i32, i32
  }
  func.func @transform_3(%arg0: i32, %arg1: i32, %arg2: i32) -> (i32, i32) {
    %c0_i32 = arith.constant 0 : i32
    return %arg0, %arg1 : i32, i32
  }
}

</mosaic_0001>

<llo_original>
// kernel: spatial_transformer.11
$region0: #{spatial_transformer.11}
  #allocation0 [shape = 'u32[]', space=smem, size = 0x4, offset = 0x4, fixed_abs, tag = 'smem constant byte address 0x4 - core index']
  #allocation1 [shape = 'u32[144,128]{1,0:T(1,128)}', space=vmem, size = 0x12000, scoped, tag = 'internal scratch']
  %s0 = inlined_call_operand.vmem [shape: f32[64,64], index: 0, kind: input, shape index: {}]
  %s1 = inlined_call_operand.vmem [shape: bf16[64,64], index: 1, kind: output, shape index: {}]
  %s2 = sld [smem:[#allocation0]]
  $region37: #{spatial_transformer.11} parent=0
    _
  %s4 = ssub.s32 1, %s2
  %s5 = scalar_select 0, %s4, %s2
  loop: start=0, step=1, limit=6
  $region2: #{spatial_transformer.11} parent=0 // loop_pre_header
    _
  $region3: #{spatial_transformer.11} parent=0 // loop_header
    %s7 = sphi 0, %s11
    %p8 = scmp.ge.s32.totalorder %s7, 6
    %s17 = sphi 0, %s19
    %s20 = sphi 0, %s17
    %s21 = sphi 0, %s20
    %s37 = sphi 0, %s21
    %s43 = sphi 0, %s45
    %s46 = sphi 0, %s43
    %s47 = sphi 0, %s46
    %s63 = sphi 0, %s47
  $region4: #{spatial_transformer.11} parent=0 // loop_header_branch
    %10 = sbr.rel (%p8) target = $region8
  $region5: #{spatial_transformer.11} parent=0 // loop_body
    %s12 = ssub.s32 %s7, 1
    %s13 = ssub.s32 %s7, 2
    %s14 = sadd.s32 %s7, 1
    %s15 = ssub.s32 %s7, %s14
    %p16 = scmp.eq.s32.totalorder %s15, 0
    %s18 = sadd.s32 %s17, 1
    %s19 = scalar_select %p16, %s17, %s18
    %p22 = pneg %p16
    %p23 = scmp.eq.s32.totalorder %s7, 3
    %p24 = por %p22, %p23
    %p25 = scmp.ne.s32.totalorder %s17, %s20
    %p26 = scmp.eq.s32.totalorder %s7, 0
    %p27 = por %p25, %p26
    %p28 = scmp.ne.s32.totalorder %s17, %s20
    %p29 = scmp.eq.s32.totalorder %s12, 3
    %p30 = por %p28, %p29
    %p31 = scmp.ne.s32.totalorder %s20, %s21
    %p32 = scmp.eq.s32.totalorder %s12, 0
    %p33 = por %p31, %p32
    %p34 = scmp.ne.s32.totalorder %s20, %s21
    %p35 = scmp.eq.s32.totalorder %s13, 3
    %p36 = por %p34, %p35
    %p38 = scmp.ne.s32.totalorder %s21, %s37
    %p39 = scmp.eq.s32.totalorder %s13, 0
    %p40 = por %p38, %p39
    %s41 = ssub.s32 %s7, %s14
    %p42 = scmp.eq.s32.totalorder %s41, 0
    %s44 = sadd.s32 %s43, 1
    %s45 = scalar_select %p42, %s43, %s44
    %p48 = pneg %p42
    %p49 = scmp.eq.s32.totalorder %s7, 3
    %p50 = por %p48, %p49
    %p51 = scmp.ne.s32.totalorder %s43, %s46
    %p52 = scmp.eq.s32.totalorder %s7, 0
    %p53 = por %p51, %p52
    %p54 = scmp.ne.s32.totalorder %s43, %s46
    %p55 = scmp.eq.s32.totalorder %s12, 3
    %p56 = por %p54, %p55
    %p57 = scmp.ne.s32.totalorder %s46, %s47
    %p58 = scmp.eq.s32.totalorder %s12, 0
    %p59 = por %p57, %p58
    %p60 = scmp.ne.s32.totalorder %s46, %s47
    %p61 = scmp.eq.s32.totalorder %s13, 3
    %p62 = por %p60, %p61
    %p64 = scmp.ne.s32.totalorder %s47, %s63
    %p65 = scmp.eq.s32.totalorder %s13, 0
    %p66 = por %p64, %p65
    %p67 = scmp.le.s32.totalorder 1, %s7
    %p68 = scmp.lt.s32.totalorder %s7, 5
    %p69 = pnand %p67, %p68
    %p70 = pneg %p69
    // Predicated region
    $region9: #{spatial_transformer.11} parent=5 // pred_check
      _
    $region10: #{spatial_transformer.11} parent=5 // pred_check_branch
      %72 = sbr.rel (%p69) target = $region12
    $region11: #{spatial_transformer.11} parent=5 // pred_region
      %s73 = ssub.s32 %s7, 1
    $region12: #{spatial_transformer.11} parent=5 // pred_fallthru
      _
    %p74 = scmp.lt.s32.totalorder %s7, 4
    // Predicated region
    $region13: #{spatial_transformer.11} parent=5 // pred_check
      %p75 = pneg %p74
    $region14: #{spatial_transformer.11} parent=5 // pred_check_branch
      %77 = sbr.rel (%p75) target = $region16
    $region15: #{spatial_transformer.11} parent=5 // pred_region
      // Predicated region
      $region17: #{spatial_transformer.11} parent=15 // pred_check
        %p78 = pneg %p27
      $region18: #{spatial_transformer.11} parent=15 // pred_check_branch
        %80 = sbr.rel (%p78) target = $region20
      $region19: #{spatial_transformer.11} parent=15 // pred_region
        %s81 = smul.u32 2, %s7
        %p82 = scmp.lt.s32.totalorder %s81, 7
        %s83 = scalar_select %p82, %s81, 7
        %s84 = smul.addr %s83, 8
        %s85 = scalar_lea.vmem %s0, %s84
        %s86 = smul.u32 2, %s7
      $region20: #{spatial_transformer.11} parent=15 // pred_fallthru
        _
    $region16: #{spatial_transformer.11} parent=5 // pred_fallthru
      _
    %p87 = scmp.le.s32.totalorder 1, %s7
    %p88 = scmp.lt.s32.totalorder %s7, 5
    %p89 = pnand %p87, %p88
    %p90 = pneg %p89
    // Predicated region
    $region21: #{spatial_transformer.11} parent=5 // pred_check
      _
    $region22: #{spatial_transformer.11} parent=5 // pred_check_branch
      %92 = sbr.rel (%p89) target = $region24
    $region23: #{spatial_transformer.11} parent=5 // pred_region
      %s93 = ssub.s32 %s7, 1
      %s94 = smul.u32 2, %s12
      %p95 = scmp.lt.s32.totalorder %s94, 7
      %s96 = scalar_select %p95, %s94, 7
      %s97 = smul.addr %s96, 8
      %s98 = scalar_lea.vmem %s0, %s97
      %p99 = pneg %p33
      %p100 = pneg %p30
      %p101 = pneg %p59
      %p102 = pneg %p56
      %s103 = smul.u32 2, %s12
      %p104 = scmp.lt.s32.totalorder %s103, 7
      %s105 = scalar_select %p104, %s103, 7
      %s106 = smul.addr %s105, 4
      %s107 = scalar_lea.vmem %s1, %s106
      %s108 = smul.u32 2, %s12
      %p109 = scmp.lt.s32.totalorder %s108, 7
      %s110 = scalar_select %p109, %s108, 7
      %s111 = smul.addr %s110, 8
      %s112 = scalar_lea.vmem %s0, %s111
      %s113 = smul.u32 2, %s12
      %s114 = smul.u32 2, %s12
      %p115 = scmp.lt.s32.totalorder %s114, 7
      %s116 = scalar_select %p115, %s114, 7
      %s117 = smul.addr %s116, 4
      %s118 = scalar_lea.vmem %s1, %s117
      %s119 = smul.u32 2, %s12
      %v120 = vld [vmem:[%s112] sm:$0xff]
      %v121 = vld [vmem:[%s112 + $0x8] sm:$0xff]
      %vm122 = vcmask 523264
      %v123 = vsel %vm122, %v120, 0.0
      %124 = vadd.xlane.f32.xlu0 %v123
      %v125 = vpop.xlane.xlu0 %124
      %v126 = vsel %vm122, %v121, 0.0
      %127 = vadd.xlane.f32.xlu0 %v126
      %v128 = vpop.xlane.xlu0 %127
      %v129 = vrcp.pop 64.0
      %v130 = vmul.f32 %v125, %v129
      %v131 = vmul.f32 %v128, %v129
      %v132 = vsub.f32 %v120, %v130
      %v133 = vsub.f32 %v121, %v131
      %v134 = vmul.f32 %v132, %v132
      %v135 = vmul.f32 %v133, %v133
      %v136 = vsel %vm122, %v134, 0.0
      %137 = vadd.xlane.f32.xlu0 %v136
      %v138 = vpop.xlane.xlu0 %137
      %v139 = vsel %vm122, %v135, 0.0
      %140 = vadd.xlane.f32.xlu0 %v139
      %v141 = vpop.xlane.xlu0 %140
      %v142 = vmul.f32 %v138, %v129
      %v143 = vmul.f32 %v141, %v129
      %v144 = vadd.f32 %v142, 1e-05
      %v145 = vadd.f32 %v143, 1e-05
      %v146 = vrsqrt.pop %v144
      %v147 = vrsqrt.pop %v145
      %v148 = vmul.f32 %v132, %v146
      %v149 = vmul.f32 %v133, %v147
      %v150 = vpack.c.bf16 %v149, %v148
      %v152 = vunpack.c.l.b16 %v150
      %v153 = vunpack.c.h.b16 %v150
      %v154 = vpack.c.b16 %v152, %v152
      %v155 = vpack.c.b16 %v153, %v153
      %vm158 = vcmask 519168
      %159 = vst.msk [vmem:[%s118] sm:$0xf] %vm158, %v154
      %160 = vst.msk [vmem:[%s118 + $0x4] sm:$0xf] %vm158, %v155
      %s161 = smul.u32 2, %s12
      %p162 = scmp.lt.s32.totalorder %s161, 7
      %s163 = scalar_select %p162, %s161, 7
      %s164 = smul.addr %s163, 4
      %s165 = scalar_lea.vmem %s1, %s164
      // Predicated region
      $region25: #{spatial_transformer.11} parent=23 // pred_check
        %p166 = pneg %p56
      $region26: #{spatial_transformer.11} parent=23 // pred_check_branch
        %168 = sbr.rel (%p166) target = $region28
      $region27: #{spatial_transformer.11} parent=23 // pred_region
        %s169 = smul.u32 2, %s12
      $region28: #{spatial_transformer.11} parent=23 // pred_fallthru
        _
    $region24: #{spatial_transformer.11} parent=5 // pred_fallthru
      _
    %p170 = scmp.le.s32.totalorder 2, %s7
    // Predicated region
    $region29: #{spatial_transformer.11} parent=5 // pred_check
      %p171 = pneg %p170
    $region30: #{spatial_transformer.11} parent=5 // pred_check_branch
      %173 = sbr.rel (%p171) target = $region32
    $region31: #{spatial_transformer.11} parent=5 // pred_region
      %s174 = ssub.s32 %s7, 2
      // Predicated region
      $region33: #{spatial_transformer.11} parent=31 // pred_check
        %p175 = pneg %p62
      $region34: #{spatial_transformer.11} parent=31 // pred_check_branch
        %177 = sbr.rel (%p175) target = $region36
      $region35: #{spatial_transformer.11} parent=31 // pred_region
        %s178 = smul.u32 2, %s13
        %p179 = scmp.lt.s32.totalorder %s178, 7
        %s180 = scalar_select %p179, %s178, 7
        %s181 = smul.addr %s180, 4
        %s182 = scalar_lea.vmem %s1, %s181
      $region36: #{spatial_transformer.11} parent=31 // pred_fallthru
        _
    $region32: #{spatial_transformer.11} parent=5 // pred_fallthru
      _
  $region6: #{spatial_transformer.11} parent=0 // loop_footer
    %s11 = sadd.s32 1, %s7
  $region7: #{spatial_transformer.11} parent=0 // loop_footer_branch
    %6 = sbr.rel target = $region3
  $region8: #{spatial_transformer.11} parent=0 // loop_exit
    _

// kernel: spatial_transformer.13
$region0: #{spatial_transformer.13}
  #allocation0 [shape = 'u32[]', space=smem, size = 0x4, offset = 0x4, fixed_abs, tag = 'smem constant byte address 0x4 - core index']
  #allocation1 [shape = 'u32[144,128]{1,0:T(1,128)}', space=vmem, size = 0x12000, scoped, tag = 'internal scratch']
  %s0 = inlined_call_operand.vmem [shape: f32[128,32], index: 0, kind: input, shape index: {}]
  %s1 = inlined_call_operand.vmem [shape: f32[1,32], index: 1, kind: input, shape index: {}]
  %s2 = inlined_call_operand.vmem [shape: f32[1,32], index: 2, kind: input, shape index: {}]
  %s3 = inlined_call_operand.vmem [shape: bf16[32,96], index: 3, kind: input, shape index: {}]
  %s4 = inlined_call_operand.vmem [shape: bf16[128,96], index: 4, kind: output, shape index: {}]
  %s5 = sld [smem:[#allocation0]]
  $region26: #{spatial_transformer.13} parent=0
    _
  %s7 = ssub.s32 1, %s5
  %s8 = scalar_select 0, %s7, %s5
  // Predicated region
  $region2: #{spatial_transformer.13} parent=0 // pred_check
    _
  $region3: #{spatial_transformer.13} parent=0 // pred_check_branch
    %10 = sbr.rel (0) target = $region5
  $region4: #{spatial_transformer.13} parent=0 // pred_region
    _
  $region5: #{spatial_transformer.13} parent=0 // pred_fallthru
    _
  // Predicated region
  $region6: #{spatial_transformer.13} parent=0 // pred_check
    _
  $region7: #{spatial_transformer.13} parent=0 // pred_check_branch
    %12 = sbr.rel (0) target = $region9
  $region8: #{spatial_transformer.13} parent=0 // pred_region
    _
  $region9: #{spatial_transformer.13} parent=0 // pred_fallthru
    _
  // Predicated region
  $region10: #{spatial_transformer.13} parent=0 // pred_check
    _
  $region11: #{spatial_transformer.13} parent=0 // pred_check_branch
    %14 = sbr.rel (0) target = $region13
  $region12: #{spatial_transformer.13} parent=0 // pred_region
    _
  $region13: #{spatial_transformer.13} parent=0 // pred_fallthru
    _
  // Predicated region
  $region14: #{spatial_transformer.13} parent=0 // pred_check
    _
  $region15: #{spatial_transformer.13} parent=0 // pred_check_branch
    %16 = sbr.rel (0) target = $region17
  $region16: #{spatial_transformer.13} parent=0 // pred_region
    _
  $region17: #{spatial_transformer.13} parent=0 // pred_fallthru
    _
  %v18 = vld [vmem:[%s0] sm:$0xff]
  %v19 = vld [vmem:[%s0 + $0x8] sm:$0xff]
  %v20 = vld [vmem:[%s0 + $0x10] sm:$0xff]
  %v21 = vld [vmem:[%s0 + $0x18] sm:$0xff]
  %v22 = vld [vmem:[%s0 + $0x20] sm:$0xff]
  %v23 = vld [vmem:[%s0 + $0x28] sm:$0xff]
  %v24 = vld [vmem:[%s0 + $0x30] sm:$0xff]
  %v25 = vld [vmem:[%s0 + $0x38] sm:$0xff]
  %v26 = vld [vmem:[%s0 + $0x40] sm:$0xff]
  %v27 = vld [vmem:[%s0 + $0x48] sm:$0xff]
  %v28 = vld [vmem:[%s0 + $0x50] sm:$0xff]
  %v29 = vld [vmem:[%s0 + $0x58] sm:$0xff]
  %v30 = vld [vmem:[%s0 + $0x60] sm:$0xff]
  %v31 = vld [vmem:[%s0 + $0x68] sm:$0xff]
  %v32 = vld [vmem:[%s0 + $0x70] sm:$0xff]
  %v33 = vld [vmem:[%s0 + $0x78] sm:$0xff]
  %vm34 = vcmask 261120
  %v35 = vsel %vm34, %v18, 0.0
  %36 = vadd.xlane.f32.xlu0 %v35
  %v37 = vpop.xlane.xlu0 %36
  %v38 = vsel %vm34, %v19, 0.0
  %39 = vadd.xlane.f32.xlu0 %v38
  %v40 = vpop.xlane.xlu0 %39
  %v41 = vsel %vm34, %v20, 0.0
  %42 = vadd.xlane.f32.xlu0 %v41
  %v43 = vpop.xlane.xlu0 %42
  %v44 = vsel %vm34, %v21, 0.0
  %45 = vadd.xlane.f32.xlu0 %v44
  %v46 = vpop.xlane.xlu0 %45
  %v47 = vsel %vm34, %v22, 0.0
  %48 = vadd.xlane.f32.xlu0 %v47
  %v49 = vpop.xlane.xlu0 %48
  %v50 = vsel %vm34, %v23, 0.0
  %51 = vadd.xlane.f32.xlu0 %v50
  %v52 = vpop.xlane.xlu0 %51
  %v53 = vsel %vm34, %v24, 0.0
  %54 = vadd.xlane.f32.xlu0 %v53
  %v55 = vpop.xlane.xlu0 %54
  %v56 = vsel %vm34, %v25, 0.0
  %57 = vadd.xlane.f32.xlu0 %v56
  %v58 = vpop.xlane.xlu0 %57
  %v59 = vsel %vm34, %v26, 0.0
  %60 = vadd.xlane.f32.xlu0 %v59
  %v61 = vpop.xlane.xlu0 %60
  %v62 = vsel %vm34, %v27, 0.0
  %63 = vadd.xlane.f32.xlu0 %v62
  %v64 = vpop.xlane.xlu0 %63
  %v65 = vsel %vm34, %v28, 0.0
  %66 = vadd.xlane.f32.xlu0 %v65
  %v67 = vpop.xlane.xlu0 %66
  %v68 = vsel %vm34, %v29, 0.0
  %69 = vadd.xlane.f32.xlu0 %v68
  %v70 = vpop.xlane.xlu0 %69
  %v71 = vsel %vm34, %v30, 0.0
  %72 = vadd.xlane.f32.xlu0 %v71
  %v73 = vpop.xlane.xlu0 %72
  %v74 = vsel %vm34, %v31, 0.0
  %75 = vadd.xlane.f32.xlu0 %v74
  %v76 = vpop.xlane.xlu0 %75
  %v77 = vsel %vm34, %v32, 0.0
  %78 = vadd.xlane.f32.xlu0 %v77
  %v79 = vpop.xlane.xlu0 %78
  %v80 = vsel %vm34, %v33, 0.0
  %81 = vadd.xlane.f32.xlu0 %v80
  %v82 = vpop.xlane.xlu0 %81
  %v83 = vrcp.pop 32.0
  %v84 = vmul.f32 %v37, %v83
  %v85 = vmul.f32 %v40, %v83
  %v86 = vmul.f32 %v43, %v83
  %v87 = vmul.f32 %v46, %v83
  %v88 = vmul.f32 %v49, %v83
  %v89 = vmul.f32 %v52, %v83
  %v90 = vmul.f32 %v55, %v83
  %v91 = vmul.f32 %v58, %v83
  %v92 = vmul.f32 %v61, %v83
  %v93 = vmul.f32 %v64, %v83
  %v94 = vmul.f32 %v67, %v83
  %v95 = vmul.f32 %v70, %v83
  %v96 = vmul.f32 %v73, %v83
  %v97 = vmul.f32 %v76, %v83
  %v98 = vmul.f32 %v79, %v83
  %v99 = vmul.f32 %v82, %v83
  %v100 = vsub.f32 %v18, %v84
  %v101 = vsub.f32 %v19, %v85
  %v102 = vsub.f32 %v20, %v86
  %v103 = vsub.f32 %v21, %v87
  %v104 = vsub.f32 %v22, %v88
  %v105 = vsub.f32 %v23, %v89
  %v106 = vsub.f32 %v24, %v90
  %v107 = vsub.f32 %v25, %v91
  %v108 = vsub.f32 %v26, %v92
  %v109 = vsub.f32 %v27, %v93
  %v110 = vsub.f32 %v28, %v94
  %v111 = vsub.f32 %v29, %v95
  %v112 = vsub.f32 %v30, %v96
  %v113 = vsub.f32 %v31, %v97
  %v114 = vsub.f32 %v32, %v98
  %v115 = vsub.f32 %v33, %v99
  %v116 = vmul.f32 %v100, %v100
  %v117 = vmul.f32 %v101, %v101
  %v118 = vmul.f32 %v102, %v102
  %v119 = vmul.f32 %v103, %v103
  %v120 = vmul.f32 %v104, %v104
  %v121 = vmul.f32 %v105, %v105
  %v122 = vmul.f32 %v106, %v106
  %v123 = vmul.f32 %v107, %v107
  %v124 = vmul.f32 %v108, %v108
  %v125 = vmul.f32 %v109, %v109
  %v126 = vmul.f32 %v110, %v110
  %v127 = vmul.f32 %v111, %v111
  %v128 = vmul.f32 %v112, %v112
  %v129 = vmul.f32 %v113, %v113
  %v130 = vmul.f32 %v114, %v114
  %v131 = vmul.f32 %v115, %v115
  %v132 = vsel %vm34, %v116, 0.0
  %133 = vadd.xlane.f32.xlu0 %v132
  %v134 = vpop.xlane.xlu0 %133
  %v135 = vsel %vm34, %v117, 0.0
  %136 = vadd.xlane.f32.xlu0 %v135
  %v137 = vpop.xlane.xlu0 %136
  %v138 = vsel %vm34, %v118, 0.0
  %139 = vadd.xlane.f32.xlu0 %v138
  %v140 = vpop.xlane.xlu0 %139
  %v141 = vsel %vm34, %v119, 0.0
  %142 = vadd.xlane.f32.xlu0 %v141
  %v143 = vpop.xlane.xlu0 %142
  %v144 = vsel %vm34, %v120, 0.0
  %145 = vadd.xlane.f32.xlu0 %v144
  %v146 = vpop.xlane.xlu0 %145
  %v147 = vsel %vm34, %v121, 0.0
  %148 = vadd.xlane.f32.xlu0 %v147
  %v149 = vpop.xlane.xlu0 %148
  %v150 = vsel %vm34, %v122, 0.0
  %151 = vadd.xlane.f32.xlu0 %v150
  %v152 = vpop.xlane.xlu0 %151
  %v153 = vsel %vm34, %v123, 0.0
  %154 = vadd.xlane.f32.xlu0 %v153
  %v155 = vpop.xlane.xlu0 %154
  %v156 = vsel %vm34, %v124, 0.0
  %157 = vadd.xlane.f32.xlu0 %v156
  %v158 = vpop.xlane.xlu0 %157
  %v159 = vsel %vm34, %v125, 0.0
  %160 = vadd.xlane.f32.xlu0 %v159
  %v161 = vpop.xlane.xlu0 %160
  %v162 = vsel %vm34, %v126, 0.0
  %163 = vadd.xlane.f32.xlu0 %v162
  %v164 = vpop.xlane.xlu0 %163
  %v165 = vsel %vm34, %v127, 0.0
  %166 = vadd.xlane.f32.xlu0 %v165
  %v167 = vpop.xlane.xlu0 %166
  %v168 = vsel %vm34, %v128, 0.0
  %169 = vadd.xlane.f32.xlu0 %v168
  %v170 = vpop.xlane.xlu0 %169
  %v171 = vsel %vm34, %v129, 0.0
  %172 = vadd.xlane.f32.xlu0 %v171
  %v173 = vpop.xlane.xlu0 %172
  %v174 = vsel %vm34, %v130, 0.0
  %175 = vadd.xlane.f32.xlu0 %v174
  %v176 = vpop.xlane.xlu0 %175
  %v177 = vsel %vm34, %v131, 0.0
  %178 = vadd.xlane.f32.xlu0 %v177
  %v179 = vpop.xlane.xlu0 %178
  %v180 = vmul.f32 %v134, %v83
  %v181 = vmul.f32 %v137, %v83
  %v182 = vmul.f32 %v140, %v83
  %v183 = vmul.f32 %v143, %v83
  %v184 = vmul.f32 %v146, %v83
  %v185 = vmul.f32 %v149, %v83
  %v186 = vmul.f32 %v152, %v83
  %v187 = vmul.f32 %v155, %v83
  %v188 = vmul.f32 %v158, %v83
  %v189 = vmul.f32 %v161, %v83
  %v190 = vmul.f32 %v164, %v83
  %v191 = vmul.f32 %v167, %v83
  %v192 = vmul.f32 %v170, %v83
  %v193 = vmul.f32 %v173, %v83
  %v194 = vmul.f32 %v176, %v83
  %v195 = vmul.f32 %v179, %v83
  %v196 = vadd.f32 %v180, 1e-05
  %v197 = vadd.f32 %v181, 1e-05
  %v198 = vadd.f32 %v182, 1e-05
  %v199 = vadd.f32 %v183, 1e-05
  %v200 = vadd.f32 %v184, 1e-05
  %v201 = vadd.f32 %v185, 1e-05
  %v202 = vadd.f32 %v186, 1e-05
  %v203 = vadd.f32 %v187, 1e-05
  %v204 = vadd.f32 %v188, 1e-05
  %v205 = vadd.f32 %v189, 1e-05
  %v206 = vadd.f32 %v190, 1e-05
  %v207 = vadd.f32 %v191, 1e-05
  %v208 = vadd.f32 %v192, 1e-05
  %v209 = vadd.f32 %v193, 1e-05
  %v210 = vadd.f32 %v194, 1e-05
  %v211 = vadd.f32 %v195, 1e-05
  %v212 = vrsqrt.pop %v196
  %v213 = vrsqrt.pop %v197
  %v214 = vrsqrt.pop %v198
  %v215 = vrsqrt.pop %v199
  %v216 = vrsqrt.pop %v200
  %v217 = vrsqrt.pop %v201
  %v218 = vrsqrt.pop %v202
  %v219 = vrsqrt.pop %v203
  %v220 = vrsqrt.pop %v204
  %v221 = vrsqrt.pop %v205
  %v222 = vrsqrt.pop %v206
  %v223 = vrsqrt.pop %v207
  %v224 = vrsqrt.pop %v208
  %v225 = vrsqrt.pop %v209
  %v226 = vrsqrt.pop %v210
  %v227 = vrsqrt.pop %v211
  %v228 = vmul.f32 %v100, %v212
  %v229 = vmul.f32 %v101, %v213
  %v230 = vmul.f32 %v102, %v214
  %v231 = vmul.f32 %v103, %v215
  %v232 = vmul.f32 %v104, %v216
  %v233 = vmul.f32 %v105, %v217
  %v234 = vmul.f32 %v106, %v218
  %v235 = vmul.f32 %v107, %v219
  %v236 = vmul.f32 %v108, %v220
  %v237 = vmul.f32 %v109, %v221
  %v238 = vmul.f32 %v110, %v222
  %v239 = vmul.f32 %v111, %v223
  %v240 = vmul.f32 %v112, %v224
  %v241 = vmul.f32 %v113, %v225
  %v242 = vmul.f32 %v114, %v226
  %v243 = vmul.f32 %v115, %v227
  %v244 = vld [vmem:[%s1] sm:$0x1]
  %v246 = vlaneseq
  %v247 = vshrl.u32 %v246, 7
  %v248 = vsub.s32 0, %v247
  %v249 = vrot.slane %v244, %v248
  %v251 = vmul.f32 %v228, %v249
  %v252 = vmul.f32 %v229, %v249
  %v253 = vmul.f32 %v230, %v249
  %v254 = vmul.f32 %v231, %v249
  %v255 = vmul.f32 %v232, %v249
  %v256 = vmul.f32 %v233, %v249
  %v257 = vmul.f32 %v234, %v249
  %v258 = vmul.f32 %v235, %v249
  %v259 = vmul.f32 %v236, %v249
  %v260 = vmul.f32 %v237, %v249
  %v261 = vmul.f32 %v238, %v249
  %v262 = vmul.f32 %v239, %v249
  %v263 = vmul.f32 %v240, %v249
  %v264 = vmul.f32 %v241, %v249
  %v265 = vmul.f32 %v242, %v249
  %v266 = vmul.f32 %v243, %v249
  %v267 = vld [vmem:[%s2] sm:$0x1]
  %v269 = vlaneseq
  %v270 = vshrl.u32 %v269, 7
  %v271 = vsub.s32 0, %v270
  %v272 = vrot.slane %v267, %v271
  %v274 = vadd.f32 %v251, %v272
  %v275 = vadd.f32 %v252, %v272
  %v276 = vadd.f32 %v253, %v272
  %v277 = vadd.f32 %v254, %v272
  %v278 = vadd.f32 %v255, %v272
  %v279 = vadd.f32 %v256, %v272
  %v280 = vadd.f32 %v257, %v272
  %v281 = vadd.f32 %v258, %v272
  %v282 = vadd.f32 %v259, %v272
  %v283 = vadd.f32 %v260, %v272
  %v284 = vadd.f32 %v261, %v272
  %v285 = vadd.f32 %v262, %v272
  %v286 = vadd.f32 %v263, %v272
  %v287 = vadd.f32 %v264, %v272
  %v288 = vadd.f32 %v265, %v272
  %v289 = vadd.f32 %v266, %v272
  %v290 = vpack.c.bf16 %v275, %v274
  %v291 = vpack.c.bf16 %v277, %v276
  %v292 = vpack.c.bf16 %v279, %v278
  %v293 = vpack.c.bf16 %v281, %v280
  %v294 = vpack.c.bf16 %v283, %v282
  %v295 = vpack.c.bf16 %v285, %v284
  %v296 = vpack.c.bf16 %v287, %v286
  %v297 = vpack.c.bf16 %v289, %v288
  %v298 = vld [vmem:[%s3] sm:$0xf]
  %v299 = vld [vmem:[%s3 + $0x4] sm:$0xf]
  %v300 = vld [vmem:[%s3 + $0x8] sm:$0xf]
  %v301 = vld [vmem:[%s3 + $0xc] sm:$0xf]
  %v306 = vunpack.c.l.b16 %v298
  %v307 = vunpack.c.l.b16 %v299
  %v308 = vunpack.c.l.b16 %v300
  %v309 = vunpack.c.l.b16 %v301
  %v310 = vpack.c.b16 %v307, %v306
  %v311 = vpack.c.b16 %v309, %v308
  %v315 = vsel %vm34, %v290, 0
  %v318 = vsel %vm34, %v291, 0
  %v321 = vsel %vm34, %v292, 0
  %v324 = vsel %vm34, %v293, 0
  %v327 = vsel %vm34, %v294, 0
  %v330 = vsel %vm34, %v295, 0
  %v333 = vsel %vm34, %v296, 0
  %v336 = vsel %vm34, %v297, 0
  %338 = vmatprep.subr.bf16.mxu0 0
  %339 = vmatpush1.bf16.msra.mxu0 0
  %340 = vmatprep.subr.bf16.mxu0 0
  %341 = vmatpush1.bf16.msra.mxu0 0
  %342 = vmatprep.subr.bf16.mxu0 0
  %343 = vmatpush1.bf16.msra.mxu0 0
  %344 = vmatprep.subr.bf16.mxu0 0
  %345 = vmatpush1.bf16.msra.mxu0 0
  %346 = vmatprep.subr.bf16.mxu0 0
  %347 = vmatpush1.bf16.msra.mxu0 0
  %348 = vmatprep.subr.bf16.mxu0 0
  %349 = vmatpush1.bf16.msra.mxu0 0
  %350 = vmatprep.subr.bf16.mxu0 0
  %351 = vmatpush1.bf16.msra.mxu0 %v311
  %352 = vmatprep.subr.bf16.mxu0 0
  %353 = vmatpush1.bf16.msra.mxu0 %v310
  %354 = vmatprep.subr.bf16.mxu0 0
  %355 = vmatpush2.bf16.msra.mxu0 0
  %356 = vmatprep.subr.bf16.mxu0 0
  %357 = vmatpush2.bf16.msra.mxu0 0
  %358 = vmatprep.subr.bf16.mxu0 0
  %359 = vmatpush2.bf16.msra.mxu0 0
  %360 = vmatprep.subr.bf16.mxu0 0
  %361 = vmatpush2.bf16.msra.mxu0 0
  %362 = vmatprep.subr.bf16.mxu0 0
  %363 = vmatpush2.bf16.msra.mxu0 0
  %364 = vmatprep.subr.bf16.mxu0 0
  %365 = vmatpush2.bf16.msra.mxu0 0
  %366 = vmatprep.subr.bf16.mxu0 0
  %367 = vmatpush2.bf16.msra.mxu0 0
  %368 = vmatprep.subr.bf16.mxu0 0
  %369 = vmatpush2.bf16.msra.mxu0 0
  %370 = vmatprep.mubr.bf16.mxu0 0
  %371 = vmatmul.mubr.bf16.gmra.mxu0 %v315
  %v372 = vpop.f32.mrf.mxu0
  %v373 = vadd.f32 0.0, %v372
  %v374 = vpop.f32.mrf.mxu0
  %v375 = vpop.f32.mrf.mxu0
  %v376 = vadd.f32 0.0, %v375
  %v377 = vpop.f32.mrf.mxu0
  %378 = vmatprep.mubr.bf16.mxu0 0
  %379 = vmatmul.mubr.bf16.gmra.mxu0 %v318
  %v380 = vpop.f32.mrf.mxu0
  %v381 = vadd.f32 0.0, %v380
  %v382 = vpop.f32.mrf.mxu0
  %v383 = vpop.f32.mrf.mxu0
  %v384 = vadd.f32 0.0, %v383
  %v385 = vpop.f32.mrf.mxu0
  %386 = vmatprep.mubr.bf16.mxu0 0
  %387 = vmatmul.mubr.bf16.gmra.mxu0 %v321
  %v388 = vpop.f32.mrf.mxu0
  %v389 = vadd.f32 0.0, %v388
  %v390 = vpop.f32.mrf.mxu0
  %v391 = vpop.f32.mrf.mxu0
  %v392 = vadd.f32 0.0, %v391
  %v393 = vpop.f32.mrf.mxu0
  %394 = vmatprep.mubr.bf16.mxu0 0
  %395 = vmatmul.mubr.bf16.gmra.mxu0 %v324
  %v396 = vpop.f32.mrf.mxu0
  %v397 = vadd.f32 0.0, %v396
  %v398 = vpop.f32.mrf.mxu0
  %v399 = vpop.f32.mrf.mxu0
  %v400 = vadd.f32 0.0, %v399
  %v401 = vpop.f32.mrf.mxu0
  %402 = vmatprep.mubr.bf16.mxu0 0
  %403 = vmatmul.mubr.bf16.gmra.mxu0 %v327
  %v404 = vpop.f32.mrf.mxu0
  %v405 = vadd.f32 0.0, %v404
  %v406 = vpop.f32.mrf.mxu0
  %v407 = vpop.f32.mrf.mxu0
  %v408 = vadd.f32 0.0, %v407
  %v409 = vpop.f32.mrf.mxu0
  %410 = vmatprep.mubr.bf16.mxu0 0
  %411 = vmatmul.mubr.bf16.gmra.mxu0 %v330
  %v412 = vpop.f32.mrf.mxu0
  %v413 = vadd.f32 0.0, %v412
  %v414 = vpop.f32.mrf.mxu0
  %v415 = vpop.f32.mrf.mxu0
  %v416 = vadd.f32 0.0, %v415
  %v417 = vpop.f32.mrf.mxu0
  %418 = vmatprep.mubr.bf16.mxu0 0
  %419 = vmatmul.mubr.bf16.gmra.mxu0 %v333
  %v420 = vpop.f32.mrf.mxu0
  %v421 = vadd.f32 0.0, %v420
  %v422 = vpop.f32.mrf.mxu0
  %v423 = vpop.f32.mrf.mxu0
  %v424 = vadd.f32 0.0, %v423
  %v425 = vpop.f32.mrf.mxu0
  %426 = vmatprep.mubr.bf16.mxu0 0
  %427 = vmatmul.mubr.bf16.gmra.mxu0 %v336
  %v428 = vpop.f32.mrf.mxu0
  %v429 = vadd.f32 0.0, %v428
  %v430 = vpop.f32.mrf.mxu0
  %v431 = vpop.f32.mrf.mxu0
  %v432 = vadd.f32 0.0, %v431
  %v433 = vpop.f32.mrf.mxu0
  %434 = vdwg.mxu0
  %v435 = vpack.c.bf16 %v376, %v373
  %v436 = vpack.c.bf16 %v384, %v381
  %v437 = vpack.c.bf16 %v392, %v389
  %v438 = vpack.c.bf16 %v400, %v397
  %v439 = vpack.c.bf16 %v408, %v405
  %v440 = vpack.c.bf16 %v416, %v413
  %v441 = vpack.c.bf16 %v424, %v421
  %v442 = vpack.c.bf16 %v432, %v429
  %v451 = vunpack.c.l.b16 %v435
  %v452 = vunpack.c.h.b16 %v435
  %v453 = vunpack.c.l.b16 %v436
  %v454 = vunpack.c.h.b16 %v436
  %v455 = vunpack.c.l.b16 %v437
  %v456 = vunpack.c.h.b16 %v437
  %v457 = vunpack.c.l.b16 %v438
  %v458 = vunpack.c.h.b16 %v438
  %v459 = vunpack.c.l.b16 %v439
  %v460 = vunpack.c.h.b16 %v439
  %v461 = vunpack.c.l.b16 %v440
  %v462 = vunpack.c.h.b16 %v440
  %v463 = vunpack.c.l.b16 %v441
  %v464 = vunpack.c.h.b16 %v441
  %v465 = vunpack.c.l.b16 %v442
  %v466 = vunpack.c.h.b16 %v442
  %v467 = vpack.c.b16 %v451, %v451
  %v468 = vpack.c.b16 %v452, %v452
  %v469 = vpack.c.b16 %v453, %v453
  %v470 = vpack.c.b16 %v454, %v454
  %v471 = vpack.c.b16 %v455, %v455
  %v472 = vpack.c.b16 %v456, %v456
  %v473 = vpack.c.b16 %v457, %v457
  %v474 = vpack.c.b16 %v458, %v458
  %v475 = vpack.c.b16 %v459, %v459
  %v476 = vpack.c.b16 %v460, %v460
  %v477 = vpack.c.b16 %v461, %v461
  %v478 = vpack.c.b16 %v462, %v462
  %v479 = vpack.c.b16 %v463, %v463
  %v480 = vpack.c.b16 %v464, %v464
  %v481 = vpack.c.b16 %v465, %v465
  %v482 = vpack.c.b16 %v466, %v466
  %vm499 = vcmask 781312
  %500 = vst.msk [vmem:[%s4] sm:$0xf] %vm499, %v467
  %501 = vst.msk [vmem:[%s4 + $0x4] sm:$0xf] %vm499, %v468
  %502 = vst.msk [vmem:[%s4 + $0x8] sm:$0xf] %vm499, %v469
  %503 = vst.msk [vmem:[%s4 + $0xc] sm:$0xf] %vm499, %v470
  %504 = vst.msk [vmem:[%s4 + $0x10] sm:$0xf] %vm499, %v471
  %505 = vst.msk [vmem:[%s4 + $0x14] sm:$0xf] %vm499, %v472
  %506 = vst.msk [vmem:[%s4 + $0x18] sm:$0xf] %vm499, %v473
  %507 = vst.msk [vmem:[%s4 + $0x1c] sm:$0xf] %vm499, %v474
  %508 = vst.msk [vmem:[%s4 + $0x20] sm:$0xf] %vm499, %v475
  %509 = vst.msk [vmem:[%s4 + $0x24] sm:$0xf] %vm499, %v476
  %510 = vst.msk [vmem:[%s4 + $0x28] sm:$0xf] %vm499, %v477
  %511 = vst.msk [vmem:[%s4 + $0x2c] sm:$0xf] %vm499, %v478
  %512 = vst.msk [vmem:[%s4 + $0x30] sm:$0xf] %vm499, %v479
  %513 = vst.msk [vmem:[%s4 + $0x34] sm:$0xf] %vm499, %v480
  %514 = vst.msk [vmem:[%s4 + $0x38] sm:$0xf] %vm499, %v481
  %515 = vst.msk [vmem:[%s4 + $0x3c] sm:$0xf] %vm499, %v482
  // Predicated region
  $region18: #{spatial_transformer.13} parent=0 // pred_check
    _
  $region19: #{spatial_transformer.13} parent=0 // pred_check_branch
    %517 = sbr.rel (0) target = $region21
  $region20: #{spatial_transformer.13} parent=0 // pred_region
    _
  $region21: #{spatial_transformer.13} parent=0 // pred_fallthru
    _
  // Predicated region
  $region22: #{spatial_transformer.13} parent=0 // pred_check
    _
  $region23: #{spatial_transformer.13} parent=0 // pred_check_branch
    %519 = sbr.rel (0) target = $region25
  $region24: #{spatial_transformer.13} parent=0 // pred_region
    _
  $region25: #{spatial_transformer.13} parent=0 // pred_fallthru
    _

// kernel: spatial_transformer.12
$region0: #{spatial_transformer.12}
  #allocation0 [shape = 'u32[]', space=smem, size = 0x4, offset = 0x4, fixed_abs, tag = 'smem constant byte address 0x4 - core index']
  #allocation1 [shape = 'u32[144,128]{1,0:T(1,128)}', space=vmem, size = 0x12000, scoped, tag = 'internal scratch']
  #allocation2 [shape = 'f32[128,32]{1,0:T(8,128)}', space=vmem, size = 0x10000, scoped, tag = 'scratch operand']
  %s0 = inlined_call_operand.vmem [shape: bf16[128,32], index: 0, kind: input, shape index: {}]
  %s1 = inlined_call_operand.vmem [shape: bf16[32,32], index: 1, kind: input, shape index: {}]
  %s2 = inlined_call_operand.vmem [shape: f32[1,32], index: 2, kind: input, shape index: {}]
  %s3 = inlined_call_operand.vmem [shape: f32[128,32], index: 3, kind: output, shape index: {}]
  %s4 = sld [smem:[#allocation0]]
  $region30: #{spatial_transformer.12} parent=0
    _
  %s6 = ssub.s32 1, %s4
  %s7 = scalar_select 0, %s6, %s4
  // Predicated region
  $region2: #{spatial_transformer.12} parent=0 // pred_check
    _
  $region3: #{spatial_transformer.12} parent=0 // pred_check_branch
    %9 = sbr.rel (0) target = $region5
  $region4: #{spatial_transformer.12} parent=0 // pred_region
    _
  $region5: #{spatial_transformer.12} parent=0 // pred_fallthru
    _
  // Predicated region
  $region6: #{spatial_transformer.12} parent=0 // pred_check
    _
  $region7: #{spatial_transformer.12} parent=0 // pred_check_branch
    %11 = sbr.rel (0) target = $region9
  $region8: #{spatial_transformer.12} parent=0 // pred_region
    _
  $region9: #{spatial_transformer.12} parent=0 // pred_fallthru
    _
  // Predicated region
  $region10: #{spatial_transformer.12} parent=0 // pred_check
    _
  $region11: #{spatial_transformer.12} parent=0 // pred_check_branch
    %13 = sbr.rel (0) target = $region13
  $region12: #{spatial_transformer.12} parent=0 // pred_region
    _
  $region13: #{spatial_transformer.12} parent=0 // pred_fallthru
    _
  %p15 = scmp.eq.s32.totalorder 0, 0
  // Predicated region
  $region14: #{spatial_transformer.12} parent=0 // pred_check
    %p16 = pneg %p15
  $region15: #{spatial_transformer.12} parent=0 // pred_check_branch
    %18 = sbr.rel (%p16) target = $region17
  $region16: #{spatial_transformer.12} parent=0 // pred_region
    %vm19 = vcmask 261120
    %20 = vst.msk [vmem:[#allocation2] sm:$0xff] %vm19, 0.0
    %21 = vst.msk [vmem:[#allocation2 + $0x8] sm:$0xff] %vm19, 0.0
    %22 = vst.msk [vmem:[#allocation2 + $0x10] sm:$0xff] %vm19, 0.0
    %23 = vst.msk [vmem:[#allocation2 + $0x18] sm:$0xff] %vm19, 0.0
    %24 = vst.msk [vmem:[#allocation2 + $0x20] sm:$0xff] %vm19, 0.0
    %25 = vst.msk [vmem:[#allocation2 + $0x28] sm:$0xff] %vm19, 0.0
    %26 = vst.msk [vmem:[#allocation2 + $0x30] sm:$0xff] %vm19, 0.0
    %27 = vst.msk [vmem:[#allocation2 + $0x38] sm:$0xff] %vm19, 0.0
    %28 = vst.msk [vmem:[#allocation2 + $0x40] sm:$0xff] %vm19, 0.0
    %29 = vst.msk [vmem:[#allocation2 + $0x48] sm:$0xff] %vm19, 0.0
    %30 = vst.msk [vmem:[#allocation2 + $0x50] sm:$0xff] %vm19, 0.0
    %31 = vst.msk [vmem:[#allocation2 + $0x58] sm:$0xff] %vm19, 0.0
    %32 = vst.msk [vmem:[#allocation2 + $0x60] sm:$0xff] %vm19, 0.0
    %33 = vst.msk [vmem:[#allocation2 + $0x68] sm:$0xff] %vm19, 0.0
    %34 = vst.msk [vmem:[#allocation2 + $0x70] sm:$0xff] %vm19, 0.0
    %35 = vst.msk [vmem:[#allocation2 + $0x78] sm:$0xff] %vm19, 0.0
  $region17: #{spatial_transformer.12} parent=0 // pred_fallthru
    _
  %v36 = vld [vmem:[#allocation2] sm:$0xff]
  %v37 = vld [vmem:[#allocation2 + $0x8] sm:$0xff]
  %v38 = vld [vmem:[#allocation2 + $0x10] sm:$0xff]
  %v39 = vld [vmem:[#allocation2 + $0x18] sm:$0xff]
  %v40 = vld [vmem:[#allocation2 + $0x20] sm:$0xff]
  %v41 = vld [vmem:[#allocation2 + $0x28] sm:$0xff]
  %v42 = vld [vmem:[#allocation2 + $0x30] sm:$0xff]
  %v43 = vld [vmem:[#allocation2 + $0x38] sm:$0xff]
  %v44 = vld [vmem:[#allocation2 + $0x40] sm:$0xff]
  %v45 = vld [vmem:[#allocation2 + $0x48] sm:$0xff]
  %v46 = vld [vmem:[#allocation2 + $0x50] sm:$0xff]
  %v47 = vld [vmem:[#allocation2 + $0x58] sm:$0xff]
  %v48 = vld [vmem:[#allocation2 + $0x60] sm:$0xff]
  %v49 = vld [vmem:[#allocation2 + $0x68] sm:$0xff]
  %v50 = vld [vmem:[#allocation2 + $0x70] sm:$0xff]
  %v51 = vld [vmem:[#allocation2 + $0x78] sm:$0xff]
  %v52 = vld [vmem:[%s0] sm:$0xf]
  %v53 = vld [vmem:[%s0 + $0x4] sm:$0xf]
  %v54 = vld [vmem:[%s0 + $0x8] sm:$0xf]
  %v55 = vld [vmem:[%s0 + $0xc] sm:$0xf]
  %v56 = vld [vmem:[%s0 + $0x10] sm:$0xf]
  %v57 = vld [vmem:[%s0 + $0x14] sm:$0xf]
  %v58 = vld [vmem:[%s0 + $0x18] sm:$0xf]
  %v59 = vld [vmem:[%s0 + $0x1c] sm:$0xf]
  %v60 = vld [vmem:[%s0 + $0x20] sm:$0xf]
  %v61 = vld [vmem:[%s0 + $0x24] sm:$0xf]
  %v62 = vld [vmem:[%s0 + $0x28] sm:$0xf]
  %v63 = vld [vmem:[%s0 + $0x2c] sm:$0xf]
  %v64 = vld [vmem:[%s0 + $0x30] sm:$0xf]
  %v65 = vld [vmem:[%s0 + $0x34] sm:$0xf]
  %v66 = vld [vmem:[%s0 + $0x38] sm:$0xf]
  %v67 = vld [vmem:[%s0 + $0x3c] sm:$0xf]
  %v68 = vld [vmem:[%s1] sm:$0xf]
  %v69 = vld [vmem:[%s1 + $0x4] sm:$0xf]
  %v70 = vld [vmem:[%s1 + $0x8] sm:$0xf]
  %v71 = vld [vmem:[%s1 + $0xc] sm:$0xf]
  %v88 = vunpack.c.l.b16 %v52
  %v89 = vunpack.c.l.b16 %v53
  %v90 = vunpack.c.l.b16 %v54
  %v91 = vunpack.c.l.b16 %v55
  %v92 = vunpack.c.l.b16 %v56
  %v93 = vunpack.c.l.b16 %v57
  %v94 = vunpack.c.l.b16 %v58
  %v95 = vunpack.c.l.b16 %v59
  %v96 = vunpack.c.l.b16 %v60
  %v97 = vunpack.c.l.b16 %v61
  %v98 = vunpack.c.l.b16 %v62
  %v99 = vunpack.c.l.b16 %v63
  %v100 = vunpack.c.l.b16 %v64
  %v101 = vunpack.c.l.b16 %v65
  %v102 = vunpack.c.l.b16 %v66
  %v103 = vunpack.c.l.b16 %v67
  %v104 = vpack.c.b16 %v89, %v88
  %v105 = vpack.c.b16 %v91, %v90
  %v106 = vpack.c.b16 %v93, %v92
  %v107 = vpack.c.b16 %v95, %v94
  %v108 = vpack.c.b16 %v97, %v96
  %v109 = vpack.c.b16 %v99, %v98
  %v110 = vpack.c.b16 %v101, %v100
  %v111 = vpack.c.b16 %v103, %v102
  %v116 = vunpack.c.l.b16 %v68
  %v117 = vunpack.c.l.b16 %v69
  %v118 = vunpack.c.l.b16 %v70
  %v119 = vunpack.c.l.b16 %v71
  %v120 = vpack.c.b16 %v117, %v116
  %v121 = vpack.c.b16 %v119, %v118
  %vm124 = vcmask 261120
  %v126 = vsel %vm124, %v104, 0
  %v129 = vsel %vm124, %v105, 0
  %v132 = vsel %vm124, %v106, 0
  %v135 = vsel %vm124, %v107, 0
  %v138 = vsel %vm124, %v108, 0
  %v141 = vsel %vm124, %v109, 0
  %v144 = vsel %vm124, %v110, 0
  %v147 = vsel %vm124, %v111, 0
  %149 = vmatprep.subr.bf16.mxu0 0
  %150 = vmatpush1.bf16.msra.mxu0 0
  %151 = vmatprep.subr.bf16.mxu0 0
  %152 = vmatpush1.bf16.msra.mxu0 0
  %153 = vmatprep.subr.bf16.mxu0 0
  %154 = vmatpush1.bf16.msra.mxu0 0
  %155 = vmatprep.subr.bf16.mxu0 0
  %156 = vmatpush1.bf16.msra.mxu0 0
  %157 = vmatprep.subr.bf16.mxu0 0
  %158 = vmatpush1.bf16.msra.mxu0 0
  %159 = vmatprep.subr.bf16.mxu0 0
  %160 = vmatpush1.bf16.msra.mxu0 0
  %161 = vmatprep.subr.bf16.mxu0 0
  %162 = vmatpush1.bf16.msra.mxu0 %v121
  %163 = vmatprep.subr.bf16.mxu0 0
  %164 = vmatpush1.bf16.msra.mxu0 %v120
  %165 = vmatprep.subr.bf16.mxu0 0
  %166 = vmatpush2.bf16.msra.mxu0 0
  %167 = vmatprep.subr.bf16.mxu0 0
  %168 = vmatpush2.bf16.msra.mxu0 0
  %169 = vmatprep.subr.bf16.mxu0 0
  %170 = vmatpush2.bf16.msra.mxu0 0
  %171 = vmatprep.subr.bf16.mxu0 0
  %172 = vmatpush2.bf16.msra.mxu0 0
  %173 = vmatprep.subr.bf16.mxu0 0
  %174 = vmatpush2.bf16.msra.mxu0 0
  %175 = vmatprep.subr.bf16.mxu0 0
  %176 = vmatpush2.bf16.msra.mxu0 0
  %177 = vmatprep.subr.bf16.mxu0 0
  %178 = vmatpush2.bf16.msra.mxu0 0
  %179 = vmatprep.subr.bf16.mxu0 0
  %180 = vmatpush2.bf16.msra.mxu0 0
  %181 = vmatprep.mubr.bf16.mxu0 0
  %182 = vmatmul.mubr.bf16.gmra.mxu0 %v126
  %v183 = vpop.f32.mrf.mxu0
  %v184 = vadd.f32 0.0, %v183
  %v185 = vpop.f32.mrf.mxu0
  %v186 = vpop.f32.mrf.mxu0
  %v187 = vadd.f32 0.0, %v186
  %v188 = vpop.f32.mrf.mxu0
  %189 = vmatprep.mubr.bf16.mxu0 0
  %190 = vmatmul.mubr.bf16.gmra.mxu0 %v129
  %v191 = vpop.f32.mrf.mxu0
  %v192 = vadd.f32 0.0, %v191
  %v193 = vpop.f32.mrf.mxu0
  %v194 = vpop.f32.mrf.mxu0
  %v195 = vadd.f32 0.0, %v194
  %v196 = vpop.f32.mrf.mxu0
  %197 = vmatprep.mubr.bf16.mxu0 0
  %198 = vmatmul.mubr.bf16.gmra.mxu0 %v132
  %v199 = vpop.f32.mrf.mxu0
  %v200 = vadd.f32 0.0, %v199
  %v201 = vpop.f32.mrf.mxu0
  %v202 = vpop.f32.mrf.mxu0
  %v203 = vadd.f32 0.0, %v202
  %v204 = vpop.f32.mrf.mxu0
  %205 = vmatprep.mubr.bf16.mxu0 0
  %206 = vmatmul.mubr.bf16.gmra.mxu0 %v135
  %v207 = vpop.f32.mrf.mxu0
  %v208 = vadd.f32 0.0, %v207
  %v209 = vpop.f32.mrf.mxu0
  %v210 = vpop.f32.mrf.mxu0
  %v211 = vadd.f32 0.0, %v210
  %v212 = vpop.f32.mrf.mxu0
  %213 = vmatprep.mubr.bf16.mxu0 0
  %214 = vmatmul.mubr.bf16.gmra.mxu0 %v138
  %v215 = vpop.f32.mrf.mxu0
  %v216 = vadd.f32 0.0, %v215
  %v217 = vpop.f32.mrf.mxu0
  %v218 = vpop.f32.mrf.mxu0
  %v219 = vadd.f32 0.0, %v218
  %v220 = vpop.f32.mrf.mxu0
  %221 = vmatprep.mubr.bf16.mxu0 0
  %222 = vmatmul.mubr.bf16.gmra.mxu0 %v141
  %v223 = vpop.f32.mrf.mxu0
  %v224 = vadd.f32 0.0, %v223
  %v225 = vpop.f32.mrf.mxu0
  %v226 = vpop.f32.mrf.mxu0
  %v227 = vadd.f32 0.0, %v226
  %v228 = vpop.f32.mrf.mxu0
  %229 = vmatprep.mubr.bf16.mxu0 0
  %230 = vmatmul.mubr.bf16.gmra.mxu0 %v144
  %v231 = vpop.f32.mrf.mxu0
  %v232 = vadd.f32 0.0, %v231
  %v233 = vpop.f32.mrf.mxu0
  %v234 = vpop.f32.mrf.mxu0
  %v235 = vadd.f32 0.0, %v234
  %v236 = vpop.f32.mrf.mxu0
  %237 = vmatprep.mubr.bf16.mxu0 0
  %238 = vmatmul.mubr.bf16.gmra.mxu0 %v147
  %v239 = vpop.f32.mrf.mxu0
  %v240 = vadd.f32 0.0, %v239
  %v241 = vpop.f32.mrf.mxu0
  %v242 = vpop.f32.mrf.mxu0
  %v243 = vadd.f32 0.0, %v242
  %v244 = vpop.f32.mrf.mxu0
  %245 = vdwg.mxu0
  %v246 = vadd.f32 %v36, %v184
  %v247 = vadd.f32 %v37, %v187
  %v248 = vadd.f32 %v38, %v192
  %v249 = vadd.f32 %v39, %v195
  %v250 = vadd.f32 %v40, %v200
  %v251 = vadd.f32 %v41, %v203
  %v252 = vadd.f32 %v42, %v208
  %v253 = vadd.f32 %v43, %v211
  %v254 = vadd.f32 %v44, %v216
  %v255 = vadd.f32 %v45, %v219
  %v256 = vadd.f32 %v46, %v224
  %v257 = vadd.f32 %v47, %v227
  %v258 = vadd.f32 %v48, %v232
  %v259 = vadd.f32 %v49, %v235
  %v260 = vadd.f32 %v50, %v240
  %v261 = vadd.f32 %v51, %v243
  %262 = vst.msk [vmem:[#allocation2] sm:$0xff] %vm124, %v246
  %263 = vst.msk [vmem:[#allocation2 + $0x8] sm:$0xff] %vm124, %v247
  %264 = vst.msk [vmem:[#allocation2 + $0x10] sm:$0xff] %vm124, %v248
  %265 = vst.msk [vmem:[#allocation2 + $0x18] sm:$0xff] %vm124, %v249
  %266 = vst.msk [vmem:[#allocation2 + $0x20] sm:$0xff] %vm124, %v250
  %267 = vst.msk [vmem:[#allocation2 + $0x28] sm:$0xff] %vm124, %v251
  %268 = vst.msk [vmem:[#allocation2 + $0x30] sm:$0xff] %vm124, %v252
  %269 = vst.msk [vmem:[#allocation2 + $0x38] sm:$0xff] %vm124, %v253
  %270 = vst.msk [vmem:[#allocation2 + $0x40] sm:$0xff] %vm124, %v254
  %271 = vst.msk [vmem:[#allocation2 + $0x48] sm:$0xff] %vm124, %v255
  %272 = vst.msk [vmem:[#allocation2 + $0x50] sm:$0xff] %vm124, %v256
  %273 = vst.msk [vmem:[#allocation2 + $0x58] sm:$0xff] %vm124, %v257
  %274 = vst.msk [vmem:[#allocation2 + $0x60] sm:$0xff] %vm124, %v258
  %275 = vst.msk [vmem:[#allocation2 + $0x68] sm:$0xff] %vm124, %v259
  %276 = vst.msk [vmem:[#allocation2 + $0x70] sm:$0xff] %vm124, %v260
  %277 = vst.msk [vmem:[#allocation2 + $0x78] sm:$0xff] %vm124, %v261
  // Predicated region
  $region18: #{spatial_transformer.12} parent=0 // pred_check
    %p278 = pneg %p15
  $region19: #{spatial_transformer.12} parent=0 // pred_check_branch
    %280 = sbr.rel (%p278) target = $region21
  $region20: #{spatial_transformer.12} parent=0 // pred_region
    %v281 = vld [vmem:[#allocation2] sm:$0xff]
    %v282 = vld [vmem:[#allocation2 + $0x8] sm:$0xff]
    %v283 = vld [vmem:[#allocation2 + $0x10] sm:$0xff]
    %v284 = vld [vmem:[#allocation2 + $0x18] sm:$0xff]
    %v285 = vld [vmem:[#allocation2 + $0x20] sm:$0xff]
    %v286 = vld [vmem:[#allocation2 + $0x28] sm:$0xff]
    %v287 = vld [vmem:[#allocation2 + $0x30] sm:$0xff]
    %v288 = vld [vmem:[#allocation2 + $0x38] sm:$0xff]
    %v289 = vld [vmem:[#allocation2 + $0x40] sm:$0xff]
    %v290 = vld [vmem:[#allocation2 + $0x48] sm:$0xff]
    %v291 = vld [vmem:[#allocation2 + $0x50] sm:$0xff]
    %v292 = vld [vmem:[#allocation2 + $0x58] sm:$0xff]
    %v293 = vld [vmem:[#allocation2 + $0x60] sm:$0xff]
    %v294 = vld [vmem:[#allocation2 + $0x68] sm:$0xff]
    %v295 = vld [vmem:[#allocation2 + $0x70] sm:$0xff]
    %v296 = vld [vmem:[#allocation2 + $0x78] sm:$0xff]
    %v297 = vld [vmem:[%s2] sm:$0x1]
    %v299 = vlaneseq
    %v300 = vshrl.u32 %v299, 7
    %v301 = vsub.s32 0, %v300
    %v302 = vrot.slane %v297, %v301
    %v304 = vadd.f32 %v281, %v302
    %v305 = vadd.f32 %v282, %v302
    %v306 = vadd.f32 %v283, %v302
    %v307 = vadd.f32 %v284, %v302
    %v308 = vadd.f32 %v285, %v302
    %v309 = vadd.f32 %v286, %v302
    %v310 = vadd.f32 %v287, %v302
    %v311 = vadd.f32 %v288, %v302
    %v312 = vadd.f32 %v289, %v302
    %v313 = vadd.f32 %v290, %v302
    %v314 = vadd.f32 %v291, %v302
    %v315 = vadd.f32 %v292, %v302
    %v316 = vadd.f32 %v293, %v302
    %v317 = vadd.f32 %v294, %v302
    %v318 = vadd.f32 %v295, %v302
    %v319 = vadd.f32 %v296, %v302
    %320 = vst.msk [vmem:[%s3] sm:$0xff] %vm124, %v304
    %321 = vst.msk [vmem:[%s3 + $0x8] sm:$0xff] %vm124, %v305
    %322 = vst.msk [vmem:[%s3 + $0x10] sm:$0xff] %vm124, %v306
    %323 = vst.msk [vmem:[%s3 + $0x18] sm:$0xff] %vm124, %v307
    %324 = vst.msk [vmem:[%s3 + $0x20] sm:$0xff] %vm124, %v308
    %325 = vst.msk [vmem:[%s3 + $0x28] sm:$0xff] %vm124, %v309
    %326 = vst.msk [vmem:[%s3 + $0x30] sm:$0xff] %vm124, %v310
    %327 = vst.msk [vmem:[%s3 + $0x38] sm:$0xff] %vm124, %v311
    %328 = vst.msk [vmem:[%s3 + $0x40] sm:$0xff] %vm124, %v312
    %329 = vst.msk [vmem:[%s3 + $0x48] sm:$0xff] %vm124, %v313
    %330 = vst.msk [vmem:[%s3 + $0x50] sm:$0xff] %vm124, %v314
    %331 = vst.msk [vmem:[%s3 + $0x58] sm:$0xff] %vm124, %v315
    %332 = vst.msk [vmem:[%s3 + $0x60] sm:$0xff] %vm124, %v316
    %333 = vst.msk [vmem:[%s3 + $0x68] sm:$0xff] %vm124, %v317
    %334 = vst.msk [vmem:[%s3 + $0x70] sm:$0xff] %vm124, %v318
    %335 = vst.msk [vmem:[%s3 + $0x78] sm:$0xff] %vm124, %v319
  $region21: #{spatial_transformer.12} parent=0 // pred_fallthru
    _
  // Predicated region
  $region22: #{spatial_transformer.12} parent=0 // pred_check
    _
  $region23: #{spatial_transformer.12} parent=0 // pred_check_branch
    %337 = sbr.rel (0) target = $region25
  $region24: #{spatial_transformer.12} parent=0 // pred_region
    _
  $region25: #{spatial_transformer.12} parent=0 // pred_fallthru
    _
  // Predicated region
  $region26: #{spatial_transformer.12} parent=0 // pred_check
    _
  $region27: #{spatial_transformer.12} parent=0 // pred_check_branch
    %339 = sbr.rel (0) target = $region29
  $region28: #{spatial_transformer.12} parent=0 // pred_region
    _
  $region29: #{spatial_transformer.12} parent=0 // pred_fallthru
    _

// kernel: spatial_transformer.15
$region0: #{spatial_transformer.15}
  #allocation0 [shape = 'u32[]', space=smem, size = 0x4, offset = 0x4, fixed_abs, tag = 'smem constant byte address 0x4 - core index']
  #allocation1 [shape = 'u32[144,128]{1,0:T(1,128)}', space=vmem, size = 0x12000, scoped, tag = 'internal scratch']
  #allocation2 [shape = 'f32[128,32]{1,0:T(8,128)}', space=vmem, size = 0x10000, scoped, tag = 'scratch operand']
  %s0 = inlined_call_operand.vmem [shape: bf16[128,32], index: 0, kind: input, shape index: {}]
  %s1 = inlined_call_operand.vmem [shape: bf16[32,32], index: 1, kind: input, shape index: {}]
  %s2 = inlined_call_operand.vmem [shape: f32[1,32], index: 2, kind: input, shape index: {}]
  %s3 = inlined_call_operand.vmem [shape: f32[128,32], index: 3, kind: input, shape index: {}]
  %s4 = inlined_call_operand.vmem [shape: f32[128,32], index: 4, kind: output, shape index: {}]
  %s5 = sld [smem:[#allocation0]]
  $region34: #{spatial_transformer.15} parent=0
    _
  %s7 = ssub.s32 1, %s5
  %s8 = scalar_select 0, %s7, %s5
  // Predicated region
  $region2: #{spatial_transformer.15} parent=0 // pred_check
    _
  $region3: #{spatial_transformer.15} parent=0 // pred_check_branch
    %10 = sbr.rel (0) target = $region5
  $region4: #{spatial_transformer.15} parent=0 // pred_region
    _
  $region5: #{spatial_transformer.15} parent=0 // pred_fallthru
    _
  // Predicated region
  $region6: #{spatial_transformer.15} parent=0 // pred_check
    _
  $region7: #{spatial_transformer.15} parent=0 // pred_check_branch
    %12 = sbr.rel (0) target = $region9
  $region8: #{spatial_transformer.15} parent=0 // pred_region
    _
  $region9: #{spatial_transformer.15} parent=0 // pred_fallthru
    _
  // Predicated region
  $region10: #{spatial_transformer.15} parent=0 // pred_check
    _
  $region11: #{spatial_transformer.15} parent=0 // pred_check_branch
    %14 = sbr.rel (0) target = $region13
  $region12: #{spatial_transformer.15} parent=0 // pred_region
    _
  $region13: #{spatial_transformer.15} parent=0 // pred_fallthru
    _
  // Predicated region
  $region14: #{spatial_transformer.15} parent=0 // pred_check
    _
  $region15: #{spatial_transformer.15} parent=0 // pred_check_branch
    %16 = sbr.rel (0) target = $region17
  $region16: #{spatial_transformer.15} parent=0 // pred_region
    _
  $region17: #{spatial_transformer.15} parent=0 // pred_fallthru
    _
  %p18 = scmp.eq.s32.totalorder 0, 0
  // Predicated region
  $region18: #{spatial_transformer.15} parent=0 // pred_check
    %p19 = pneg %p18
  $region19: #{spatial_transformer.15} parent=0 // pred_check_branch
    %21 = sbr.rel (%p19) target = $region21
  $region20: #{spatial_transformer.15} parent=0 // pred_region
    %vm22 = vcmask 261120
    %23 = vst.msk [vmem:[#allocation2] sm:$0xff] %vm22, 0.0
    %24 = vst.msk [vmem:[#allocation2 + $0x8] sm:$0xff] %vm22, 0.0
    %25 = vst.msk [vmem:[#allocation2 + $0x10] sm:$0xff] %vm22, 0.0
    %26 = vst.msk [vmem:[#allocation2 + $0x18] sm:$0xff] %vm22, 0.0
    %27 = vst.msk [vmem:[#allocation2 + $0x20] sm:$0xff] %vm22, 0.0
    %28 = vst.msk [vmem:[#allocation2 + $0x28] sm:$0xff] %vm22, 0.0
    %29 = vst.msk [vmem:[#allocation2 + $0x30] sm:$0xff] %vm22, 0.0
    %30 = vst.msk [vmem:[#allocation2 + $0x38] sm:$0xff] %vm22, 0.0
    %31 = vst.msk [vmem:[#allocation2 + $0x40] sm:$0xff] %vm22, 0.0
    %32 = vst.msk [vmem:[#allocation2 + $0x48] sm:$0xff] %vm22, 0.0
    %33 = vst.msk [vmem:[#allocation2 + $0x50] sm:$0xff] %vm22, 0.0
    %34 = vst.msk [vmem:[#allocation2 + $0x58] sm:$0xff] %vm22, 0.0
    %35 = vst.msk [vmem:[#allocation2 + $0x60] sm:$0xff] %vm22, 0.0
    %36 = vst.msk [vmem:[#allocation2 + $0x68] sm:$0xff] %vm22, 0.0
    %37 = vst.msk [vmem:[#allocation2 + $0x70] sm:$0xff] %vm22, 0.0
    %38 = vst.msk [vmem:[#allocation2 + $0x78] sm:$0xff] %vm22, 0.0
  $region21: #{spatial_transformer.15} parent=0 // pred_fallthru
    _
  %v39 = vld [vmem:[#allocation2] sm:$0xff]
  %v40 = vld [vmem:[#allocation2 + $0x8] sm:$0xff]
  %v41 = vld [vmem:[#allocation2 + $0x10] sm:$0xff]
  %v42 = vld [vmem:[#allocation2 + $0x18] sm:$0xff]
  %v43 = vld [vmem:[#allocation2 + $0x20] sm:$0xff]
  %v44 = vld [vmem:[#allocation2 + $0x28] sm:$0xff]
  %v45 = vld [vmem:[#allocation2 + $0x30] sm:$0xff]
  %v46 = vld [vmem:[#allocation2 + $0x38] sm:$0xff]
  %v47 = vld [vmem:[#allocation2 + $0x40] sm:$0xff]
  %v48 = vld [vmem:[#allocation2 + $0x48] sm:$0xff]
  %v49 = vld [vmem:[#allocation2 + $0x50] sm:$0xff]
  %v50 = vld [vmem:[#allocation2 + $0x58] sm:$0xff]
  %v51 = vld [vmem:[#allocation2 + $0x60] sm:$0xff]
  %v52 = vld [vmem:[#allocation2 + $0x68] sm:$0xff]
  %v53 = vld [vmem:[#allocation2 + $0x70] sm:$0xff]
  %v54 = vld [vmem:[#allocation2 + $0x78] sm:$0xff]
  %v55 = vld [vmem:[%s0] sm:$0xf]
  %v56 = vld [vmem:[%s0 + $0x4] sm:$0xf]
  %v57 = vld [vmem:[%s0 + $0x8] sm:$0xf]
  %v58 = vld [vmem:[%s0 + $0xc] sm:$0xf]
  %v59 = vld [vmem:[%s0 + $0x10] sm:$0xf]
  %v60 = vld [vmem:[%s0 + $0x14] sm:$0xf]
  %v61 = vld [vmem:[%s0 + $0x18] sm:$0xf]
  %v62 = vld [vmem:[%s0 + $0x1c] sm:$0xf]
  %v63 = vld [vmem:[%s0 + $0x20] sm:$0xf]
  %v64 = vld [vmem:[%s0 + $0x24] sm:$0xf]
  %v65 = vld [vmem:[%s0 + $0x28] sm:$0xf]
  %v66 = vld [vmem:[%s0 + $0x2c] sm:$0xf]
  %v67 = vld [vmem:[%s0 + $0x30] sm:$0xf]
  %v68 = vld [vmem:[%s0 + $0x34] sm:$0xf]
  %v69 = vld [vmem:[%s0 + $0x38] sm:$0xf]
  %v70 = vld [vmem:[%s0 + $0x3c] sm:$0xf]
  %v71 = vld [vmem:[%s1] sm:$0xf]
  %v72 = vld [vmem:[%s1 + $0x4] sm:$0xf]
  %v73 = vld [vmem:[%s1 + $0x8] sm:$0xf]
  %v74 = vld [vmem:[%s1 + $0xc] sm:$0xf]
  %v91 = vunpack.c.l.b16 %v55
  %v92 = vunpack.c.l.b16 %v56
  %v93 = vunpack.c.l.b16 %v57
  %v94 = vunpack.c.l.b16 %v58
  %v95 = vunpack.c.l.b16 %v59
  %v96 = vunpack.c.l.b16 %v60
  %v97 = vunpack.c.l.b16 %v61
  %v98 = vunpack.c.l.b16 %v62
  %v99 = vunpack.c.l.b16 %v63
  %v100 = vunpack.c.l.b16 %v64
  %v101 = vunpack.c.l.b16 %v65
  %v102 = vunpack.c.l.b16 %v66
  %v103 = vunpack.c.l.b16 %v67
  %v104 = vunpack.c.l.b16 %v68
  %v105 = vunpack.c.l.b16 %v69
  %v106 = vunpack.c.l.b16 %v70
  %v107 = vpack.c.b16 %v92, %v91
  %v108 = vpack.c.b16 %v94, %v93
  %v109 = vpack.c.b16 %v96, %v95
  %v110 = vpack.c.b16 %v98, %v97
  %v111 = vpack.c.b16 %v100, %v99
  %v112 = vpack.c.b16 %v102, %v101
  %v113 = vpack.c.b16 %v104, %v103
  %v114 = vpack.c.b16 %v106, %v105
  %v119 = vunpack.c.l.b16 %v71
  %v120 = vunpack.c.l.b16 %v72
  %v121 = vunpack.c.l.b16 %v73
  %v122 = vunpack.c.l.b16 %v74
  %v123 = vpack.c.b16 %v120, %v119
  %v124 = vpack.c.b16 %v122, %v121
  %vm127 = vcmask 261120
  %v129 = vsel %vm127, %v107, 0
  %v132 = vsel %vm127, %v108, 0
  %v135 = vsel %vm127, %v109, 0
  %v138 = vsel %vm127, %v110, 0
  %v141 = vsel %vm127, %v111, 0
  %v144 = vsel %vm127, %v112, 0
  %v147 = vsel %vm127, %v113, 0
  %v150 = vsel %vm127, %v114, 0
  %152 = vmatprep.subr.bf16.mxu0 0
  %153 = vmatpush1.bf16.msra.mxu0 0
  %154 = vmatprep.subr.bf16.mxu0 0
  %155 = vmatpush1.bf16.msra.mxu0 0
  %156 = vmatprep.subr.bf16.mxu0 0
  %157 = vmatpush1.bf16.msra.mxu0 0
  %158 = vmatprep.subr.bf16.mxu0 0
  %159 = vmatpush1.bf16.msra.mxu0 0
  %160 = vmatprep.subr.bf16.mxu0 0
  %161 = vmatpush1.bf16.msra.mxu0 0
  %162 = vmatprep.subr.bf16.mxu0 0
  %163 = vmatpush1.bf16.msra.mxu0 0
  %164 = vmatprep.subr.bf16.mxu0 0
  %165 = vmatpush1.bf16.msra.mxu0 %v124
  %166 = vmatprep.subr.bf16.mxu0 0
  %167 = vmatpush1.bf16.msra.mxu0 %v123
  %168 = vmatprep.subr.bf16.mxu0 0
  %169 = vmatpush2.bf16.msra.mxu0 0
  %170 = vmatprep.subr.bf16.mxu0 0
  %171 = vmatpush2.bf16.msra.mxu0 0
  %172 = vmatprep.subr.bf16.mxu0 0
  %173 = vmatpush2.bf16.msra.mxu0 0
  %174 = vmatprep.subr.bf16.mxu0 0
  %175 = vmatpush2.bf16.msra.mxu0 0
  %176 = vmatprep.subr.bf16.mxu0 0
  %177 = vmatpush2.bf16.msra.mxu0 0
  %178 = vmatprep.subr.bf16.mxu0 0
  %179 = vmatpush2.bf16.msra.mxu0 0
  %180 = vmatprep.subr.bf16.mxu0 0
  %181 = vmatpush2.bf16.msra.mxu0 0
  %182 = vmatprep.subr.bf16.mxu0 0
  %183 = vmatpush2.bf16.msra.mxu0 0
  %184 = vmatprep.mubr.bf16.mxu0 0
  %185 = vmatmul.mubr.bf16.gmra.mxu0 %v129
  %v186 = vpop.f32.mrf.mxu0
  %v187 = vadd.f32 0.0, %v186
  %v188 = vpop.f32.mrf.mxu0
  %v189 = vpop.f32.mrf.mxu0
  %v190 = vadd.f32 0.0, %v189
  %v191 = vpop.f32.mrf.mxu0
  %192 = vmatprep.mubr.bf16.mxu0 0
  %193 = vmatmul.mubr.bf16.gmra.mxu0 %v132
  %v194 = vpop.f32.mrf.mxu0
  %v195 = vadd.f32 0.0, %v194
  %v196 = vpop.f32.mrf.mxu0
  %v197 = vpop.f32.mrf.mxu0
  %v198 = vadd.f32 0.0, %v197
  %v199 = vpop.f32.mrf.mxu0
  %200 = vmatprep.mubr.bf16.mxu0 0
  %201 = vmatmul.mubr.bf16.gmra.mxu0 %v135
  %v202 = vpop.f32.mrf.mxu0
  %v203 = vadd.f32 0.0, %v202
  %v204 = vpop.f32.mrf.mxu0
  %v205 = vpop.f32.mrf.mxu0
  %v206 = vadd.f32 0.0, %v205
  %v207 = vpop.f32.mrf.mxu0
  %208 = vmatprep.mubr.bf16.mxu0 0
  %209 = vmatmul.mubr.bf16.gmra.mxu0 %v138
  %v210 = vpop.f32.mrf.mxu0
  %v211 = vadd.f32 0.0, %v210
  %v212 = vpop.f32.mrf.mxu0
  %v213 = vpop.f32.mrf.mxu0
  %v214 = vadd.f32 0.0, %v213
  %v215 = vpop.f32.mrf.mxu0
  %216 = vmatprep.mubr.bf16.mxu0 0
  %217 = vmatmul.mubr.bf16.gmra.mxu0 %v141
  %v218 = vpop.f32.mrf.mxu0
  %v219 = vadd.f32 0.0, %v218
  %v220 = vpop.f32.mrf.mxu0
  %v221 = vpop.f32.mrf.mxu0
  %v222 = vadd.f32 0.0, %v221
  %v223 = vpop.f32.mrf.mxu0
  %224 = vmatprep.mubr.bf16.mxu0 0
  %225 = vmatmul.mubr.bf16.gmra.mxu0 %v144
  %v226 = vpop.f32.mrf.mxu0
  %v227 = vadd.f32 0.0, %v226
  %v228 = vpop.f32.mrf.mxu0
  %v229 = vpop.f32.mrf.mxu0
  %v230 = vadd.f32 0.0, %v229
  %v231 = vpop.f32.mrf.mxu0
  %232 = vmatprep.mubr.bf16.mxu0 0
  %233 = vmatmul.mubr.bf16.gmra.mxu0 %v147
  %v234 = vpop.f32.mrf.mxu0
  %v235 = vadd.f32 0.0, %v234
  %v236 = vpop.f32.mrf.mxu0
  %v237 = vpop.f32.mrf.mxu0
  %v238 = vadd.f32 0.0, %v237
  %v239 = vpop.f32.mrf.mxu0
  %240 = vmatprep.mubr.bf16.mxu0 0
  %241 = vmatmul.mubr.bf16.gmra.mxu0 %v150
  %v242 = vpop.f32.mrf.mxu0
  %v243 = vadd.f32 0.0, %v242
  %v244 = vpop.f32.mrf.mxu0
  %v245 = vpop.f32.mrf.mxu0
  %v246 = vadd.f32 0.0, %v245
  %v247 = vpop.f32.mrf.mxu0
  %248 = vdwg.mxu0
  %v249 = vadd.f32 %v39, %v187
  %v250 = vadd.f32 %v40, %v190
  %v251 = vadd.f32 %v41, %v195
  %v252 = vadd.f32 %v42, %v198
  %v253 = vadd.f32 %v43, %v203
  %v254 = vadd.f32 %v44, %v206
  %v255 = vadd.f32 %v45, %v211
  %v256 = vadd.f32 %v46, %v214
  %v257 = vadd.f32 %v47, %v219
  %v258 = vadd.f32 %v48, %v222
  %v259 = vadd.f32 %v49, %v227
  %v260 = vadd.f32 %v50, %v230
  %v261 = vadd.f32 %v51, %v235
  %v262 = vadd.f32 %v52, %v238
  %v263 = vadd.f32 %v53, %v243
  %v264 = vadd.f32 %v54, %v246
  %265 = vst.msk [vmem:[#allocation2] sm:$0xff] %vm127, %v249
  %266 = vst.msk [vmem:[#allocation2 + $0x8] sm:$0xff] %vm127, %v250
  %267 = vst.msk [vmem:[#allocation2 + $0x10] sm:$0xff] %vm127, %v251
  %268 = vst.msk [vmem:[#allocation2 + $0x18] sm:$0xff] %vm127, %v252
  %269 = vst.msk [vmem:[#allocation2 + $0x20] sm:$0xff] %vm127, %v253
  %270 = vst.msk [vmem:[#allocation2 + $0x28] sm:$0xff] %vm127, %v254
  %271 = vst.msk [vmem:[#allocation2 + $0x30] sm:$0xff] %vm127, %v255
  %272 = vst.msk [vmem:[#allocation2 + $0x38] sm:$0xff] %vm127, %v256
  %273 = vst.msk [vmem:[#allocation2 + $0x40] sm:$0xff] %vm127, %v257
  %274 = vst.msk [vmem:[#allocation2 + $0x48] sm:$0xff] %vm127, %v258
  %275 = vst.msk [vmem:[#allocation2 + $0x50] sm:$0xff] %vm127, %v259
  %276 = vst.msk [vmem:[#allocation2 + $0x58] sm:$0xff] %vm127, %v260
  %277 = vst.msk [vmem:[#allocation2 + $0x60] sm:$0xff] %vm127, %v261
  %278 = vst.msk [vmem:[#allocation2 + $0x68] sm:$0xff] %vm127, %v262
  %279 = vst.msk [vmem:[#allocation2 + $0x70] sm:$0xff] %vm127, %v263
  %280 = vst.msk [vmem:[#allocation2 + $0x78] sm:$0xff] %vm127, %v264
  // Predicated region
  $region22: #{spatial_transformer.15} parent=0 // pred_check
    %p281 = pneg %p18
  $region23: #{spatial_transformer.15} parent=0 // pred_check_branch
    %283 = sbr.rel (%p281) target = $region25
  $region24: #{spatial_transformer.15} parent=0 // pred_region
    %v284 = vld [vmem:[#allocation2] sm:$0xff]
    %v285 = vld [vmem:[#allocation2 + $0x8] sm:$0xff]
    %v286 = vld [vmem:[#allocation2 + $0x10] sm:$0xff]
    %v287 = vld [vmem:[#allocation2 + $0x18] sm:$0xff]
    %v288 = vld [vmem:[#allocation2 + $0x20] sm:$0xff]
    %v289 = vld [vmem:[#allocation2 + $0x28] sm:$0xff]
    %v290 = vld [vmem:[#allocation2 + $0x30] sm:$0xff]
    %v291 = vld [vmem:[#allocation2 + $0x38] sm:$0xff]
    %v292 = vld [vmem:[#allocation2 + $0x40] sm:$0xff]
    %v293 = vld [vmem:[#allocation2 + $0x48] sm:$0xff]
    %v294 = vld [vmem:[#allocation2 + $0x50] sm:$0xff]
    %v295 = vld [vmem:[#allocation2 + $0x58] sm:$0xff]
    %v296 = vld [vmem:[#allocation2 + $0x60] sm:$0xff]
    %v297 = vld [vmem:[#allocation2 + $0x68] sm:$0xff]
    %v298 = vld [vmem:[#allocation2 + $0x70] sm:$0xff]
    %v299 = vld [vmem:[#allocation2 + $0x78] sm:$0xff]
    %v300 = vld [vmem:[%s2] sm:$0x1]
    %v302 = vlaneseq
    %v303 = vshrl.u32 %v302, 7
    %v304 = vsub.s32 0, %v303
    %v305 = vrot.slane %v300, %v304
    %v307 = vadd.f32 %v284, %v305
    %v308 = vadd.f32 %v285, %v305
    %v309 = vadd.f32 %v286, %v305
    %v310 = vadd.f32 %v287, %v305
    %v311 = vadd.f32 %v288, %v305
    %v312 = vadd.f32 %v289, %v305
    %v313 = vadd.f32 %v290, %v305
    %v314 = vadd.f32 %v291, %v305
    %v315 = vadd.f32 %v292, %v305
    %v316 = vadd.f32 %v293, %v305
    %v317 = vadd.f32 %v294, %v305
    %v318 = vadd.f32 %v295, %v305
    %v319 = vadd.f32 %v296, %v305
    %v320 = vadd.f32 %v297, %v305
    %v321 = vadd.f32 %v298, %v305
    %v322 = vadd.f32 %v299, %v305
    %v323 = vld [vmem:[%s3] sm:$0xff]
    %v324 = vld [vmem:[%s3 + $0x8] sm:$0xff]
    %v325 = vld [vmem:[%s3 + $0x10] sm:$0xff]
    %v326 = vld [vmem:[%s3 + $0x18] sm:$0xff]
    %v327 = vld [vmem:[%s3 + $0x20] sm:$0xff]
    %v328 = vld [vmem:[%s3 + $0x28] sm:$0xff]
    %v329 = vld [vmem:[%s3 + $0x30] sm:$0xff]
    %v330 = vld [vmem:[%s3 + $0x38] sm:$0xff]
    %v331 = vld [vmem:[%s3 + $0x40] sm:$0xff]
    %v332 = vld [vmem:[%s3 + $0x48] sm:$0xff]
    %v333 = vld [vmem:[%s3 + $0x50] sm:$0xff]
    %v334 = vld [vmem:[%s3 + $0x58] sm:$0xff]
    %v335 = vld [vmem:[%s3 + $0x60] sm:$0xff]
    %v336 = vld [vmem:[%s3 + $0x68] sm:$0xff]
    %v337 = vld [vmem:[%s3 + $0x70] sm:$0xff]
    %v338 = vld [vmem:[%s3 + $0x78] sm:$0xff]
    %v339 = vadd.f32 %v307, %v323
    %v340 = vadd.f32 %v308, %v324
    %v341 = vadd.f32 %v309, %v325
    %v342 = vadd.f32 %v310, %v326
    %v343 = vadd.f32 %v311, %v327
    %v344 = vadd.f32 %v312, %v328
    %v345 = vadd.f32 %v313, %v329
    %v346 = vadd.f32 %v314, %v330
    %v347 = vadd.f32 %v315, %v331
    %v348 = vadd.f32 %v316, %v332
    %v349 = vadd.f32 %v317, %v333
    %v350 = vadd.f32 %v318, %v334
    %v351 = vadd.f32 %v319, %v335
    %v352 = vadd.f32 %v320, %v336
    %v353 = vadd.f32 %v321, %v337
    %v354 = vadd.f32 %v322, %v338
    %355 = vst.msk [vmem:[%s4] sm:$0xff] %vm127, %v339
    %356 = vst.msk [vmem:[%s4 + $0x8] sm:$0xff] %vm127, %v340
    %357 = vst.msk [vmem:[%s4 + $0x10] sm:$0xff] %vm127, %v341
    %358 = vst.msk [vmem:[%s4 + $0x18] sm:$0xff] %vm127, %v342
    %359 = vst.msk [vmem:[%s4 + $0x20] sm:$0xff] %vm127, %v343
    %360 = vst.msk [vmem:[%s4 + $0x28] sm:$0xff] %vm127, %v344
    %361 = vst.msk [vmem:[%s4 + $0x30] sm:$0xff] %vm127, %v345
    %362 = vst.msk [vmem:[%s4 + $0x38] sm:$0xff] %vm127, %v346
    %363 = vst.msk [vmem:[%s4 + $0x40] sm:$0xff] %vm127, %v347
    %364 = vst.msk [vmem:[%s4 + $0x48] sm:$0xff] %vm127, %v348
    %365 = vst.msk [vmem:[%s4 + $0x50] sm:$0xff] %vm127, %v349
    %366 = vst.msk [vmem:[%s4 + $0x58] sm:$0xff] %vm127, %v350
    %367 = vst.msk [vmem:[%s4 + $0x60] sm:$0xff] %vm127, %v351
    %368 = vst.msk [vmem:[%s4 + $0x68] sm:$0xff] %vm127, %v352
    %369 = vst.msk [vmem:[%s4 + $0x70] sm:$0xff] %vm127, %v353
    %370 = vst.msk [vmem:[%s4 + $0x78] sm:$0xff] %vm127, %v354
  $region25: #{spatial_transformer.15} parent=0 // pred_fallthru
    _
  // Predicated region
  $region26: #{spatial_transformer.15} parent=0 // pred_check
    _
  $region27: #{spatial_transformer.15} parent=0 // pred_check_branch
    %372 = sbr.rel (0) target = $region29
  $region28: #{spatial_transformer.15} parent=0 // pred_region
    _
  $region29: #{spatial_transformer.15} parent=0 // pred_fallthru
    _
  // Predicated region
  $region30: #{spatial_transformer.15} parent=0 // pred_check
    _
  $region31: #{spatial_transformer.15} parent=0 // pred_check_branch
    %374 = sbr.rel (0) target = $region33
  $region32: #{spatial_transformer.15} parent=0 // pred_region
    _
  $region33: #{spatial_transformer.15} parent=0 // pred_fallthru
    _

// kernel: spatial_transformer.20
$region0: #{spatial_transformer.20}
  #allocation0 [shape = 'u32[]', space=smem, size = 0x4, offset = 0x4, fixed_abs, tag = 'smem constant byte address 0x4 - core index']
  #allocation1 [shape = 'u32[144,128]{1,0:T(1,128)}', space=vmem, size = 0x12000, scoped, tag = 'internal scratch']
  #allocation2 [shape = 'f32[128,32]{1,0:T(8,128)}', space=vmem, size = 0x10000, scoped, tag = 'scratch operand']
  %s0 = inlined_call_operand.vmem [shape: bf16[128,128], index: 0, kind: input, shape index: {}]
  %s1 = inlined_call_operand.vmem [shape: bf16[128,32], index: 1, kind: input, shape index: {}]
  %s2 = inlined_call_operand.vmem [shape: f32[1,32], index: 2, kind: input, shape index: {}]
  %s3 = inlined_call_operand.vmem [shape: f32[128,32], index: 3, kind: input, shape index: {}]
  %s4 = inlined_call_operand.vmem [shape: f32[128,32], index: 4, kind: output, shape index: {}]
  %s5 = sld [smem:[#allocation0]]
  $region34: #{spatial_transformer.20} parent=0
    _
  %s7 = ssub.s32 1, %s5
  %s8 = scalar_select 0, %s7, %s5
  // Predicated region
  $region2: #{spatial_transformer.20} parent=0 // pred_check
    _
  $region3: #{spatial_transformer.20} parent=0 // pred_check_branch
    %10 = sbr.rel (0) target = $region5
  $region4: #{spatial_transformer.20} parent=0 // pred_region
    _
  $region5: #{spatial_transformer.20} parent=0 // pred_fallthru
    _
  // Predicated region
  $region6: #{spatial_transformer.20} parent=0 // pred_check
    _
  $region7: #{spatial_transformer.20} parent=0 // pred_check_branch
    %12 = sbr.rel (0) target = $region9
  $region8: #{spatial_transformer.20} parent=0 // pred_region
    _
  $region9: #{spatial_transformer.20} parent=0 // pred_fallthru
    _
  // Predicated region
  $region10: #{spatial_transformer.20} parent=0 // pred_check
    _
  $region11: #{spatial_transformer.20} parent=0 // pred_check_branch
    %14 = sbr.rel (0) target = $region13
  $region12: #{spatial_transformer.20} parent=0 // pred_region
    _
  $region13: #{spatial_transformer.20} parent=0 // pred_fallthru
    _
  // Predicated region
  $region14: #{spatial_transformer.20} parent=0 // pred_check
    _
  $region15: #{spatial_transformer.20} parent=0 // pred_check_branch
    %16 = sbr.rel (0) target = $region17
  $region16: #{spatial_transformer.20} parent=0 // pred_region
    _
  $region17: #{spatial_transformer.20} parent=0 // pred_fallthru
    _
  %p18 = scmp.eq.s32.totalorder 0, 0
  // Predicated region
  $region18: #{spatial_transformer.20} parent=0 // pred_check
    %p19 = pneg %p18
  $region19: #{spatial_transformer.20} parent=0 // pred_check_branch
    %21 = sbr.rel (%p19) target = $region21
  $region20: #{spatial_transformer.20} parent=0 // pred_region
    %vm22 = vcmask 261120
    %23 = vst.msk [vmem:[#allocation2] sm:$0xff] %vm22, 0.0
    %24 = vst.msk [vmem:[#allocation2 + $0x8] sm:$0xff] %vm22, 0.0
    %25 = vst.msk [vmem:[#allocation2 + $0x10] sm:$0xff] %vm22, 0.0
    %26 = vst.msk [vmem:[#allocation2 + $0x18] sm:$0xff] %vm22, 0.0
    %27 = vst.msk [vmem:[#allocation2 + $0x20] sm:$0xff] %vm22, 0.0
    %28 = vst.msk [vmem:[#allocation2 + $0x28] sm:$0xff] %vm22, 0.0
    %29 = vst.msk [vmem:[#allocation2 + $0x30] sm:$0xff] %vm22, 0.0
    %30 = vst.msk [vmem:[#allocation2 + $0x38] sm:$0xff] %vm22, 0.0
    %31 = vst.msk [vmem:[#allocation2 + $0x40] sm:$0xff] %vm22, 0.0
    %32 = vst.msk [vmem:[#allocation2 + $0x48] sm:$0xff] %vm22, 0.0
    %33 = vst.msk [vmem:[#allocation2 + $0x50] sm:$0xff] %vm22, 0.0
    %34 = vst.msk [vmem:[#allocation2 + $0x58] sm:$0xff] %vm22, 0.0
    %35 = vst.msk [vmem:[#allocation2 + $0x60] sm:$0xff] %vm22, 0.0
    %36 = vst.msk [vmem:[#allocation2 + $0x68] sm:$0xff] %vm22, 0.0
    %37 = vst.msk [vmem:[#allocation2 + $0x70] sm:$0xff] %vm22, 0.0
    %38 = vst.msk [vmem:[#allocation2 + $0x78] sm:$0xff] %vm22, 0.0
  $region21: #{spatial_transformer.20} parent=0 // pred_fallthru
    _
  %v39 = vld [vmem:[#allocation2] sm:$0xff]
  %v40 = vld [vmem:[#allocation2 + $0x8] sm:$0xff]
  %v41 = vld [vmem:[#allocation2 + $0x10] sm:$0xff]
  %v42 = vld [vmem:[#allocation2 + $0x18] sm:$0xff]
  %v43 = vld [vmem:[#allocation2 + $0x20] sm:$0xff]
  %v44 = vld [vmem:[#allocation2 + $0x28] sm:$0xff]
  %v45 = vld [vmem:[#allocation2 + $0x30] sm:$0xff]
  %v46 = vld [vmem:[#allocation2 + $0x38] sm:$0xff]
  %v47 = vld [vmem:[#allocation2 + $0x40] sm:$0xff]
  %v48 = vld [vmem:[#allocation2 + $0x48] sm:$0xff]
  %v49 = vld [vmem:[#allocation2 + $0x50] sm:$0xff]
  %v50 = vld [vmem:[#allocation2 + $0x58] sm:$0xff]
  %v51 = vld [vmem:[#allocation2 + $0x60] sm:$0xff]
  %v52 = vld [vmem:[#allocation2 + $0x68] sm:$0xff]
  %v53 = vld [vmem:[#allocation2 + $0x70] sm:$0xff]
  %v54 = vld [vmem:[#allocation2 + $0x78] sm:$0xff]
  %v55 = vld [vmem:[%s0] sm:$0xf]
  %v56 = vld [vmem:[%s0 + $0x4] sm:$0xf]
  %v57 = vld [vmem:[%s0 + $0x8] sm:$0xf]
  %v58 = vld [vmem:[%s0 + $0xc] sm:$0xf]
  %v59 = vld [vmem:[%s0 + $0x10] sm:$0xf]
  %v60 = vld [vmem:[%s0 + $0x14] sm:$0xf]
  %v61 = vld [vmem:[%s0 + $0x18] sm:$0xf]
  %v62 = vld [vmem:[%s0 + $0x1c] sm:$0xf]
  %v63 = vld [vmem:[%s0 + $0x20] sm:$0xf]
  %v64 = vld [vmem:[%s0 + $0x24] sm:$0xf]
  %v65 = vld [vmem:[%s0 + $0x28] sm:$0xf]
  %v66 = vld [vmem:[%s0 + $0x2c] sm:$0xf]
  %v67 = vld [vmem:[%s0 + $0x30] sm:$0xf]
  %v68 = vld [vmem:[%s0 + $0x34] sm:$0xf]
  %v69 = vld [vmem:[%s0 + $0x38] sm:$0xf]
  %v70 = vld [vmem:[%s0 + $0x3c] sm:$0xf]
  %v71 = vld [vmem:[%s1] sm:$0xf]
  %v72 = vld [vmem:[%s1 + $0x4] sm:$0xf]
  %v73 = vld [vmem:[%s1 + $0x8] sm:$0xf]
  %v74 = vld [vmem:[%s1 + $0xc] sm:$0xf]
  %v75 = vld [vmem:[%s1 + $0x10] sm:$0xf]
  %v76 = vld [vmem:[%s1 + $0x14] sm:$0xf]
  %v77 = vld [vmem:[%s1 + $0x18] sm:$0xf]
  %v78 = vld [vmem:[%s1 + $0x1c] sm:$0xf]
  %v79 = vld [vmem:[%s1 + $0x20] sm:$0xf]
  %v80 = vld [vmem:[%s1 + $0x24] sm:$0xf]
  %v81 = vld [vmem:[%s1 + $0x28] sm:$0xf]
  %v82 = vld [vmem:[%s1 + $0x2c] sm:$0xf]
  %v83 = vld [vmem:[%s1 + $0x30] sm:$0xf]
  %v84 = vld [vmem:[%s1 + $0x34] sm:$0xf]
  %v85 = vld [vmem:[%s1 + $0x38] sm:$0xf]
  %v86 = vld [vmem:[%s1 + $0x3c] sm:$0xf]
  %v103 = vunpack.c.l.b16 %v55
  %v104 = vunpack.c.l.b16 %v56
  %v105 = vunpack.c.l.b16 %v57
  %v106 = vunpack.c.l.b16 %v58
  %v107 = vunpack.c.l.b16 %v59
  %v108 = vunpack.c.l.b16 %v60
  %v109 = vunpack.c.l.b16 %v61
  %v110 = vunpack.c.l.b16 %v62
  %v111 = vunpack.c.l.b16 %v63
  %v112 = vunpack.c.l.b16 %v64
  %v113 = vunpack.c.l.b16 %v65
  %v114 = vunpack.c.l.b16 %v66
  %v115 = vunpack.c.l.b16 %v67
  %v116 = vunpack.c.l.b16 %v68
  %v117 = vunpack.c.l.b16 %v69
  %v118 = vunpack.c.l.b16 %v70
  %v119 = vpack.c.b16 %v104, %v103
  %v120 = vpack.c.b16 %v106, %v105
  %v121 = vpack.c.b16 %v108, %v107
  %v122 = vpack.c.b16 %v110, %v109
  %v123 = vpack.c.b16 %v112, %v111
  %v124 = vpack.c.b16 %v114, %v113
  %v125 = vpack.c.b16 %v116, %v115
  %v126 = vpack.c.b16 %v118, %v117
  %v151 = vunpack.c.l.b16 %v71
  %v152 = vunpack.c.l.b16 %v72
  %v153 = vunpack.c.l.b16 %v73
  %v154 = vunpack.c.l.b16 %v74
  %v155 = vunpack.c.l.b16 %v75
  %v156 = vunpack.c.l.b16 %v76
  %v157 = vunpack.c.l.b16 %v77
  %v158 = vunpack.c.l.b16 %v78
  %v159 = vunpack.c.l.b16 %v79
  %v160 = vunpack.c.l.b16 %v80
  %v161 = vunpack.c.l.b16 %v81
  %v162 = vunpack.c.l.b16 %v82
  %v163 = vunpack.c.l.b16 %v83
  %v164 = vunpack.c.l.b16 %v84
  %v165 = vunpack.c.l.b16 %v85
  %v166 = vunpack.c.l.b16 %v86
  %v167 = vpack.c.b16 %v152, %v151
  %v168 = vpack.c.b16 %v154, %v153
  %v169 = vpack.c.b16 %v156, %v155
  %v170 = vpack.c.b16 %v158, %v157
  %v171 = vpack.c.b16 %v160, %v159
  %v172 = vpack.c.b16 %v162, %v161
  %v173 = vpack.c.b16 %v164, %v163
  %v174 = vpack.c.b16 %v166, %v165
  %183 = vmatprep.subr.bf16.mxu0 0
  %184 = vmatpush1.bf16.msra.mxu0 %v174
  %185 = vmatprep.subr.bf16.mxu0 0
  %186 = vmatpush1.bf16.msra.mxu0 %v173
  %187 = vmatprep.subr.bf16.mxu0 0
  %188 = vmatpush1.bf16.msra.mxu0 %v172
  %189 = vmatprep.subr.bf16.mxu0 0
  %190 = vmatpush1.bf16.msra.mxu0 %v171
  %191 = vmatprep.subr.bf16.mxu0 0
  %192 = vmatpush1.bf16.msra.mxu0 %v170
  %193 = vmatprep.subr.bf16.mxu0 0
  %194 = vmatpush1.bf16.msra.mxu0 %v169
  %195 = vmatprep.subr.bf16.mxu0 0
  %196 = vmatpush1.bf16.msra.mxu0 %v168
  %197 = vmatprep.subr.bf16.mxu0 0
  %198 = vmatpush1.bf16.msra.mxu0 %v167
  %199 = vmatprep.subr.bf16.mxu0 0
  %200 = vmatpush2.bf16.msra.mxu0 0
  %201 = vmatprep.subr.bf16.mxu0 0
  %202 = vmatpush2.bf16.msra.mxu0 0
  %203 = vmatprep.subr.bf16.mxu0 0
  %204 = vmatpush2.bf16.msra.mxu0 0
  %205 = vmatprep.subr.bf16.mxu0 0
  %206 = vmatpush2.bf16.msra.mxu0 0
  %207 = vmatprep.subr.bf16.mxu0 0
  %208 = vmatpush2.bf16.msra.mxu0 0
  %209 = vmatprep.subr.bf16.mxu0 0
  %210 = vmatpush2.bf16.msra.mxu0 0
  %211 = vmatprep.subr.bf16.mxu0 0
  %212 = vmatpush2.bf16.msra.mxu0 0
  %213 = vmatprep.subr.bf16.mxu0 0
  %214 = vmatpush2.bf16.msra.mxu0 0
  %215 = vmatprep.mubr.bf16.mxu0 0
  %216 = vmatmul.mubr.bf16.gmra.mxu0 %v119
  %v217 = vpop.f32.mrf.mxu0
  %v218 = vadd.f32 0.0, %v217
  %v219 = vpop.f32.mrf.mxu0
  %v220 = vpop.f32.mrf.mxu0
  %v221 = vadd.f32 0.0, %v220
  %v222 = vpop.f32.mrf.mxu0
  %223 = vmatprep.mubr.bf16.mxu0 0
  %224 = vmatmul.mubr.bf16.gmra.mxu0 %v120
  %v225 = vpop.f32.mrf.mxu0
  %v226 = vadd.f32 0.0, %v225
  %v227 = vpop.f32.mrf.mxu0
  %v228 = vpop.f32.mrf.mxu0
  %v229 = vadd.f32 0.0, %v228
  %v230 = vpop.f32.mrf.mxu0
  %231 = vmatprep.mubr.bf16.mxu0 0
  %232 = vmatmul.mubr.bf16.gmra.mxu0 %v121
  %v233 = vpop.f32.mrf.mxu0
  %v234 = vadd.f32 0.0, %v233
  %v235 = vpop.f32.mrf.mxu0
  %v236 = vpop.f32.mrf.mxu0
  %v237 = vadd.f32 0.0, %v236
  %v238 = vpop.f32.mrf.mxu0
  %239 = vmatprep.mubr.bf16.mxu0 0
  %240 = vmatmul.mubr.bf16.gmra.mxu0 %v122
  %v241 = vpop.f32.mrf.mxu0
  %v242 = vadd.f32 0.0, %v241
  %v243 = vpop.f32.mrf.mxu0
  %v244 = vpop.f32.mrf.mxu0
  %v245 = vadd.f32 0.0, %v244
  %v246 = vpop.f32.mrf.mxu0
  %247 = vmatprep.mubr.bf16.mxu0 0
  %248 = vmatmul.mubr.bf16.gmra.mxu0 %v123
  %v249 = vpop.f32.mrf.mxu0
  %v250 = vadd.f32 0.0, %v249
  %v251 = vpop.f32.mrf.mxu0
  %v252 = vpop.f32.mrf.mxu0
  %v253 = vadd.f32 0.0, %v252
  %v254 = vpop.f32.mrf.mxu0
  %255 = vmatprep.mubr.bf16.mxu0 0
  %256 = vmatmul.mubr.bf16.gmra.mxu0 %v124
  %v257 = vpop.f32.mrf.mxu0
  %v258 = vadd.f32 0.0, %v257
  %v259 = vpop.f32.mrf.mxu0
  %v260 = vpop.f32.mrf.mxu0
  %v261 = vadd.f32 0.0, %v260
  %v262 = vpop.f32.mrf.mxu0
  %263 = vmatprep.mubr.bf16.mxu0 0
  %264 = vmatmul.mubr.bf16.gmra.mxu0 %v125
  %v265 = vpop.f32.mrf.mxu0
  %v266 = vadd.f32 0.0, %v265
  %v267 = vpop.f32.mrf.mxu0
  %v268 = vpop.f32.mrf.mxu0
  %v269 = vadd.f32 0.0, %v268
  %v270 = vpop.f32.mrf.mxu0
  %271 = vmatprep.mubr.bf16.mxu0 0
  %272 = vmatmul.mubr.bf16.gmra.mxu0 %v126
  %v273 = vpop.f32.mrf.mxu0
  %v274 = vadd.f32 0.0, %v273
  %v275 = vpop.f32.mrf.mxu0
  %v276 = vpop.f32.mrf.mxu0
  %v277 = vadd.f32 0.0, %v276
  %v278 = vpop.f32.mrf.mxu0
  %279 = vdwg.mxu0
  %v280 = vadd.f32 %v39, %v218
  %v281 = vadd.f32 %v40, %v221
  %v282 = vadd.f32 %v41, %v226
  %v283 = vadd.f32 %v42, %v229
  %v284 = vadd.f32 %v43, %v234
  %v285 = vadd.f32 %v44, %v237
  %v286 = vadd.f32 %v45, %v242
  %v287 = vadd.f32 %v46, %v245
  %v288 = vadd.f32 %v47, %v250
  %v289 = vadd.f32 %v48, %v253
  %v290 = vadd.f32 %v49, %v258
  %v291 = vadd.f32 %v50, %v261
  %v292 = vadd.f32 %v51, %v266
  %v293 = vadd.f32 %v52, %v269
  %v294 = vadd.f32 %v53, %v274
  %v295 = vadd.f32 %v54, %v277
  %vm296 = vcmask 261120
  %297 = vst.msk [vmem:[#allocation2] sm:$0xff] %vm296, %v280
  %298 = vst.msk [vmem:[#allocation2 + $0x8] sm:$0xff] %vm296, %v281
  %299 = vst.msk [vmem:[#allocation2 + $0x10] sm:$0xff] %vm296, %v282
  %300 = vst.msk [vmem:[#allocation2 + $0x18] sm:$0xff] %vm296, %v283
  %301 = vst.msk [vmem:[#allocation2 + $0x20] sm:$0xff] %vm296, %v284
  %302 = vst.msk [vmem:[#allocation2 + $0x28] sm:$0xff] %vm296, %v285
  %303 = vst.msk [vmem:[#allocation2 + $0x30] sm:$0xff] %vm296, %v286
  %304 = vst.msk [vmem:[#allocation2 + $0x38] sm:$0xff] %vm296, %v287
  %305 = vst.msk [vmem:[#allocation2 + $0x40] sm:$0xff] %vm296, %v288
  %306 = vst.msk [vmem:[#allocation2 + $0x48] sm:$0xff] %vm296, %v289
  %307 = vst.msk [vmem:[#allocation2 + $0x50] sm:$0xff] %vm296, %v290
  %308 = vst.msk [vmem:[#allocation2 + $0x58] sm:$0xff] %vm296, %v291
  %309 = vst.msk [vmem:[#allocation2 + $0x60] sm:$0xff] %vm296, %v292
  %310 = vst.msk [vmem:[#allocation2 + $0x68] sm:$0xff] %vm296, %v293
  %311 = vst.msk [vmem:[#allocation2 + $0x70] sm:$0xff] %vm296, %v294
  %312 = vst.msk [vmem:[#allocation2 + $0x78] sm:$0xff] %vm296, %v295
  // Predicated region
  $region22: #{spatial_transformer.20} parent=0 // pred_check
    %p313 = pneg %p18
  $region23: #{spatial_transformer.20} parent=0 // pred_check_branch
    %315 = sbr.rel (%p313) target = $region25
  $region24: #{spatial_transformer.20} parent=0 // pred_region
    %v316 = vld [vmem:[#allocation2] sm:$0xff]
    %v317 = vld [vmem:[#allocation2 + $0x8] sm:$0xff]
    %v318 = vld [vmem:[#allocation2 + $0x10] sm:$0xff]
    %v319 = vld [vmem:[#allocation2 + $0x18] sm:$0xff]
    %v320 = vld [vmem:[#allocation2 + $0x20] sm:$0xff]
    %v321 = vld [vmem:[#allocation2 + $0x28] sm:$0xff]
    %v322 = vld [vmem:[#allocation2 + $0x30] sm:$0xff]
    %v323 = vld [vmem:[#allocation2 + $0x38] sm:$0xff]
    %v324 = vld [vmem:[#allocation2 + $0x40] sm:$0xff]
    %v325 = vld [vmem:[#allocation2 + $0x48] sm:$0xff]
    %v326 = vld [vmem:[#allocation2 + $0x50] sm:$0xff]
    %v327 = vld [vmem:[#allocation2 + $0x58] sm:$0xff]
    %v328 = vld [vmem:[#allocation2 + $0x60] sm:$0xff]
    %v329 = vld [vmem:[#allocation2 + $0x68] sm:$0xff]
    %v330 = vld [vmem:[#allocation2 + $0x70] sm:$0xff]
    %v331 = vld [vmem:[#allocation2 + $0x78] sm:$0xff]
    %v332 = vld [vmem:[%s2] sm:$0x1]
    %v334 = vlaneseq
    %v335 = vshrl.u32 %v334, 7
    %v336 = vsub.s32 0, %v335
    %v337 = vrot.slane %v332, %v336
    %v339 = vadd.f32 %v316, %v337
    %v340 = vadd.f32 %v317, %v337
    %v341 = vadd.f32 %v318, %v337
    %v342 = vadd.f32 %v319, %v337
    %v343 = vadd.f32 %v320, %v337
    %v344 = vadd.f32 %v321, %v337
    %v345 = vadd.f32 %v322, %v337
    %v346 = vadd.f32 %v323, %v337
    %v347 = vadd.f32 %v324, %v337
    %v348 = vadd.f32 %v325, %v337
    %v349 = vadd.f32 %v326, %v337
    %v350 = vadd.f32 %v327, %v337
    %v351 = vadd.f32 %v328, %v337
    %v352 = vadd.f32 %v329, %v337
    %v353 = vadd.f32 %v330, %v337
    %v354 = vadd.f32 %v331, %v337
    %v355 = vld [vmem:[%s3] sm:$0xff]
    %v356 = vld [vmem:[%s3 + $0x8] sm:$0xff]
    %v357 = vld [vmem:[%s3 + $0x10] sm:$0xff]
    %v358 = vld [vmem:[%s3 + $0x18] sm:$0xff]
    %v359 = vld [vmem:[%s3 + $0x20] sm:$0xff]
    %v360 = vld [vmem:[%s3 + $0x28] sm:$0xff]
    %v361 = vld [vmem:[%s3 + $0x30] sm:$0xff]
    %v362 = vld [vmem:[%s3 + $0x38] sm:$0xff]
    %v363 = vld [vmem:[%s3 + $0x40] sm:$0xff]
    %v364 = vld [vmem:[%s3 + $0x48] sm:$0xff]
    %v365 = vld [vmem:[%s3 + $0x50] sm:$0xff]
    %v366 = vld [vmem:[%s3 + $0x58] sm:$0xff]
    %v367 = vld [vmem:[%s3 + $0x60] sm:$0xff]
    %v368 = vld [vmem:[%s3 + $0x68] sm:$0xff]
    %v369 = vld [vmem:[%s3 + $0x70] sm:$0xff]
    %v370 = vld [vmem:[%s3 + $0x78] sm:$0xff]
    %v371 = vadd.f32 %v339, %v355
    %v372 = vadd.f32 %v340, %v356
    %v373 = vadd.f32 %v341, %v357
    %v374 = vadd.f32 %v342, %v358
    %v375 = vadd.f32 %v343, %v359
    %v376 = vadd.f32 %v344, %v360
    %v377 = vadd.f32 %v345, %v361
    %v378 = vadd.f32 %v346, %v362
    %v379 = vadd.f32 %v347, %v363
    %v380 = vadd.f32 %v348, %v364
    %v381 = vadd.f32 %v349, %v365
    %v382 = vadd.f32 %v350, %v366
    %v383 = vadd.f32 %v351, %v367
    %v384 = vadd.f32 %v352, %v368
    %v385 = vadd.f32 %v353, %v369
    %v386 = vadd.f32 %v354, %v370
    %387 = vst.msk [vmem:[%s4] sm:$0xff] %vm296, %v371
    %388 = vst.msk [vmem:[%s4 + $0x8] sm:$0xff] %vm296, %v372
    %389 = vst.msk [vmem:[%s4 + $0x10] sm:$0xff] %vm296, %v373
    %390 = vst.msk [vmem:[%s4 + $0x18] sm:$0xff] %vm296, %v374
    %391 = vst.msk [vmem:[%s4 + $0x20] sm:$0xff] %vm296, %v375
    %392 = vst.msk [vmem:[%s4 + $0x28] sm:$0xff] %vm296, %v376
    %393 = vst.msk [vmem:[%s4 + $0x30] sm:$0xff] %vm296, %v377
    %394 = vst.msk [vmem:[%s4 + $0x38] sm:$0xff] %vm296, %v378
    %395 = vst.msk [vmem:[%s4 + $0x40] sm:$0xff] %vm296, %v379
    %396 = vst.msk [vmem:[%s4 + $0x48] sm:$0xff] %vm296, %v380
    %397 = vst.msk [vmem:[%s4 + $0x50] sm:$0xff] %vm296, %v381
    %398 = vst.msk [vmem:[%s4 + $0x58] sm:$0xff] %vm296, %v382
    %399 = vst.msk [vmem:[%s4 + $0x60] sm:$0xff] %vm296, %v383
    %400 = vst.msk [vmem:[%s4 + $0x68] sm:$0xff] %vm296, %v384
    %401 = vst.msk [vmem:[%s4 + $0x70] sm:$0xff] %vm296, %v385
    %402 = vst.msk [vmem:[%s4 + $0x78] sm:$0xff] %vm296, %v386
  $region25: #{spatial_transformer.20} parent=0 // pred_fallthru
    _
  // Predicated region
  $region26: #{spatial_transformer.20} parent=0 // pred_check
    _
  $region27: #{spatial_transformer.20} parent=0 // pred_check_branch
    %404 = sbr.rel (0) target = $region29
  $region28: #{spatial_transformer.20} parent=0 // pred_region
    _
  $region29: #{spatial_transformer.20} parent=0 // pred_fallthru
    _
  // Predicated region
  $region30: #{spatial_transformer.20} parent=0 // pred_check
    _
  $region31: #{spatial_transformer.20} parent=0 // pred_check_branch
    %406 = sbr.rel (0) target = $region33
  $region32: #{spatial_transformer.20} parent=0 // pred_region
    _
  $region33: #{spatial_transformer.20} parent=0 // pred_fallthru
    _

// kernel: spatial_transformer.19
$region0: #{spatial_transformer.19}
  #allocation0 [shape = 'u32[]', space=smem, size = 0x4, offset = 0x4, fixed_abs, tag = 'smem constant byte address 0x4 - core index']
  #allocation1 [shape = 'u32[144,128]{1,0:T(1,128)}', space=vmem, size = 0x12000, scoped, tag = 'internal scratch']
  %s0 = inlined_call_operand.vmem [shape: f32[128,32], index: 0, kind: input, shape index: {}]
  %s1 = inlined_call_operand.vmem [shape: f32[1,32], index: 1, kind: input, shape index: {}]
  %s2 = inlined_call_operand.vmem [shape: f32[1,32], index: 2, kind: input, shape index: {}]
  %s3 = inlined_call_operand.vmem [shape: bf16[32,256], index: 3, kind: input, shape index: {}, may-alias: {3,4}]
  %s4 = inlined_call_operand.vmem [shape: bf16[32,256], index: 4, kind: input, shape index: {}, may-alias: {3,4}]
  %s5 = inlined_call_operand.vmem [shape: f32[1,256], index: 5, kind: input, shape index: {}, may-alias: {5,6}]
  %s6 = inlined_call_operand.vmem [shape: f32[1,256], index: 6, kind: input, shape index: {}, may-alias: {5,6}]
  %s7 = inlined_call_operand.vmem [shape: bf16[128,128], index: 7, kind: output, shape index: {}]
  %s8 = sld [smem:[#allocation0]]
  $region120: #{spatial_transformer.19} parent=0
    _
  %s10 = ssub.s32 1, %s8
  %s11 = scalar_select 0, %s10, %s8
  $region1: #{spatial_transformer.19} parent=0
    #allocation2 [shape = 'u8[8192]{0}', space=vmem, size = 0x2000, scoped, tag = 'input window, operand 3, single buffered']
    #allocation3 [shape = 'u8[8192]{0}', space=vmem, size = 0x2000, scoped, tag = 'input window, operand 4, single buffered']
    // Predicated region
    $region2: #{spatial_transformer.19} parent=1 // pred_check
      _
    $region3: #{spatial_transformer.19} parent=1 // pred_check_branch
      %13 = sbr.rel (0) target = $region5
    $region4: #{spatial_transformer.19} parent=1 // pred_region
      _
    $region5: #{spatial_transformer.19} parent=1 // pred_fallthru
      _
    // Predicated region
    $region6: #{spatial_transformer.19} parent=1 // pred_check
      _
    $region7: #{spatial_transformer.19} parent=1 // pred_check_branch
      %15 = sbr.rel (0) target = $region9
    $region8: #{spatial_transformer.19} parent=1 // pred_region
      _
    $region9: #{spatial_transformer.19} parent=1 // pred_fallthru
      _
    // Predicated region
    $region10: #{spatial_transformer.19} parent=1 // pred_check
      _
    $region11: #{spatial_transformer.19} parent=1 // pred_check_branch
      %17 = sbr.rel (0) target = $region13
    $region12: #{spatial_transformer.19} parent=1 // pred_region
      _
    $region13: #{spatial_transformer.19} parent=1 // pred_fallthru
      _
    // Predicated region
    $region14: #{spatial_transformer.19} parent=1 // pred_check
      _
    $region15: #{spatial_transformer.19} parent=1 // pred_check_branch
      %19 = sbr.rel (0) target = $region17
    $region16: #{spatial_transformer.19} parent=1 // pred_region
      // Predicated region
      $region18: #{spatial_transformer.19} parent=16 // pred_check
        _
      $region19: #{spatial_transformer.19} parent=16 // pred_check_branch
        %21 = sbr.rel (0) target = $region21
      $region20: #{spatial_transformer.19} parent=16 // pred_region
        // Predicated region
        $region22: #{spatial_transformer.19} parent=20 // pred_check
          _
        $region23: #{spatial_transformer.19} parent=20 // pred_check_branch
          %23 = sbr.rel target = $region25
        $region24: #{spatial_transformer.19} parent=20 // pred_region
          // Predicated region
          $region37: #{spatial_transformer.19} parent=24 // pred_check
            _
          $region38: #{spatial_transformer.19} parent=24 // pred_check_branch
            %45 = sbr.rel (0) target = $region40
          $region39: #{spatial_transformer.19} parent=24 // pred_region
            loop: start=0, step=1, limit=1
            $region41: #{spatial_transformer.19} parent=39 // loop_pre_header
              _
            $region42: #{spatial_transformer.19} parent=39 // loop_header
              %s47 = sphi 0, %s51
              %p48 = scmp.ge.s32.totalorder %s47, 1
              %s52 = sphi %s3, %s3
              %s53 = sphi [#allocation2], [#allocation2]
            $region43: #{spatial_transformer.19} parent=39 // loop_header_branch
              %50 = sbr.rel (%p48) target = $region47
            $region44: #{spatial_transformer.19} parent=39 // loop_body
              _
            $region45: #{spatial_transformer.19} parent=39 // loop_footer
              %s51 = sadd.s32 1, %s47
            $region46: #{spatial_transformer.19} parent=39 // loop_footer_branch
              %46 = sbr.rel target = $region42
            $region47: #{spatial_transformer.19} parent=39 // loop_exit
              _
            %s55 = ssub.s32 16, 1
            loop: start=0, step=1, limit=1
            $region48: #{spatial_transformer.19} parent=39 // loop_pre_header
              _
            $region49: #{spatial_transformer.19} parent=39 // loop_header
              %s57 = sphi 0, %s61
              %p58 = scmp.ge.s32.totalorder %s57, 1
              %s62 = sphi %s3, %s3
              %s63 = sphi [#allocation2], [#allocation2]
            $region50: #{spatial_transformer.19} parent=39 // loop_header_branch
              %60 = sbr.rel (%p58) target = $region54
            $region51: #{spatial_transformer.19} parent=39 // loop_body
              %v64 = vld [vmem:[%s62] sm:%s55]
              %65 = vst [vmem:[%s63] sm:%s55] %v64
              %v66 = vld [vmem:[%s62 + $0x8] sm:%s55]
              %67 = vst [vmem:[%s63 + $0x4] sm:%s55] %v66
              %v68 = vld [vmem:[%s62 + $0x10] sm:%s55]
              %69 = vst [vmem:[%s63 + $0x8] sm:%s55] %v68
              %v70 = vld [vmem:[%s62 + $0x18] sm:%s55]
              %71 = vst [vmem:[%s63 + $0xc] sm:%s55] %v70
            $region52: #{spatial_transformer.19} parent=39 // loop_footer
              %s61 = sadd.s32 1, %s57
            $region53: #{spatial_transformer.19} parent=39 // loop_footer_branch
              %56 = sbr.rel target = $region49
            $region54: #{spatial_transformer.19} parent=39 // loop_exit
              _
          $region40: #{spatial_transformer.19} parent=24 // pred_fallthru
            _
        $region25: #{spatial_transformer.19} parent=20 // pred_fallthru
          _
        // Predicated region
        $region26: #{spatial_transformer.19} parent=20 // pred_check
          _
        $region27: #{spatial_transformer.19} parent=20 // pred_check_branch
          %25 = sbr.rel (0) target = $region29
        $region28: #{spatial_transformer.19} parent=20 // pred_region
          %s27 = ssub.s32 16, 1
          loop: start=0, step=1, limit=1
          $region30: #{spatial_transformer.19} parent=28 // loop_pre_header
            _
          $region31: #{spatial_transformer.19} parent=28 // loop_header
            %s29 = sphi 0, %s33
            %p30 = scmp.ge.s32.totalorder %s29, 1
            %s34 = sphi %s3, %s3
            %s35 = sphi [#allocation2], [#allocation2]
          $region32: #{spatial_transformer.19} parent=28 // loop_header_branch
            %32 = sbr.rel (%p30) target = $region36
          $region33: #{spatial_transformer.19} parent=28 // loop_body
            %v36 = vld [vmem:[%s34] sm:%s27]
            %37 = vst [vmem:[%s35] sm:%s27] %v36
            %v38 = vld [vmem:[%s34 + $0x8] sm:%s27]
            %39 = vst [vmem:[%s35 + $0x4] sm:%s27] %v38
            %v40 = vld [vmem:[%s34 + $0x10] sm:%s27]
            %41 = vst [vmem:[%s35 + $0x8] sm:%s27] %v40
            %v42 = vld [vmem:[%s34 + $0x18] sm:%s27]
            %43 = vst [vmem:[%s35 + $0xc] sm:%s27] %v42
          $region34: #{spatial_transformer.19} parent=28 // loop_footer
            %s33 = sadd.s32 1, %s29
          $region35: #{spatial_transformer.19} parent=28 // loop_footer_branch
            %28 = sbr.rel target = $region31
          $region36: #{spatial_transformer.19} parent=28 // loop_exit
            _
        $region29: #{spatial_transformer.19} parent=20 // pred_fallthru
          _
      $region21: #{spatial_transformer.19} parent=16 // pred_fallthru
        _
      %72 = vnop
    $region17: #{spatial_transformer.19} parent=1 // pred_fallthru
      _
    // Predicated region
    $region55: #{spatial_transformer.19} parent=1 // pred_check
      _
    $region56: #{spatial_transformer.19} parent=1 // pred_check_branch
      %74 = sbr.rel (0) target = $region58
    $region57: #{spatial_transformer.19} parent=1 // pred_region
      %s75 = sadd.s32 0, 1
      %s76 = smul.addr %s75, 4
      %s77 = scalar_lea.vmem %s4, %s76
      // Predicated region
      $region59: #{spatial_transformer.19} parent=57 // pred_check
        _
      $region60: #{spatial_transformer.19} parent=57 // pred_check_branch
        %79 = sbr.rel (0) target = $region62
      $region61: #{spatial_transformer.19} parent=57 // pred_region
        // Predicated region
        $region63: #{spatial_transformer.19} parent=61 // pred_check
          _
        $region64: #{spatial_transformer.19} parent=61 // pred_check_branch
          %81 = sbr.rel target = $region66
        $region65: #{spatial_transformer.19} parent=61 // pred_region
          // Predicated region
          $region78: #{spatial_transformer.19} parent=65 // pred_check
            _
          $region79: #{spatial_transformer.19} parent=65 // pred_check_branch
            %103 = sbr.rel (0) target = $region81
          $region80: #{spatial_transformer.19} parent=65 // pred_region
            loop: start=0, step=1, limit=1
            $region82: #{spatial_transformer.19} parent=80 // loop_pre_header
              _
            $region83: #{spatial_transformer.19} parent=80 // loop_header
              %s105 = sphi 0, %s109
              %p106 = scmp.ge.s32.totalorder %s105, 1
              %s110 = sphi %s77, %s77
              %s111 = sphi [#allocation3], [#allocation3]
            $region84: #{spatial_transformer.19} parent=80 // loop_header_branch
              %108 = sbr.rel (%p106) target = $region88
            $region85: #{spatial_transformer.19} parent=80 // loop_body
              _
            $region86: #{spatial_transformer.19} parent=80 // loop_footer
              %s109 = sadd.s32 1, %s105
            $region87: #{spatial_transformer.19} parent=80 // loop_footer_branch
              %104 = sbr.rel target = $region83
            $region88: #{spatial_transformer.19} parent=80 // loop_exit
              _
            %s113 = ssub.s32 16, 1
            loop: start=0, step=1, limit=1
            $region89: #{spatial_transformer.19} parent=80 // loop_pre_header
              _
            $region90: #{spatial_transformer.19} parent=80 // loop_header
              %s115 = sphi 0, %s119
              %p116 = scmp.ge.s32.totalorder %s115, 1
              %s120 = sphi %s77, %s77
              %s121 = sphi [#allocation3], [#allocation3]
            $region91: #{spatial_transformer.19} parent=80 // loop_header_branch
              %118 = sbr.rel (%p116) target = $region95
            $region92: #{spatial_transformer.19} parent=80 // loop_body
              %v122 = vld [vmem:[%s120] sm:%s113]
              %123 = vst [vmem:[%s121] sm:%s113] %v122
              %v124 = vld [vmem:[%s120 + $0x8] sm:%s113]
              %125 = vst [vmem:[%s121 + $0x4] sm:%s113] %v124
              %v126 = vld [vmem:[%s120 + $0x10] sm:%s113]
              %127 = vst [vmem:[%s121 + $0x8] sm:%s113] %v126
              %v128 = vld [vmem:[%s120 + $0x18] sm:%s113]
              %129 = vst [vmem:[%s121 + $0xc] sm:%s113] %v128
            $region93: #{spatial_transformer.19} parent=80 // loop_footer
              %s119 = sadd.s32 1, %s115
            $region94: #{spatial_transformer.19} parent=80 // loop_footer_branch
              %114 = sbr.rel target = $region90
            $region95: #{spatial_transformer.19} parent=80 // loop_exit
              _
          $region81: #{spatial_transformer.19} parent=65 // pred_fallthru
            _
        $region66: #{spatial_transformer.19} parent=61 // pred_fallthru
          _
        // Predicated region
        $region67: #{spatial_transformer.19} parent=61 // pred_check
          _
        $region68: #{spatial_transformer.19} parent=61 // pred_check_branch
          %83 = sbr.rel (0) target = $region70
        $region69: #{spatial_transformer.19} parent=61 // pred_region
          %s85 = ssub.s32 16, 1
          loop: start=0, step=1, limit=1
          $region71: #{spatial_transformer.19} parent=69 // loop_pre_header
            _
          $region72: #{spatial_transformer.19} parent=69 // loop_header
            %s87 = sphi 0, %s91
            %p88 = scmp.ge.s32.totalorder %s87, 1
            %s92 = sphi %s77, %s77
            %s93 = sphi [#allocation3], [#allocation3]
          $region73: #{spatial_transformer.19} parent=69 // loop_header_branch
            %90 = sbr.rel (%p88) target = $region77
          $region74: #{spatial_transformer.19} parent=69 // loop_body
            %v94 = vld [vmem:[%s92] sm:%s85]
            %95 = vst [vmem:[%s93] sm:%s85] %v94
            %v96 = vld [vmem:[%s92 + $0x8] sm:%s85]
            %97 = vst [vmem:[%s93 + $0x4] sm:%s85] %v96
            %v98 = vld [vmem:[%s92 + $0x10] sm:%s85]
            %99 = vst [vmem:[%s93 + $0x8] sm:%s85] %v98
            %v100 = vld [vmem:[%s92 + $0x18] sm:%s85]
            %101 = vst [vmem:[%s93 + $0xc] sm:%s85] %v100
          $region75: #{spatial_transformer.19} parent=69 // loop_footer
            %s91 = sadd.s32 1, %s87
          $region76: #{spatial_transformer.19} parent=69 // loop_footer_branch
            %86 = sbr.rel target = $region72
          $region77: #{spatial_transformer.19} parent=69 // loop_exit
            _
        $region70: #{spatial_transformer.19} parent=61 // pred_fallthru
          _
      $region62: #{spatial_transformer.19} parent=57 // pred_fallthru
        _
      %130 = vnop
    $region58: #{spatial_transformer.19} parent=1 // pred_fallthru
      _
    // Predicated region
    $region96: #{spatial_transformer.19} parent=1 // pred_check
      _
    $region97: #{spatial_transformer.19} parent=1 // pred_check_branch
      %132 = sbr.rel (0) target = $region99
    $region98: #{spatial_transformer.19} parent=1 // pred_region
      _
    $region99: #{spatial_transformer.19} parent=1 // pred_fallthru
      _
    // Predicated region
    $region100: #{spatial_transformer.19} parent=1 // pred_check
      _
    $region101: #{spatial_transformer.19} parent=1 // pred_check_branch
      %134 = sbr.rel (0) target = $region103
    $region102: #{spatial_transformer.19} parent=1 // pred_region
      %s135 = sadd.s32 0, 1
      %p136 = scmp.lt.s32.totalorder %s135, 1
      %s137 = scalar_select %p136, %s135, 1
      %s138 = scalar_lea.vmem %s6, %s137
      %s139 = sadd.s32 0, 1
    $region103: #{spatial_transformer.19} parent=1 // pred_fallthru
      _
    // Predicated region
    $region104: #{spatial_transformer.19} parent=1 // pred_check
      _
    $region105: #{spatial_transformer.19} parent=1 // pred_check_branch
      %141 = sbr.rel (0) target = $region107
    $region106: #{spatial_transformer.19} parent=1 // pred_region
      _
    $region107: #{spatial_transformer.19} parent=1 // pred_fallthru
      _
    // Predicated region
    $region108: #{spatial_transformer.19} parent=1 // pred_check
      _
    $region109: #{spatial_transformer.19} parent=1 // pred_check_branch
      %143 = sbr.rel (0) target = $region111
    $region110: #{spatial_transformer.19} parent=1 // pred_region
      _
    $region111: #{spatial_transformer.19} parent=1 // pred_fallthru
      _
    %s144 = sadd.s32 0, 1
    %p145 = scmp.lt.s32.totalorder %s144, 1
    %s146 = scalar_select %p145, %s144, 1
    %s147 = scalar_lea.vmem %s6, %s146
    %s148 = sadd.s32 0, 1
    %s149 = sadd.s32 0, 1
    %p150 = scmp.lt.s32.totalorder %s149, 1
    %s151 = scalar_select %p150, %s149, 1
    %s152 = scalar_lea.vmem %s6, %s151
    %s153 = sadd.s32 0, 1
    %v155 = vld [vmem:[%s0] sm:$0xff]
    %v156 = vld [vmem:[%s0 + $0x8] sm:$0xff]
    %v157 = vld [vmem:[%s0 + $0x10] sm:$0xff]
    %v158 = vld [vmem:[%s0 + $0x18] sm:$0xff]
    %v159 = vld [vmem:[%s0 + $0x20] sm:$0xff]
    %v160 = vld [vmem:[%s0 + $0x28] sm:$0xff]
    %v161 = vld [vmem:[%s0 + $0x30] sm:$0xff]
    %v162 = vld [vmem:[%s0 + $0x38] sm:$0xff]
    %v163 = vld [vmem:[%s0 + $0x40] sm:$0xff]
    %v164 = vld [vmem:[%s0 + $0x48] sm:$0xff]
    %v165 = vld [vmem:[%s0 + $0x50] sm:$0xff]
    %v166 = vld [vmem:[%s0 + $0x58] sm:$0xff]
    %v167 = vld [vmem:[%s0 + $0x60] sm:$0xff]
    %v168 = vld [vmem:[%s0 + $0x68] sm:$0xff]
    %v169 = vld [vmem:[%s0 + $0x70] sm:$0xff]
    %v170 = vld [vmem:[%s0 + $0x78] sm:$0xff]
    %vm171 = vcmask 261120
    %v172 = vsel %vm171, %v155, 0.0
    %173 = vadd.xlane.f32.xlu0 %v172
    %v174 = vpop.xlane.xlu0 %173
    %v175 = vsel %vm171, %v156, 0.0
    %176 = vadd.xlane.f32.xlu0 %v175
    %v177 = vpop.xlane.xlu0 %176
    %v178 = vsel %vm171, %v157, 0.0
    %179 = vadd.xlane.f32.xlu0 %v178
    %v180 = vpop.xlane.xlu0 %179
    %v181 = vsel %vm171, %v158, 0.0
    %182 = vadd.xlane.f32.xlu0 %v181
    %v183 = vpop.xlane.xlu0 %182
    %v184 = vsel %vm171, %v159, 0.0
    %185 = vadd.xlane.f32.xlu0 %v184
    %v186 = vpop.xlane.xlu0 %185
    %v187 = vsel %vm171, %v160, 0.0
    %188 = vadd.xlane.f32.xlu0 %v187
    %v189 = vpop.xlane.xlu0 %188
    %v190 = vsel %vm171, %v161, 0.0
    %191 = vadd.xlane.f32.xlu0 %v190
    %v192 = vpop.xlane.xlu0 %191
    %v193 = vsel %vm171, %v162, 0.0
    %194 = vadd.xlane.f32.xlu0 %v193
    %v195 = vpop.xlane.xlu0 %194
    %v196 = vsel %vm171, %v163, 0.0
    %197 = vadd.xlane.f32.xlu0 %v196
    %v198 = vpop.xlane.xlu0 %197
    %v199 = vsel %vm171, %v164, 0.0
    %200 = vadd.xlane.f32.xlu0 %v199
    %v201 = vpop.xlane.xlu0 %200
    %v202 = vsel %vm171, %v165, 0.0
    %203 = vadd.xlane.f32.xlu0 %v202
    %v204 = vpop.xlane.xlu0 %203
    %v205 = vsel %vm171, %v166, 0.0
    %206 = vadd.xlane.f32.xlu0 %v205
    %v207 = vpop.xlane.xlu0 %206
    %v208 = vsel %vm171, %v167, 0.0
    %209 = vadd.xlane.f32.xlu0 %v208
    %v210 = vpop.xlane.xlu0 %209
    %v211 = vsel %vm171, %v168, 0.0
    %212 = vadd.xlane.f32.xlu0 %v211
    %v213 = vpop.xlane.xlu0 %212
    %v214 = vsel %vm171, %v169, 0.0
    %215 = vadd.xlane.f32.xlu0 %v214
    %v216 = vpop.xlane.xlu0 %215
    %v217 = vsel %vm171, %v170, 0.0
    %218 = vadd.xlane.f32.xlu0 %v217
    %v219 = vpop.xlane.xlu0 %218
    %v220 = vrcp.pop 32.0
    %v221 = vmul.f32 %v174, %v220
    %v222 = vmul.f32 %v177, %v220
    %v223 = vmul.f32 %v180, %v220
    %v224 = vmul.f32 %v183, %v220
    %v225 = vmul.f32 %v186, %v220
    %v226 = vmul.f32 %v189, %v220
    %v227 = vmul.f32 %v192, %v220
    %v228 = vmul.f32 %v195, %v220
    %v229 = vmul.f32 %v198, %v220
    %v230 = vmul.f32 %v201, %v220
    %v231 = vmul.f32 %v204, %v220
    %v232 = vmul.f32 %v207, %v220
    %v233 = vmul.f32 %v210, %v220
    %v234 = vmul.f32 %v213, %v220
    %v235 = vmul.f32 %v216, %v220
    %v236 = vmul.f32 %v219, %v220
    %v237 = vsub.f32 %v155, %v221
    %v238 = vsub.f32 %v156, %v222
    %v239 = vsub.f32 %v157, %v223
    %v240 = vsub.f32 %v158, %v224
    %v241 = vsub.f32 %v159, %v225
    %v242 = vsub.f32 %v160, %v226
    %v243 = vsub.f32 %v161, %v227
    %v244 = vsub.f32 %v162, %v228
    %v245 = vsub.f32 %v163, %v229
    %v246 = vsub.f32 %v164, %v230
    %v247 = vsub.f32 %v165, %v231
    %v248 = vsub.f32 %v166, %v232
    %v249 = vsub.f32 %v167, %v233
    %v250 = vsub.f32 %v168, %v234
    %v251 = vsub.f32 %v169, %v235
    %v252 = vsub.f32 %v170, %v236
    %v253 = vmul.f32 %v237, %v237
    %v254 = vmul.f32 %v238, %v238
    %v255 = vmul.f32 %v239, %v239
    %v256 = vmul.f32 %v240, %v240
    %v257 = vmul.f32 %v241, %v241
    %v258 = vmul.f32 %v242, %v242
    %v259 = vmul.f32 %v243, %v243
    %v260 = vmul.f32 %v244, %v244
    %v261 = vmul.f32 %v245, %v245
    %v262 = vmul.f32 %v246, %v246
    %v263 = vmul.f32 %v247, %v247
    %v264 = vmul.f32 %v248, %v248
    %v265 = vmul.f32 %v249, %v249
    %v266 = vmul.f32 %v250, %v250
    %v267 = vmul.f32 %v251, %v251
    %v268 = vmul.f32 %v252, %v252
    %v269 = vsel %vm171, %v253, 0.0
    %270 = vadd.xlane.f32.xlu0 %v269
    %v271 = vpop.xlane.xlu0 %270
    %v272 = vsel %vm171, %v254, 0.0
    %273 = vadd.xlane.f32.xlu0 %v272
    %v274 = vpop.xlane.xlu0 %273
    %v275 = vsel %vm171, %v255, 0.0
    %276 = vadd.xlane.f32.xlu0 %v275
    %v277 = vpop.xlane.xlu0 %276
    %v278 = vsel %vm171, %v256, 0.0
    %279 = vadd.xlane.f32.xlu0 %v278
    %v280 = vpop.xlane.xlu0 %279
    %v281 = vsel %vm171, %v257, 0.0
    %282 = vadd.xlane.f32.xlu0 %v281
    %v283 = vpop.xlane.xlu0 %282
    %v284 = vsel %vm171, %v258, 0.0
    %285 = vadd.xlane.f32.xlu0 %v284
    %v286 = vpop.xlane.xlu0 %285
    %v287 = vsel %vm171, %v259, 0.0
    %288 = vadd.xlane.f32.xlu0 %v287
    %v289 = vpop.xlane.xlu0 %288
    %v290 = vsel %vm171, %v260, 0.0
    %291 = vadd.xlane.f32.xlu0 %v290
    %v292 = vpop.xlane.xlu0 %291
    %v293 = vsel %vm171, %v261, 0.0
    %294 = vadd.xlane.f32.xlu0 %v293
    %v295 = vpop.xlane.xlu0 %294
    %v296 = vsel %vm171, %v262, 0.0
    %297 = vadd.xlane.f32.xlu0 %v296
    %v298 = vpop.xlane.xlu0 %297
    %v299 = vsel %vm171, %v263, 0.0
    %300 = vadd.xlane.f32.xlu0 %v299
    %v301 = vpop.xlane.xlu0 %300
    %v302 = vsel %vm171, %v264, 0.0
    %303 = vadd.xlane.f32.xlu0 %v302
    %v304 = vpop.xlane.xlu0 %303
    %v305 = vsel %vm171, %v265, 0.0
    %306 = vadd.xlane.f32.xlu0 %v305
    %v307 = vpop.xlane.xlu0 %306
    %v308 = vsel %vm171, %v266, 0.0
    %309 = vadd.xlane.f32.xlu0 %v308
    %v310 = vpop.xlane.xlu0 %309
    %v311 = vsel %vm171, %v267, 0.0
    %312 = vadd.xlane.f32.xlu0 %v311
    %v313 = vpop.xlane.xlu0 %312
    %v314 = vsel %vm171, %v268, 0.0
    %315 = vadd.xlane.f32.xlu0 %v314
    %v316 = vpop.xlane.xlu0 %315
    %v317 = vmul.f32 %v271, %v220
    %v318 = vmul.f32 %v274, %v220
    %v319 = vmul.f32 %v277, %v220
    %v320 = vmul.f32 %v280, %v220
    %v321 = vmul.f32 %v283, %v220
    %v322 = vmul.f32 %v286, %v220
    %v323 = vmul.f32 %v289, %v220
    %v324 = vmul.f32 %v292, %v220
    %v325 = vmul.f32 %v295, %v220
    %v326 = vmul.f32 %v298, %v220
    %v327 = vmul.f32 %v301, %v220
    %v328 = vmul.f32 %v304, %v220
    %v329 = vmul.f32 %v307, %v220
    %v330 = vmul.f32 %v310, %v220
    %v331 = vmul.f32 %v313, %v220
    %v332 = vmul.f32 %v316, %v220
    %v333 = vadd.f32 %v317, 1e-05
    %v334 = vadd.f32 %v318, 1e-05
    %v335 = vadd.f32 %v319, 1e-05
    %v336 = vadd.f32 %v320, 1e-05
    %v337 = vadd.f32 %v321, 1e-05
    %v338 = vadd.f32 %v322, 1e-05
    %v339 = vadd.f32 %v323, 1e-05
    %v340 = vadd.f32 %v324, 1e-05
    %v341 = vadd.f32 %v325, 1e-05
    %v342 = vadd.f32 %v326, 1e-05
    %v343 = vadd.f32 %v327, 1e-05
    %v344 = vadd.f32 %v328, 1e-05
    %v345 = vadd.f32 %v329, 1e-05
    %v346 = vadd.f32 %v330, 1e-05
    %v347 = vadd.f32 %v331, 1e-05
    %v348 = vadd.f32 %v332, 1e-05
    %v349 = vrsqrt.pop %v333
    %v350 = vrsqrt.pop %v334
    %v351 = vrsqrt.pop %v335
    %v352 = vrsqrt.pop %v336
    %v353 = vrsqrt.pop %v337
    %v354 = vrsqrt.pop %v338
    %v355 = vrsqrt.pop %v339
    %v356 = vrsqrt.pop %v340
    %v357 = vrsqrt.pop %v341
    %v358 = vrsqrt.pop %v342
    %v359 = vrsqrt.pop %v343
    %v360 = vrsqrt.pop %v344
    %v361 = vrsqrt.pop %v345
    %v362 = vrsqrt.pop %v346
    %v363 = vrsqrt.pop %v347
    %v364 = vrsqrt.pop %v348
    %v365 = vmul.f32 %v237, %v349
    %v366 = vmul.f32 %v238, %v350
    %v367 = vmul.f32 %v239, %v351
    %v368 = vmul.f32 %v240, %v352
    %v369 = vmul.f32 %v241, %v353
    %v370 = vmul.f32 %v242, %v354
    %v371 = vmul.f32 %v243, %v355
    %v372 = vmul.f32 %v244, %v356
    %v373 = vmul.f32 %v245, %v357
    %v374 = vmul.f32 %v246, %v358
    %v375 = vmul.f32 %v247, %v359
    %v376 = vmul.f32 %v248, %v360
    %v377 = vmul.f32 %v249, %v361
    %v378 = vmul.f32 %v250, %v362
    %v379 = vmul.f32 %v251, %v363
    %v380 = vmul.f32 %v252, %v364
    %v381 = vld [vmem:[%s1] sm:$0x1]
    %v383 = vlaneseq
    %v384 = vshrl.u32 %v383, 7
    %v385 = vsub.s32 0, %v384
    %v386 = vrot.slane %v381, %v385
    %v388 = vmul.f32 %v365, %v386
    %v389 = vmul.f32 %v366, %v386
    %v390 = vmul.f32 %v367, %v386
    %v391 = vmul.f32 %v368, %v386
    %v392 = vmul.f32 %v369, %v386
    %v393 = vmul.f32 %v370, %v386
    %v394 = vmul.f32 %v371, %v386
    %v395 = vmul.f32 %v372, %v386
    %v396 = vmul.f32 %v373, %v386
    %v397 = vmul.f32 %v374, %v386
    %v398 = vmul.f32 %v375, %v386
    %v399 = vmul.f32 %v376, %v386
    %v400 = vmul.f32 %v377, %v386
    %v401 = vmul.f32 %v378, %v386
    %v402 = vmul.f32 %v379, %v386
    %v403 = vmul.f32 %v380, %v386
    %v404 = vld [vmem:[%s2] sm:$0x1]
    %v406 = vlaneseq
    %v407 = vshrl.u32 %v406, 7
    %v408 = vsub.s32 0, %v407
    %v409 = vrot.slane %v404, %v408
    %v411 = vadd.f32 %v388, %v409
    %v412 = vadd.f32 %v389, %v409
    %v413 = vadd.f32 %v390, %v409
    %v414 = vadd.f32 %v391, %v409
    %v415 = vadd.f32 %v392, %v409
    %v416 = vadd.f32 %v393, %v409
    %v417 = vadd.f32 %v394, %v409
    %v418 = vadd.f32 %v395, %v409
    %v419 = vadd.f32 %v396, %v409
    %v420 = vadd.f32 %v397, %v409
    %v421 = vadd.f32 %v398, %v409
    %v422 = vadd.f32 %v399, %v409
    %v423 = vadd.f32 %v400, %v409
    %v424 = vadd.f32 %v401, %v409
    %v425 = vadd.f32 %v402, %v409
    %v426 = vadd.f32 %v403, %v409
    %v427 = vpack.c.bf16 %v412, %v411
    %v428 = vpack.c.bf16 %v414, %v413
    %v429 = vpack.c.bf16 %v416, %v415
    %v430 = vpack.c.bf16 %v418, %v417
    %v431 = vpack.c.bf16 %v420, %v419
    %v432 = vpack.c.bf16 %v422, %v421
    %v433 = vpack.c.bf16 %v424, %v423
    %v434 = vpack.c.bf16 %v426, %v425
    %v435 = vld [vmem:[#allocation2] sm:$0xf]
    %v436 = vld [vmem:[#allocation2 + $0x4] sm:$0xf]
    %v437 = vld [vmem:[#allocation2 + $0x8] sm:$0xf]
    %v438 = vld [vmem:[#allocation2 + $0xc] sm:$0xf]
    %v439 = vld [vmem:[%s5] sm:$0x1]
    %v441 = vlaneseq
    %v442 = vshrl.u32 %v441, 7
    %v443 = vsub.s32 0, %v442
    %v444 = vrot.slane %v439, %v443
    %v450 = vunpack.c.l.b16 %v435
    %v451 = vunpack.c.l.b16 %v436
    %v452 = vunpack.c.l.b16 %v437
    %v453 = vunpack.c.l.b16 %v438
    %v454 = vpack.c.b16 %v451, %v450
    %v455 = vpack.c.b16 %v453, %v452
    %v459 = vsel %vm171, %v427, 0
    %v462 = vsel %vm171, %v428, 0
    %v465 = vsel %vm171, %v429, 0
    %v468 = vsel %vm171, %v430, 0
    %v471 = vsel %vm171, %v431, 0
    %v474 = vsel %vm171, %v432, 0
    %v477 = vsel %vm171, %v433, 0
    %v480 = vsel %vm171, %v434, 0
    %482 = vmatprep.subr.bf16.mxu0 0
    %483 = vmatpush1.bf16.msra.mxu0 0
    %484 = vmatprep.subr.bf16.mxu0 0
    %485 = vmatpush1.bf16.msra.mxu0 0
    %486 = vmatprep.subr.bf16.mxu0 0
    %487 = vmatpush1.bf16.msra.mxu0 0
    %488 = vmatprep.subr.bf16.mxu0 0
    %489 = vmatpush1.bf16.msra.mxu0 0
    %490 = vmatprep.subr.bf16.mxu0 0
    %491 = vmatpush1.bf16.msra.mxu0 0
    %492 = vmatprep.subr.bf16.mxu0 0
    %493 = vmatpush1.bf16.msra.mxu0 0
    %494 = vmatprep.subr.bf16.mxu0 0
    %495 = vmatpush1.bf16.msra.mxu0 %v455
    %496 = vmatprep.subr.bf16.mxu0 0
    %497 = vmatpush1.bf16.msra.mxu0 %v454
    %498 = vmatprep.subr.bf16.mxu0 0
    %499 = vmatpush2.bf16.msra.mxu0 0
    %500 = vmatprep.subr.bf16.mxu0 0
    %501 = vmatpush2.bf16.msra.mxu0 0
    %502 = vmatprep.subr.bf16.mxu0 0
    %503 = vmatpush2.bf16.msra.mxu0 0
    %504 = vmatprep.subr.bf16.mxu0 0
    %505 = vmatpush2.bf16.msra.mxu0 0
    %506 = vmatprep.subr.bf16.mxu0 0
    %507 = vmatpush2.bf16.msra.mxu0 0
    %508 = vmatprep.subr.bf16.mxu0 0
    %509 = vmatpush2.bf16.msra.mxu0 0
    %510 = vmatprep.subr.bf16.mxu0 0
    %511 = vmatpush2.bf16.msra.mxu0 0
    %512 = vmatprep.subr.bf16.mxu0 0
    %513 = vmatpush2.bf16.msra.mxu0 0
    %514 = vmatprep.mubr.bf16.mxu0 0
    %515 = vmatmul.mubr.bf16.gmra.mxu0 %v459
    %v516 = vpop.f32.mrf.mxu0
    %v517 = vadd.f32 %v444, %v516
    %v518 = vpop.f32.mrf.mxu0
    %v519 = vpop.f32.mrf.mxu0
    %v520 = vadd.f32 %v444, %v519
    %v521 = vpop.f32.mrf.mxu0
    %522 = vmatprep.mubr.bf16.mxu0 0
    %523 = vmatmul.mubr.bf16.gmra.mxu0 %v462
    %v524 = vpop.f32.mrf.mxu0
    %v525 = vadd.f32 %v444, %v524
    %v526 = vpop.f32.mrf.mxu0
    %v527 = vpop.f32.mrf.mxu0
    %v528 = vadd.f32 %v444, %v527
    %v529 = vpop.f32.mrf.mxu0
    %530 = vmatprep.mubr.bf16.mxu0 0
    %531 = vmatmul.mubr.bf16.gmra.mxu0 %v465
    %v532 = vpop.f32.mrf.mxu0
    %v533 = vadd.f32 %v444, %v532
    %v534 = vpop.f32.mrf.mxu0
    %v535 = vpop.f32.mrf.mxu0
    %v536 = vadd.f32 %v444, %v535
    %v537 = vpop.f32.mrf.mxu0
    %538 = vmatprep.mubr.bf16.mxu0 0
    %539 = vmatmul.mubr.bf16.gmra.mxu0 %v468
    %v540 = vpop.f32.mrf.mxu0
    %v541 = vadd.f32 %v444, %v540
    %v542 = vpop.f32.mrf.mxu0
    %v543 = vpop.f32.mrf.mxu0
    %v544 = vadd.f32 %v444, %v543
    %v545 = vpop.f32.mrf.mxu0
    %546 = vmatprep.mubr.bf16.mxu0 0
    %547 = vmatmul.mubr.bf16.gmra.mxu0 %v471
    %v548 = vpop.f32.mrf.mxu0
    %v549 = vadd.f32 %v444, %v548
    %v550 = vpop.f32.mrf.mxu0
    %v551 = vpop.f32.mrf.mxu0
    %v552 = vadd.f32 %v444, %v551
    %v553 = vpop.f32.mrf.mxu0
    %554 = vmatprep.mubr.bf16.mxu0 0
    %555 = vmatmul.mubr.bf16.gmra.mxu0 %v474
    %v556 = vpop.f32.mrf.mxu0
    %v557 = vadd.f32 %v444, %v556
    %v558 = vpop.f32.mrf.mxu0
    %v559 = vpop.f32.mrf.mxu0
    %v560 = vadd.f32 %v444, %v559
    %v561 = vpop.f32.mrf.mxu0
    %562 = vmatprep.mubr.bf16.mxu0 0
    %563 = vmatmul.mubr.bf16.gmra.mxu0 %v477
    %v564 = vpop.f32.mrf.mxu0
    %v565 = vadd.f32 %v444, %v564
    %v566 = vpop.f32.mrf.mxu0
    %v567 = vpop.f32.mrf.mxu0
    %v568 = vadd.f32 %v444, %v567
    %v569 = vpop.f32.mrf.mxu0
    %570 = vmatprep.mubr.bf16.mxu0 0
    %571 = vmatmul.mubr.bf16.gmra.mxu0 %v480
    %v572 = vpop.f32.mrf.mxu0
    %v573 = vadd.f32 %v444, %v572
    %v574 = vpop.f32.mrf.mxu0
    %v575 = vpop.f32.mrf.mxu0
    %v576 = vadd.f32 %v444, %v575
    %v577 = vpop.f32.mrf.mxu0
    %578 = vdwg.mxu0
    %v579 = vld [vmem:[#allocation3] sm:$0xf]
    %v580 = vld [vmem:[#allocation3 + $0x4] sm:$0xf]
    %v581 = vld [vmem:[#allocation3 + $0x8] sm:$0xf]
    %v582 = vld [vmem:[#allocation3 + $0xc] sm:$0xf]
    %v583 = vld [vmem:[%s152] sm:$0x1]
    %v585 = vlaneseq
    %v586 = vshrl.u32 %v585, 7
    %v587 = vsub.s32 0, %v586
    %v588 = vrot.slane %v583, %v587
    %v594 = vunpack.c.l.b16 %v579
    %v595 = vunpack.c.l.b16 %v580
    %v596 = vunpack.c.l.b16 %v581
    %v597 = vunpack.c.l.b16 %v582
    %v598 = vpack.c.b16 %v595, %v594
    %v599 = vpack.c.b16 %v597, %v596
    %602 = vmatprep.subr.bf16.mxu0 0
    %603 = vmatpush1.bf16.msra.mxu0 0
    %604 = vmatprep.subr.bf16.mxu0 0
    %605 = vmatpush1.bf16.msra.mxu0 0
    %606 = vmatprep.subr.bf16.mxu0 0
    %607 = vmatpush1.bf16.msra.mxu0 0
    %608 = vmatprep.subr.bf16.mxu0 0
    %609 = vmatpush1.bf16.msra.mxu0 0
    %610 = vmatprep.subr.bf16.mxu0 0
    %611 = vmatpush1.bf16.msra.mxu0 0
    %612 = vmatprep.subr.bf16.mxu0 0
    %613 = vmatpush1.bf16.msra.mxu0 0
    %614 = vmatprep.subr.bf16.mxu0 0
    %615 = vmatpush1.bf16.msra.mxu0 %v599
    %616 = vmatprep.subr.bf16.mxu0 0
    %617 = vmatpush1.bf16.msra.mxu0 %v598
    %618 = vmatprep.subr.bf16.mxu0 0
    %619 = vmatpush2.bf16.msra.mxu0 0
    %620 = vmatprep.subr.bf16.mxu0 0
    %621 = vmatpush2.bf16.msra.mxu0 0
    %622 = vmatprep.subr.bf16.mxu0 0
    %623 = vmatpush2.bf16.msra.mxu0 0
    %624 = vmatprep.subr.bf16.mxu0 0
    %625 = vmatpush2.bf16.msra.mxu0 0
    %626 = vmatprep.subr.bf16.mxu0 0
    %627 = vmatpush2.bf16.msra.mxu0 0
    %628 = vmatprep.subr.bf16.mxu0 0
    %629 = vmatpush2.bf16.msra.mxu0 0
    %630 = vmatprep.subr.bf16.mxu0 0
    %631 = vmatpush2.bf16.msra.mxu0 0
    %632 = vmatprep.subr.bf16.mxu0 0
    %633 = vmatpush2.bf16.msra.mxu0 0
    %634 = vmatprep.mubr.bf16.mxu0 0
    %635 = vmatmul.mubr.bf16.gmra.mxu0 %v459
    %v636 = vpop.f32.mrf.mxu0
    %v637 = vadd.f32 %v588, %v636
    %v638 = vpop.f32.mrf.mxu0
    %v639 = vpop.f32.mrf.mxu0
    %v640 = vadd.f32 %v588, %v639
    %v641 = vpop.f32.mrf.mxu0
    %642 = vmatprep.mubr.bf16.mxu0 0
    %643 = vmatmul.mubr.bf16.gmra.mxu0 %v462
    %v644 = vpop.f32.mrf.mxu0
    %v645 = vadd.f32 %v588, %v644
    %v646 = vpop.f32.mrf.mxu0
    %v647 = vpop.f32.mrf.mxu0
    %v648 = vadd.f32 %v588, %v647
    %v649 = vpop.f32.mrf.mxu0
    %650 = vmatprep.mubr.bf16.mxu0 0
    %651 = vmatmul.mubr.bf16.gmra.mxu0 %v465
    %v652 = vpop.f32.mrf.mxu0
    %v653 = vadd.f32 %v588, %v652
    %v654 = vpop.f32.mrf.mxu0
    %v655 = vpop.f32.mrf.mxu0
    %v656 = vadd.f32 %v588, %v655
    %v657 = vpop.f32.mrf.mxu0
    %658 = vmatprep.mubr.bf16.mxu0 0
    %659 = vmatmul.mubr.bf16.gmra.mxu0 %v468
    %v660 = vpop.f32.mrf.mxu0
    %v661 = vadd.f32 %v588, %v660
    %v662 = vpop.f32.mrf.mxu0
    %v663 = vpop.f32.mrf.mxu0
    %v664 = vadd.f32 %v588, %v663
    %v665 = vpop.f32.mrf.mxu0
    %666 = vmatprep.mubr.bf16.mxu0 0
    %667 = vmatmul.mubr.bf16.gmra.mxu0 %v471
    %v668 = vpop.f32.mrf.mxu0
    %v669 = vadd.f32 %v588, %v668
    %v670 = vpop.f32.mrf.mxu0
    %v671 = vpop.f32.mrf.mxu0
    %v672 = vadd.f32 %v588, %v671
    %v673 = vpop.f32.mrf.mxu0
    %674 = vmatprep.mubr.bf16.mxu0 0
    %675 = vmatmul.mubr.bf16.gmra.mxu0 %v474
    %v676 = vpop.f32.mrf.mxu0
    %v677 = vadd.f32 %v588, %v676
    %v678 = vpop.f32.mrf.mxu0
    %v679 = vpop.f32.mrf.mxu0
    %v680 = vadd.f32 %v588, %v679
    %v681 = vpop.f32.mrf.mxu0
    %682 = vmatprep.mubr.bf16.mxu0 0
    %683 = vmatmul.mubr.bf16.gmra.mxu0 %v477
    %v684 = vpop.f32.mrf.mxu0
    %v685 = vadd.f32 %v588, %v684
    %v686 = vpop.f32.mrf.mxu0
    %v687 = vpop.f32.mrf.mxu0
    %v688 = vadd.f32 %v588, %v687
    %v689 = vpop.f32.mrf.mxu0
    %690 = vmatprep.mubr.bf16.mxu0 0
    %691 = vmatmul.mubr.bf16.gmra.mxu0 %v480
    %v692 = vpop.f32.mrf.mxu0
    %v693 = vadd.f32 %v588, %v692
    %v694 = vpop.f32.mrf.mxu0
    %v695 = vpop.f32.mrf.mxu0
    %v696 = vadd.f32 %v588, %v695
    %v697 = vpop.f32.mrf.mxu0
    %698 = vdwg.mxu0
    %v699 = vmul.f32 %v637, %v637
    %v700 = vmul.f32 %v640, %v640
    %v701 = vmul.f32 %v645, %v645
    %v702 = vmul.f32 %v648, %v648
    %v703 = vmul.f32 %v653, %v653
    %v704 = vmul.f32 %v656, %v656
    %v705 = vmul.f32 %v661, %v661
    %v706 = vmul.f32 %v664, %v664
    %v707 = vmul.f32 %v669, %v669
    %v708 = vmul.f32 %v672, %v672
    %v709 = vmul.f32 %v677, %v677
    %v710 = vmul.f32 %v680, %v680
    %v711 = vmul.f32 %v685, %v685
    %v712 = vmul.f32 %v688, %v688
    %v713 = vmul.f32 %v693, %v693
    %v714 = vmul.f32 %v696, %v696
    %v715 = vmul.f32 %v637, %v699
    %v716 = vmul.f32 %v640, %v700
    %v717 = vmul.f32 %v645, %v701
    %v718 = vmul.f32 %v648, %v702
    %v719 = vmul.f32 %v653, %v703
    %v720 = vmul.f32 %v656, %v704
    %v721 = vmul.f32 %v661, %v705
    %v722 = vmul.f32 %v664, %v706
    %v723 = vmul.f32 %v669, %v707
    %v724 = vmul.f32 %v672, %v708
    %v725 = vmul.f32 %v677, %v709
    %v726 = vmul.f32 %v680, %v710
    %v727 = vmul.f32 %v685, %v711
    %v728 = vmul.f32 %v688, %v712
    %v729 = vmul.f32 %v693, %v713
    %v730 = vmul.f32 %v696, %v714
    %v731 = vmul.f32 %v715, 0.044715
    %v732 = vmul.f32 %v716, 0.044715
    %v733 = vmul.f32 %v717, 0.044715
    %v734 = vmul.f32 %v718, 0.044715
    %v735 = vmul.f32 %v719, 0.044715
    %v736 = vmul.f32 %v720, 0.044715
    %v737 = vmul.f32 %v721, 0.044715
    %v738 = vmul.f32 %v722, 0.044715
    %v739 = vmul.f32 %v723, 0.044715
    %v740 = vmul.f32 %v724, 0.044715
    %v741 = vmul.f32 %v725, 0.044715
    %v742 = vmul.f32 %v726, 0.044715
    %v743 = vmul.f32 %v727, 0.044715
    %v744 = vmul.f32 %v728, 0.044715
    %v745 = vmul.f32 %v729, 0.044715
    %v746 = vmul.f32 %v730, 0.044715
    %v747 = vadd.f32 %v637, %v731
    %v748 = vadd.f32 %v640, %v732
    %v749 = vadd.f32 %v645, %v733
    %v750 = vadd.f32 %v648, %v734
    %v751 = vadd.f32 %v653, %v735
    %v752 = vadd.f32 %v656, %v736
    %v753 = vadd.f32 %v661, %v737
    %v754 = vadd.f32 %v664, %v738
    %v755 = vadd.f32 %v669, %v739
    %v756 = vadd.f32 %v672, %v740
    %v757 = vadd.f32 %v677, %v741
    %v758 = vadd.f32 %v680, %v742
    %v759 = vadd.f32 %v685, %v743
    %v760 = vadd.f32 %v688, %v744
    %v761 = vadd.f32 %v693, %v745
    %v762 = vadd.f32 %v696, %v746
    %v763 = vmul.f32 %v747, 0.7978846
    %v764 = vmul.f32 %v748, 0.7978846
    %v765 = vmul.f32 %v749, 0.7978846
    %v766 = vmul.f32 %v750, 0.7978846
    %v767 = vmul.f32 %v751, 0.7978846
    %v768 = vmul.f32 %v752, 0.7978846
    %v769 = vmul.f32 %v753, 0.7978846
    %v770 = vmul.f32 %v754, 0.7978846
    %v771 = vmul.f32 %v755, 0.7978846
    %v772 = vmul.f32 %v756, 0.7978846
    %v773 = vmul.f32 %v757, 0.7978846
    %v774 = vmul.f32 %v758, 0.7978846
    %v775 = vmul.f32 %v759, 0.7978846
    %v776 = vmul.f32 %v760, 0.7978846
    %v777 = vmul.f32 %v761, 0.7978846
    %v778 = vmul.f32 %v762, 0.7978846
    %v779 = vtanh.pop %v763
    %v780 = vtanh.pop %v764
    %v781 = vtanh.pop %v765
    %v782 = vtanh.pop %v766
    %v783 = vtanh.pop %v767
    %v784 = vtanh.pop %v768
    %v785 = vtanh.pop %v769
    %v786 = vtanh.pop %v770
    %v787 = vtanh.pop %v771
    %v788 = vtanh.pop %v772
    %v789 = vtanh.pop %v773
    %v790 = vtanh.pop %v774
    %v791 = vtanh.pop %v775
    %v792 = vtanh.pop %v776
    %v793 = vtanh.pop %v777
    %v794 = vtanh.pop %v778
    %v795 = vadd.f32 %v779, 1.0
    %v796 = vadd.f32 %v780, 1.0
    %v797 = vadd.f32 %v781, 1.0
    %v798 = vadd.f32 %v782, 1.0
    %v799 = vadd.f32 %v783, 1.0
    %v800 = vadd.f32 %v784, 1.0
    %v801 = vadd.f32 %v785, 1.0
    %v802 = vadd.f32 %v786, 1.0
    %v803 = vadd.f32 %v787, 1.0
    %v804 = vadd.f32 %v788, 1.0
    %v805 = vadd.f32 %v789, 1.0
    %v806 = vadd.f32 %v790, 1.0
    %v807 = vadd.f32 %v791, 1.0
    %v808 = vadd.f32 %v792, 1.0
    %v809 = vadd.f32 %v793, 1.0
    %v810 = vadd.f32 %v794, 1.0
    %v811 = vmul.f32 %v795, 0.5
    %v812 = vmul.f32 %v796, 0.5
    %v813 = vmul.f32 %v797, 0.5
    %v814 = vmul.f32 %v798, 0.5
    %v815 = vmul.f32 %v799, 0.5
    %v816 = vmul.f32 %v800, 0.5
    %v817 = vmul.f32 %v801, 0.5
    %v818 = vmul.f32 %v802, 0.5
    %v819 = vmul.f32 %v803, 0.5
    %v820 = vmul.f32 %v804, 0.5
    %v821 = vmul.f32 %v805, 0.5
    %v822 = vmul.f32 %v806, 0.5
    %v823 = vmul.f32 %v807, 0.5
    %v824 = vmul.f32 %v808, 0.5
    %v825 = vmul.f32 %v809, 0.5
    %v826 = vmul.f32 %v810, 0.5
    %v827 = vmul.f32 %v637, %v811
    %v828 = vmul.f32 %v640, %v812
    %v829 = vmul.f32 %v645, %v813
    %v830 = vmul.f32 %v648, %v814
    %v831 = vmul.f32 %v653, %v815
    %v832 = vmul.f32 %v656, %v816
    %v833 = vmul.f32 %v661, %v817
    %v834 = vmul.f32 %v664, %v818
    %v835 = vmul.f32 %v669, %v819
    %v836 = vmul.f32 %v672, %v820
    %v837 = vmul.f32 %v677, %v821
    %v838 = vmul.f32 %v680, %v822
    %v839 = vmul.f32 %v685, %v823
    %v840 = vmul.f32 %v688, %v824
    %v841 = vmul.f32 %v693, %v825
    %v842 = vmul.f32 %v696, %v826
    %v843 = vmul.f32 %v517, %v827
    %v844 = vmul.f32 %v520, %v828
    %v845 = vmul.f32 %v525, %v829
    %v846 = vmul.f32 %v528, %v830
    %v847 = vmul.f32 %v533, %v831
    %v848 = vmul.f32 %v536, %v832
    %v849 = vmul.f32 %v541, %v833
    %v850 = vmul.f32 %v544, %v834
    %v851 = vmul.f32 %v549, %v835
    %v852 = vmul.f32 %v552, %v836
    %v853 = vmul.f32 %v557, %v837
    %v854 = vmul.f32 %v560, %v838
    %v855 = vmul.f32 %v565, %v839
    %v856 = vmul.f32 %v568, %v840
    %v857 = vmul.f32 %v573, %v841
    %v858 = vmul.f32 %v576, %v842
    %v859 = vpack.c.bf16 %v844, %v843
    %v860 = vpack.c.bf16 %v846, %v845
    %v861 = vpack.c.bf16 %v848, %v847
    %v862 = vpack.c.bf16 %v850, %v849
    %v863 = vpack.c.bf16 %v852, %v851
    %v864 = vpack.c.bf16 %v854, %v853
    %v865 = vpack.c.bf16 %v856, %v855
    %v866 = vpack.c.bf16 %v858, %v857
    %v875 = vunpack.c.l.b16 %v859
    %v876 = vunpack.c.h.b16 %v859
    %v877 = vunpack.c.l.b16 %v860
    %v878 = vunpack.c.h.b16 %v860
    %v879 = vunpack.c.l.b16 %v861
    %v880 = vunpack.c.h.b16 %v861
    %v881 = vunpack.c.l.b16 %v862
    %v882 = vunpack.c.h.b16 %v862
    %v883 = vunpack.c.l.b16 %v863
    %v884 = vunpack.c.h.b16 %v863
    %v885 = vunpack.c.l.b16 %v864
    %v886 = vunpack.c.h.b16 %v864
    %v887 = vunpack.c.l.b16 %v865
    %v888 = vunpack.c.h.b16 %v865
    %v889 = vunpack.c.l.b16 %v866
    %v890 = vunpack.c.h.b16 %v866
    %v891 = vpack.c.b16 %v875, %v875
    %v892 = vpack.c.b16 %v876, %v876
    %v893 = vpack.c.b16 %v877, %v877
    %v894 = vpack.c.b16 %v878, %v878
    %v895 = vpack.c.b16 %v879, %v879
    %v896 = vpack.c.b16 %v880, %v880
    %v897 = vpack.c.b16 %v881, %v881
    %v898 = vpack.c.b16 %v882, %v882
    %v899 = vpack.c.b16 %v883, %v883
    %v900 = vpack.c.b16 %v884, %v884
    %v901 = vpack.c.b16 %v885, %v885
    %v902 = vpack.c.b16 %v886, %v886
    %v903 = vpack.c.b16 %v887, %v887
    %v904 = vpack.c.b16 %v888, %v888
    %v905 = vpack.c.b16 %v889, %v889
    %v906 = vpack.c.b16 %v890, %v890
    %923 = vst [vmem:[%s7] sm:$0xf] %v891
    %924 = vst [vmem:[%s7 + $0x4] sm:$0xf] %v892
    %925 = vst [vmem:[%s7 + $0x8] sm:$0xf] %v893
    %926 = vst [vmem:[%s7 + $0xc] sm:$0xf] %v894
    %927 = vst [vmem:[%s7 + $0x10] sm:$0xf] %v895
    %928 = vst [vmem:[%s7 + $0x14] sm:$0xf] %v896
    %929 = vst [vmem:[%s7 + $0x18] sm:$0xf] %v897
    %930 = vst [vmem:[%s7 + $0x1c] sm:$0xf] %v898
    %931 = vst [vmem:[%s7 + $0x20] sm:$0xf] %v899
    %932 = vst [vmem:[%s7 + $0x24] sm:$0xf] %v900
    %933 = vst [vmem:[%s7 + $0x28] sm:$0xf] %v901
    %934 = vst [vmem:[%s7 + $0x2c] sm:$0xf] %v902
    %935 = vst [vmem:[%s7 + $0x30] sm:$0xf] %v903
    %936 = vst [vmem:[%s7 + $0x34] sm:$0xf] %v904
    %937 = vst [vmem:[%s7 + $0x38] sm:$0xf] %v905
    %938 = vst [vmem:[%s7 + $0x3c] sm:$0xf] %v906
    // Predicated region
    $region112: #{spatial_transformer.19} parent=1 // pred_check
      _
    $region113: #{spatial_transformer.19} parent=1 // pred_check_branch
      %940 = sbr.rel (0) target = $region115
    $region114: #{spatial_transformer.19} parent=1 // pred_region
      _
    $region115: #{spatial_transformer.19} parent=1 // pred_fallthru
      _
    // Predicated region
    $region116: #{spatial_transformer.19} parent=1 // pred_check
      _
    $region117: #{spatial_transformer.19} parent=1 // pred_check_branch
      %942 = sbr.rel (0) target = $region119
    $region118: #{spatial_transformer.19} parent=1 // pred_region
      _
    $region119: #{spatial_transformer.19} parent=1 // pred_fallthru
      _

// kernel: spatial_transformer.14
$region0: #{spatial_transformer.14}
  #allocation0 [shape = 'u32[]', space=smem, size = 0x4, offset = 0x4, fixed_abs, tag = 'smem constant byte address 0x4 - core index']
  #allocation1 [shape = 'u32[144,128]{1,0:T(1,128)}', space=vmem, size = 0x12000, scoped, tag = 'internal scratch']
  #allocation2 [shape = 'f32[2,64,1]{2,1,0:T(8,128)}', space=vmem, size = 0x10000, scoped, tag = 'scratch operand']
  #allocation3 [shape = 'f32[2,64,1]{2,1,0:T(8,128)}', space=vmem, size = 0x10000, scoped, tag = 'scratch operand']
  #allocation4 [shape = 'f32[2,64,16]{2,1,0:T(8,128)}', space=vmem, size = 0x10000, scoped, tag = 'scratch operand']
  %s0 = inlined_call_operand.vmem [shape: bf16[6,2,64,16], index: 0, kind: input, shape index: {}, may-alias: {0,1,2}]
  %s1 = inlined_call_operand.vmem [shape: bf16[6,2,64,16], index: 1, kind: input, shape index: {}, may-alias: {0,1,2}]
  %s2 = inlined_call_operand.vmem [shape: bf16[6,2,64,16], index: 2, kind: input, shape index: {}, may-alias: {0,1,2}]
  %s3 = inlined_call_operand.vmem [shape: bf16[2,2,64,16], index: 3, kind: output, shape index: {}]
  %s4 = sld [smem:[#allocation0]]
  $region53: #{spatial_transformer.14} parent=0
    _
  %s6 = ssub.s32 1, %s4
  %s7 = scalar_select 0, %s6, %s4
  loop: start=0, step=1, limit=4
  $region2: #{spatial_transformer.14} parent=0 // loop_pre_header
    _
  $region3: #{spatial_transformer.14} parent=0 // loop_header
    %s9 = sphi 0, %s13
    %p10 = scmp.ge.s32.totalorder %s9, 4
    %s16 = sphi 0, %s35
    %s17 = sphi 0, %s31
    %s18 = sphi 0, %s27
    %s19 = sphi 0, %s16
    %s20 = sphi 0, %s17
    %s21 = sphi 0, %s18
    %s22 = sphi 0, %s19
    %s23 = sphi 0, %s20
    %s24 = sphi 0, %s21
    %s40 = sphi 0, %s42
    %s43 = sphi 0, %s40
    %s44 = sphi 0, %s43
    %s60 = sphi 0, %s44
    %s70 = sphi 0, %s72
    %s73 = sphi 0, %s70
    %s74 = sphi 0, %s73
    %s90 = sphi 0, %s74
    %s100 = sphi 0, %s102
    %s103 = sphi 0, %s100
    %s104 = sphi 0, %s103
    %s120 = sphi 0, %s104
    %s128 = sphi 0, %s130
    %s131 = sphi 0, %s128
    %s132 = sphi 0, %s131
    %s148 = sphi 0, %s132
  $region4: #{spatial_transformer.14} parent=0 // loop_header_branch
    %12 = sbr.rel (%p10) target = $region8
  $region5: #{spatial_transformer.14} parent=0 // loop_body
    %s14 = ssub.s32 %s9, 1
    %s15 = ssub.s32 %s9, 2
    %s25 = sadd.s32 1, %s18
    %p26 = scmp.ge.s32.totalorder %s25, 1
    %s27 = scalar_select %p26, 0, %s25
    %s28 = sadd.s32 1, %s17
    %s29 = scalar_select %p26, %s28, %s17
    %p30 = scmp.ge.s32.totalorder %s29, 1
    %s31 = scalar_select %p30, 0, %s29
    %s32 = sadd.s32 1, %s16
    %s33 = scalar_select %p30, %s32, %s16
    %p34 = scmp.ge.s32.totalorder %s33, 2
    %s35 = scalar_select %p34, 0, %s33
    %s36 = ssub.s32 %s16, %s35
    %s37 = ssub.s32 %s17, %s31
    %s38 = sor.u32 %s36, %s37
    %p39 = scmp.eq.s32.totalorder %s38, 0
    %s41 = sadd.s32 %s40, 1
    %s42 = scalar_select %p39, %s40, %s41
    %p45 = pneg %p39
    %p46 = scmp.eq.s32.totalorder %s9, 1
    %p47 = por %p45, %p46
    %p48 = scmp.ne.s32.totalorder %s40, %s43
    %p49 = scmp.eq.s32.totalorder %s9, 0
    %p50 = por %p48, %p49
    %p51 = scmp.ne.s32.totalorder %s40, %s43
    %p52 = scmp.eq.s32.totalorder %s14, 1
    %p53 = por %p51, %p52
    %p54 = scmp.ne.s32.totalorder %s43, %s44
    %p55 = scmp.eq.s32.totalorder %s14, 0
    %p56 = por %p54, %p55
    %p57 = scmp.ne.s32.totalorder %s43, %s44
    %p58 = scmp.eq.s32.totalorder %s15, 1
    %p59 = por %p57, %p58
    %p61 = scmp.ne.s32.totalorder %s44, %s60
    %p62 = scmp.eq.s32.totalorder %s15, 0
    %p63 = por %p61, %p62
    %s64 = sadd.s32 %s16, 2
    %s65 = sadd.s32 %s35, 2
    %s66 = ssub.s32 %s64, %s65
    %s67 = ssub.s32 %s18, %s27
    %s68 = sor.u32 %s66, %s67
    %p69 = scmp.eq.s32.totalorder %s68, 0
    %s71 = sadd.s32 %s70, 1
    %s72 = scalar_select %p69, %s70, %s71
    %p75 = pneg %p69
    %p76 = scmp.eq.s32.totalorder %s9, 1
    %p77 = por %p75, %p76
    %p78 = scmp.ne.s32.totalorder %s70, %s73
    %p79 = scmp.eq.s32.totalorder %s9, 0
    %p80 = por %p78, %p79
    %p81 = scmp.ne.s32.totalorder %s70, %s73
    %p82 = scmp.eq.s32.totalorder %s14, 1
    %p83 = por %p81, %p82
    %p84 = scmp.ne.s32.totalorder %s73, %s74
    %p85 = scmp.eq.s32.totalorder %s14, 0
    %p86 = por %p84, %p85
    %p87 = scmp.ne.s32.totalorder %s73, %s74
    %p88 = scmp.eq.s32.totalorder %s15, 1
    %p89 = por %p87, %p88
    %p91 = scmp.ne.s32.totalorder %s74, %s90
    %p92 = scmp.eq.s32.totalorder %s15, 0
    %p93 = por %p91, %p92
    %s94 = sadd.s32 %s16, 4
    %s95 = sadd.s32 %s35, 4
    %s96 = ssub.s32 %s94, %s95
    %s97 = ssub.s32 %s18, %s27
    %s98 = sor.u32 %s96, %s97
    %p99 = scmp.eq.s32.totalorder %s98, 0
    %s101 = sadd.s32 %s100, 1
    %s102 = scalar_select %p99, %s100, %s101
    %p105 = pneg %p99
    %p106 = scmp.eq.s32.totalorder %s9, 1
    %p107 = por %p105, %p106
    %p108 = scmp.ne.s32.totalorder %s100, %s103
    %p109 = scmp.eq.s32.totalorder %s9, 0
    %p110 = por %p108, %p109
    %p111 = scmp.ne.s32.totalorder %s100, %s103
    %p112 = scmp.eq.s32.totalorder %s14, 1
    %p113 = por %p111, %p112
    %p114 = scmp.ne.s32.totalorder %s103, %s104
    %p115 = scmp.eq.s32.totalorder %s14, 0
    %p116 = por %p114, %p115
    %p117 = scmp.ne.s32.totalorder %s103, %s104
    %p118 = scmp.eq.s32.totalorder %s15, 1
    %p119 = por %p117, %p118
    %p121 = scmp.ne.s32.totalorder %s104, %s120
    %p122 = scmp.eq.s32.totalorder %s15, 0
    %p123 = por %p121, %p122
    %s124 = ssub.s32 %s16, %s35
    %s125 = ssub.s32 %s17, %s31
    %s126 = sor.u32 %s124, %s125
    %p127 = scmp.eq.s32.totalorder %s126, 0
    %s129 = sadd.s32 %s128, 1
    %s130 = scalar_select %p127, %s128, %s129
    %p133 = pneg %p127
    %p134 = scmp.eq.s32.totalorder %s9, 1
    %p135 = por %p133, %p134
    %p136 = scmp.ne.s32.totalorder %s128, %s131
    %p137 = scmp.eq.s32.totalorder %s9, 0
    %p138 = por %p136, %p137
    %p139 = scmp.ne.s32.totalorder %s128, %s131
    %p140 = scmp.eq.s32.totalorder %s14, 1
    %p141 = por %p139, %p140
    %p142 = scmp.ne.s32.totalorder %s131, %s132
    %p143 = scmp.eq.s32.totalorder %s14, 0
    %p144 = por %p142, %p143
    %p145 = scmp.ne.s32.totalorder %s131, %s132
    %p146 = scmp.eq.s32.totalorder %s15, 1
    %p147 = por %p145, %p146
    %p149 = scmp.ne.s32.totalorder %s132, %s148
    %p150 = scmp.eq.s32.totalorder %s15, 0
    %p151 = por %p149, %p150
    %p152 = scmp.le.s32.totalorder 1, %s9
    %p153 = scmp.lt.s32.totalorder %s9, 3
    %p154 = pnand %p152, %p153
    %p155 = pneg %p154
    // Predicated region
    $region9: #{spatial_transformer.14} parent=5 // pred_check
      _
    $region10: #{spatial_transformer.14} parent=5 // pred_check_branch
      %157 = sbr.rel (%p154) target = $region12
    $region11: #{spatial_transformer.14} parent=5 // pred_region
      %s158 = ssub.s32 %s9, 1
    $region12: #{spatial_transformer.14} parent=5 // pred_fallthru
      _
    %p159 = scmp.lt.s32.totalorder %s9, 2
    // Predicated region
    $region13: #{spatial_transformer.14} parent=5 // pred_check
      %p160 = pneg %p159
    $region14: #{spatial_transformer.14} parent=5 // pred_check_branch
      %162 = sbr.rel (%p160) target = $region16
    $region15: #{spatial_transformer.14} parent=5 // pred_region
      // Predicated region
      $region17: #{spatial_transformer.14} parent=15 // pred_check
        %p163 = pneg %p50
      $region18: #{spatial_transformer.14} parent=15 // pred_check_branch
        %165 = sbr.rel (%p163) target = $region20
      $region19: #{spatial_transformer.14} parent=15 // pred_region
        %s166 = smul.u32 8, %s17
        %p167 = scmp.lt.s32.totalorder %s16, 5
        %s168 = scalar_select %p167, %s16, 5
        %p169 = scmp.lt.s32.totalorder %s166, 7
        %s170 = scalar_select %p169, %s166, 7
        %s171 = smul.addr %s168, 16
        %s172 = sadd.s32 %s170, %s171
        %s173 = smul.addr %s172, 4
        %s174 = scalar_lea.vmem %s0, %s173
        %s175 = smul.u32 8, %s17
      $region20: #{spatial_transformer.14} parent=15 // pred_fallthru
        _
      // Predicated region
      $region21: #{spatial_transformer.14} parent=15 // pred_check
        %p176 = pneg %p80
      $region22: #{spatial_transformer.14} parent=15 // pred_check_branch
        %178 = sbr.rel (%p176) target = $region24
      $region23: #{spatial_transformer.14} parent=15 // pred_region
        %s179 = sadd.s32 %s16, 2
        %s180 = smul.u32 8, %s18
        %p181 = scmp.lt.s32.totalorder %s179, 5
        %s182 = scalar_select %p181, %s179, 5
        %p183 = scmp.lt.s32.totalorder %s180, 7
        %s184 = scalar_select %p183, %s180, 7
        %s185 = smul.addr %s182, 16
        %s186 = sadd.s32 %s184, %s185
        %s187 = smul.addr %s186, 4
        %s188 = scalar_lea.vmem %s1, %s187
        %s189 = sadd.s32 %s16, 2
        %s190 = smul.u32 8, %s18
      $region24: #{spatial_transformer.14} parent=15 // pred_fallthru
        _
      // Predicated region
      $region25: #{spatial_transformer.14} parent=15 // pred_check
        %p191 = pneg %p110
      $region26: #{spatial_transformer.14} parent=15 // pred_check_branch
        %193 = sbr.rel (%p191) target = $region28
      $region27: #{spatial_transformer.14} parent=15 // pred_region
        %s194 = sadd.s32 %s16, 4
        %s195 = smul.u32 8, %s18
        %p196 = scmp.lt.s32.totalorder %s194, 5
        %s197 = scalar_select %p196, %s194, 5
        %p198 = scmp.lt.s32.totalorder %s195, 7
        %s199 = scalar_select %p198, %s195, 7
        %s200 = smul.addr %s197, 16
        %s201 = sadd.s32 %s199, %s200
        %s202 = smul.addr %s201, 4
        %s203 = scalar_lea.vmem %s2, %s202
        %s204 = sadd.s32 %s16, 4
        %s205 = smul.u32 8, %s18
      $region28: #{spatial_transformer.14} parent=15 // pred_fallthru
        _
    $region16: #{spatial_transformer.14} parent=5 // pred_fallthru
      _
    %p206 = scmp.le.s32.totalorder 1, %s9
    %p207 = scmp.lt.s32.totalorder %s9, 3
    %p208 = pnand %p206, %p207
    %p209 = pneg %p208
    // Predicated region
    $region29: #{spatial_transformer.14} parent=5 // pred_check
      _
    $region30: #{spatial_transformer.14} parent=5 // pred_check_branch
      %211 = sbr.rel (%p208) target = $region32
    $region31: #{spatial_transformer.14} parent=5 // pred_region
      %s212 = ssub.s32 %s9, 1
      %s213 = smul.u32 8, %s20
      %p214 = scmp.lt.s32.totalorder %s19, 5
      %s215 = scalar_select %p214, %s19, 5
      %p216 = scmp.lt.s32.totalorder %s213, 7
      %s217 = scalar_select %p216, %s213, 7
      %s218 = smul.addr %s215, 16
      %s219 = sadd.s32 %s217, %s218
      %s220 = smul.addr %s219, 4
      %s221 = scalar_lea.vmem %s0, %s220
      %p222 = pneg %p56
      %p223 = pneg %p53
      %s224 = sadd.s32 %s19, 2
      %s225 = smul.u32 8, %s21
      %p226 = scmp.lt.s32.totalorder %s224, 5
      %s227 = scalar_select %p226, %s224, 5
      %p228 = scmp.lt.s32.totalorder %s225, 7
      %s229 = scalar_select %p228, %s225, 7
      %s230 = smul.addr %s227, 16
      %s231 = sadd.s32 %s229, %s230
      %s232 = smul.addr %s231, 4
      %s233 = scalar_lea.vmem %s1, %s232
      %p234 = pneg %p86
      %p235 = pneg %p83
      %s236 = sadd.s32 %s19, 4
      %s237 = smul.u32 8, %s21
      %p238 = scmp.lt.s32.totalorder %s236, 5
      %s239 = scalar_select %p238, %s236, 5
      %p240 = scmp.lt.s32.totalorder %s237, 7
      %s241 = scalar_select %p240, %s237, 7
      %s242 = smul.addr %s239, 16
      %s243 = sadd.s32 %s241, %s242
      %s244 = smul.addr %s243, 4
      %s245 = scalar_lea.vmem %s2, %s244
      %p246 = pneg %p116
      %p247 = pneg %p113
      %p248 = pneg %p144
      %p249 = pneg %p141
      %s250 = smul.u32 8, %s20
      %p251 = scmp.lt.s32.totalorder %s19, 1
      %s252 = scalar_select %p251, %s19, 1
      %p253 = scmp.lt.s32.totalorder %s250, 7
      %s254 = scalar_select %p253, %s250, 7
      %s255 = smul.addr %s252, 16
      %s256 = sadd.s32 %s254, %s255
      %s257 = smul.addr %s256, 4
      %s258 = scalar_lea.vmem %s3, %s257
      %s259 = smul.u32 8, %s20
      %p260 = scmp.lt.s32.totalorder %s19, 5
      %s261 = scalar_select %p260, %s19, 5
      %p262 = scmp.lt.s32.totalorder %s259, 7
      %s263 = scalar_select %p262, %s259, 7
      %s264 = smul.addr %s261, 16
      %s265 = sadd.s32 %s263, %s264
      %s266 = smul.addr %s265, 4
      %s267 = scalar_lea.vmem %s0, %s266
      %s268 = smul.u32 8, %s20
      %s269 = sadd.s32 %s19, 2
      %s270 = smul.u32 8, %s21
      %p271 = scmp.lt.s32.totalorder %s269, 5
      %s272 = scalar_select %p271, %s269, 5
      %p273 = scmp.lt.s32.totalorder %s270, 7
      %s274 = scalar_select %p273, %s270, 7
      %s275 = smul.addr %s272, 16
      %s276 = sadd.s32 %s274, %s275
      %s277 = smul.addr %s276, 4
      %s278 = scalar_lea.vmem %s1, %s277
      %s279 = sadd.s32 %s19, 2
      %s280 = smul.u32 8, %s21
      %s281 = sadd.s32 %s19, 4
      %s282 = smul.u32 8, %s21
      %p283 = scmp.lt.s32.totalorder %s281, 5
      %s284 = scalar_select %p283, %s281, 5
      %p285 = scmp.lt.s32.totalorder %s282, 7
      %s286 = scalar_select %p285, %s282, 7
      %s287 = smul.addr %s284, 16
      %s288 = sadd.s32 %s286, %s287
      %s289 = smul.addr %s288, 4
      %s290 = scalar_lea.vmem %s2, %s289
      %s291 = sadd.s32 %s19, 4
      %s292 = smul.u32 8, %s21
      %s293 = smul.u32 8, %s20
      %p294 = scmp.lt.s32.totalorder %s19, 1
      %s295 = scalar_select %p294, %s19, 1
      %p296 = scmp.lt.s32.totalorder %s293, 7
      %s297 = scalar_select %p296, %s293, 7
      %s298 = smul.addr %s295, 16
      %s299 = sadd.s32 %s297, %s298
      %s300 = smul.addr %s299, 4
      %s301 = scalar_lea.vmem %s3, %s300
      %s302 = smul.u32 8, %s20
      %p304 = scmp.eq.s32.totalorder %s21, 0
      // Predicated region
      $region33: #{spatial_transformer.14} parent=31 // pred_check
        %p305 = pneg %p304
      $region34: #{spatial_transformer.14} parent=31 // pred_check_branch
        %307 = sbr.rel (%p305) target = $region36
      $region35: #{spatial_transformer.14} parent=31 // pred_region
        %vm308 = vcmask 7168
        %309 = vst.msk [vmem:[#allocation2] sm:$0xff] %vm308, -inf
        %310 = vst.msk [vmem:[#allocation2 + $0x8] sm:$0xff] %vm308, -inf
        %311 = vst.msk [vmem:[#allocation2 + $0x10] sm:$0xff] %vm308, -inf
        %312 = vst.msk [vmem:[#allocation2 + $0x18] sm:$0xff] %vm308, -inf
        %313 = vst.msk [vmem:[#allocation2 + $0x20] sm:$0xff] %vm308, -inf
        %314 = vst.msk [vmem:[#allocation2 + $0x28] sm:$0xff] %vm308, -inf
        %315 = vst.msk [vmem:[#allocation2 + $0x30] sm:$0xff] %vm308, -inf
        %316 = vst.msk [vmem:[#allocation2 + $0x38] sm:$0xff] %vm308, -inf
        %317 = vst.msk [vmem:[#allocation2 + $0x40] sm:$0xff] %vm308, -inf
        %318 = vst.msk [vmem:[#allocation2 + $0x48] sm:$0xff] %vm308, -inf
        %319 = vst.msk [vmem:[#allocation2 + $0x50] sm:$0xff] %vm308, -inf
        %320 = vst.msk [vmem:[#allocation2 + $0x58] sm:$0xff] %vm308, -inf
        %321 = vst.msk [vmem:[#allocation2 + $0x60] sm:$0xff] %vm308, -inf
        %322 = vst.msk [vmem:[#allocation2 + $0x68] sm:$0xff] %vm308, -inf
        %323 = vst.msk [vmem:[#allocation2 + $0x70] sm:$0xff] %vm308, -inf
        %324 = vst.msk [vmem:[#allocation2 + $0x78] sm:$0xff] %vm308, -inf
        %325 = vst.msk [vmem:[#allocation3] sm:$0xff] %vm308, 0.0
        %326 = vst.msk [vmem:[#allocation3 + $0x8] sm:$0xff] %vm308, 0.0
        %327 = vst.msk [vmem:[#allocation3 + $0x10] sm:$0xff] %vm308, 0.0
        %328 = vst.msk [vmem:[#allocation3 + $0x18] sm:$0xff] %vm308, 0.0
        %329 = vst.msk [vmem:[#allocation3 + $0x20] sm:$0xff] %vm308, 0.0
        %330 = vst.msk [vmem:[#allocation3 + $0x28] sm:$0xff] %vm308, 0.0
        %331 = vst.msk [vmem:[#allocation3 + $0x30] sm:$0xff] %vm308, 0.0
        %332 = vst.msk [vmem:[#allocation3 + $0x38] sm:$0xff] %vm308, 0.0
        %333 = vst.msk [vmem:[#allocation3 + $0x40] sm:$0xff] %vm308, 0.0
        %334 = vst.msk [vmem:[#allocation3 + $0x48] sm:$0xff] %vm308, 0.0
        %335 = vst.msk [vmem:[#allocation3 + $0x50] sm:$0xff] %vm308, 0.0
        %336 = vst.msk [vmem:[#allocation3 + $0x58] sm:$0xff] %vm308, 0.0
        %337 = vst.msk [vmem:[#allocation3 + $0x60] sm:$0xff] %vm308, 0.0
        %338 = vst.msk [vmem:[#allocation3 + $0x68] sm:$0xff] %vm308, 0.0
        %339 = vst.msk [vmem:[#allocation3 + $0x70] sm:$0xff] %vm308, 0.0
        %340 = vst.msk [vmem:[#allocation3 + $0x78] sm:$0xff] %vm308, 0.0
        %vm341 = vcmask 130048
        %342 = vst.msk [vmem:[#allocation4] sm:$0xff] %vm341, 0.0
        %343 = vst.msk [vmem:[#allocation4 + $0x8] sm:$0xff] %vm341, 0.0
        %344 = vst.msk [vmem:[#allocation4 + $0x10] sm:$0xff] %vm341, 0.0
        %345 = vst.msk [vmem:[#allocation4 + $0x18] sm:$0xff] %vm341, 0.0
        %346 = vst.msk [vmem:[#allocation4 + $0x20] sm:$0xff] %vm341, 0.0
        %347 = vst.msk [vmem:[#allocation4 + $0x28] sm:$0xff] %vm341, 0.0
        %348 = vst.msk [vmem:[#allocation4 + $0x30] sm:$0xff] %vm341, 0.0
        %349 = vst.msk [vmem:[#allocation4 + $0x38] sm:$0xff] %vm341, 0.0
        %350 = vst.msk [vmem:[#allocation4 + $0x40] sm:$0xff] %vm341, 0.0
        %351 = vst.msk [vmem:[#allocation4 + $0x48] sm:$0xff] %vm341, 0.0
        %352 = vst.msk [vmem:[#allocation4 + $0x50] sm:$0xff] %vm341, 0.0
        %353 = vst.msk [vmem:[#allocation4 + $0x58] sm:$0xff] %vm341, 0.0
        %354 = vst.msk [vmem:[#allocation4 + $0x60] sm:$0xff] %vm341, 0.0
        %355 = vst.msk [vmem:[#allocation4 + $0x68] sm:$0xff] %vm341, 0.0
        %356 = vst.msk [vmem:[#allocation4 + $0x70] sm:$0xff] %vm341, 0.0
        %357 = vst.msk [vmem:[#allocation4 + $0x78] sm:$0xff] %vm341, 0.0
      $region36: #{spatial_transformer.14} parent=31 // pred_fallthru
        _
      %v358 = vld [vmem:[%s267] sm:$0xf]
      %v359 = vld [vmem:[%s267 + $0x4] sm:$0xf]
      %v360 = vld [vmem:[%s267 + $0x8] sm:$0xf]
      %v361 = vld [vmem:[%s267 + $0xc] sm:$0xf]
      %v362 = vld [vmem:[%s267 + $0x10] sm:$0xf]
      %v363 = vld [vmem:[%s267 + $0x14] sm:$0xf]
      %v364 = vld [vmem:[%s267 + $0x18] sm:$0xf]
      %v365 = vld [vmem:[%s267 + $0x1c] sm:$0xf]
      %v366 = vld [vmem:[%s267 + $0x20] sm:$0xf]
      %v367 = vld [vmem:[%s267 + $0x24] sm:$0xf]
      %v368 = vld [vmem:[%s267 + $0x28] sm:$0xf]
      %v369 = vld [vmem:[%s267 + $0x2c] sm:$0xf]
      %v370 = vld [vmem:[%s267 + $0x30] sm:$0xf]
      %v371 = vld [vmem:[%s267 + $0x34] sm:$0xf]
      %v372 = vld [vmem:[%s267 + $0x38] sm:$0xf]
      %v373 = vld [vmem:[%s267 + $0x3c] sm:$0xf]
      %v374 = vld [vmem:[%s278] sm:$0xf]
      %v375 = vld [vmem:[%s278 + $0x4] sm:$0xf]
      %v376 = vld [vmem:[%s278 + $0x8] sm:$0xf]
      %v377 = vld [vmem:[%s278 + $0xc] sm:$0xf]
      %v378 = vld [vmem:[%s278 + $0x10] sm:$0xf]
      %v379 = vld [vmem:[%s278 + $0x14] sm:$0xf]
      %v380 = vld [vmem:[%s278 + $0x18] sm:$0xf]
      %v381 = vld [vmem:[%s278 + $0x1c] sm:$0xf]
      %v382 = vld [vmem:[%s278 + $0x20] sm:$0xf]
      %v383 = vld [vmem:[%s278 + $0x24] sm:$0xf]
      %v384 = vld [vmem:[%s278 + $0x28] sm:$0xf]
      %v385 = vld [vmem:[%s278 + $0x2c] sm:$0xf]
      %v386 = vld [vmem:[%s278 + $0x30] sm:$0xf]
      %v387 = vld [vmem:[%s278 + $0x34] sm:$0xf]
      %v388 = vld [vmem:[%s278 + $0x38] sm:$0xf]
      %v389 = vld [vmem:[%s278 + $0x3c] sm:$0xf]
      %v390 = vld [vmem:[%s290] sm:$0xf]
      %v391 = vld [vmem:[%s290 + $0x4] sm:$0xf]
      %v392 = vld [vmem:[%s290 + $0x8] sm:$0xf]
      %v393 = vld [vmem:[%s290 + $0xc] sm:$0xf]
      %v394 = vld [vmem:[%s290 + $0x10] sm:$0xf]
      %v395 = vld [vmem:[%s290 + $0x14] sm:$0xf]
      %v396 = vld [vmem:[%s290 + $0x18] sm:$0xf]
      %v397 = vld [vmem:[%s290 + $0x1c] sm:$0xf]
      %v398 = vld [vmem:[%s290 + $0x20] sm:$0xf]
      %v399 = vld [vmem:[%s290 + $0x24] sm:$0xf]
      %v400 = vld [vmem:[%s290 + $0x28] sm:$0xf]
      %v401 = vld [vmem:[%s290 + $0x2c] sm:$0xf]
      %v402 = vld [vmem:[%s290 + $0x30] sm:$0xf]
      %v403 = vld [vmem:[%s290 + $0x34] sm:$0xf]
      %v404 = vld [vmem:[%s290 + $0x38] sm:$0xf]
      %v405 = vld [vmem:[%s290 + $0x3c] sm:$0xf]
      %v414 = vunpack.c.l.b16 %v358
      %v415 = vunpack.c.l.b16 %v359
      %v416 = vunpack.c.l.b16 %v360
      %v417 = vunpack.c.l.b16 %v361
      %v418 = vunpack.c.l.b16 %v362
      %v419 = vunpack.c.l.b16 %v363
      %v420 = vunpack.c.l.b16 %v364
      %v421 = vunpack.c.l.b16 %v365
      %v422 = vpack.c.b16 %v415, %v414
      %v423 = vpack.c.b16 %v417, %v416
      %v424 = vpack.c.b16 %v419, %v418
      %v425 = vpack.c.b16 %v421, %v420
      %v434 = vunpack.c.l.b16 %v374
      %v435 = vunpack.c.l.b16 %v375
      %v436 = vunpack.c.l.b16 %v376
      %v437 = vunpack.c.l.b16 %v377
      %v438 = vunpack.c.l.b16 %v378
      %v439 = vunpack.c.l.b16 %v379
      %v440 = vunpack.c.l.b16 %v380
      %v441 = vunpack.c.l.b16 %v381
      %v442 = vpack.c.b16 %v435, %v434
      %v443 = vpack.c.b16 %v437, %v436
      %v444 = vpack.c.b16 %v439, %v438
      %v445 = vpack.c.b16 %v441, %v440
      %vm446 = vcmask 130048
      %v448 = vsel %vm446, %v422, 0
      %v451 = vsel %vm446, %v423, 0
      %v454 = vsel %vm446, %v424, 0
      %v457 = vsel %vm446, %v425, 0
      %v460 = vsel %vm446, %v442, 0
      %v463 = vsel %vm446, %v443, 0
      %v466 = vsel %vm446, %v444, 0
      %v469 = vsel %vm446, %v445, 0
      %471 = vmatprep.subr.bf16.mxu0 0
      %472 = vmatpush1.bf16.xpose.msra.mxu0 0
      %473 = vmatprep.subr.bf16.mxu0 0
      %474 = vmatpush1.bf16.xpose.msra.mxu0 0
      %475 = vmatprep.subr.bf16.mxu0 0
      %476 = vmatpush1.bf16.xpose.msra.mxu0 0
      %477 = vmatprep.subr.bf16.mxu0 0
      %478 = vmatpush1.bf16.xpose.msra.mxu0 0
      %479 = vmatprep.subr.bf16.mxu0 0
      %480 = vmatpush1.bf16.xpose.msra.mxu0 %v469
      %481 = vmatprep.subr.bf16.mxu0 0
      %482 = vmatpush1.bf16.xpose.msra.mxu0 %v466
      %483 = vmatprep.subr.bf16.mxu0 0
      %484 = vmatpush1.bf16.xpose.msra.mxu0 %v463
      %485 = vmatprep.subr.bf16.mxu0 0
      %486 = vmatpush1.bf16.xpose.msra.mxu0 %v460
      %487 = vmatprep.subr.bf16.mxu0 0
      %488 = vmatpush2.bf16.xpose.msra.mxu0 0
      %489 = vmatprep.subr.bf16.mxu0 0
      %490 = vmatpush2.bf16.xpose.msra.mxu0 0
      %491 = vmatprep.subr.bf16.mxu0 0
      %492 = vmatpush2.bf16.xpose.msra.mxu0 0
      %493 = vmatprep.subr.bf16.mxu0 0
      %494 = vmatpush2.bf16.xpose.msra.mxu0 0
      %495 = vmatprep.subr.bf16.mxu0 0
      %496 = vmatpush2.bf16.xpose.msra.mxu0 0
      %497 = vmatprep.subr.bf16.mxu0 0
      %498 = vmatpush2.bf16.xpose.msra.mxu0 0
      %499 = vmatprep.subr.bf16.mxu0 0
      %500 = vmatpush2.bf16.xpose.msra.mxu0 0
      %501 = vmatprep.subr.bf16.mxu0 0
      %502 = vmatpush2.bf16.xpose.msra.mxu0 0
      %503 = vmatprep.mubr.bf16.mxu0 0
      %504 = vmatmul.mubr.bf16.gmra.mxu0 %v448
      %v505 = vpop.f32.mrf.mxu0
      %v506 = vadd.f32 0.0, %v505
      %v507 = vpop.f32.mrf.mxu0
      %v508 = vpop.f32.mrf.mxu0
      %v509 = vadd.f32 0.0, %v508
      %v510 = vpop.f32.mrf.mxu0
      %511 = vmatprep.mubr.bf16.mxu0 0
      %512 = vmatmul.mubr.bf16.gmra.mxu0 %v451
      %v513 = vpop.f32.mrf.mxu0
      %v514 = vadd.f32 0.0, %v513
      %v515 = vpop.f32.mrf.mxu0
      %v516 = vpop.f32.mrf.mxu0
      %v517 = vadd.f32 0.0, %v516
      %v518 = vpop.f32.mrf.mxu0
      %519 = vmatprep.mubr.bf16.mxu0 0
      %520 = vmatmul.mubr.bf16.gmra.mxu0 %v454
      %v521 = vpop.f32.mrf.mxu0
      %v522 = vadd.f32 0.0, %v521
      %v523 = vpop.f32.mrf.mxu0
      %v524 = vpop.f32.mrf.mxu0
      %v525 = vadd.f32 0.0, %v524
      %v526 = vpop.f32.mrf.mxu0
      %527 = vmatprep.mubr.bf16.mxu0 0
      %528 = vmatmul.mubr.bf16.gmra.mxu0 %v457
      %v529 = vpop.f32.mrf.mxu0
      %v530 = vadd.f32 0.0, %v529
      %v531 = vpop.f32.mrf.mxu0
      %v532 = vpop.f32.mrf.mxu0
      %v533 = vadd.f32 0.0, %v532
      %v534 = vpop.f32.mrf.mxu0
      %535 = vdwg.mxu0
      %v544 = vunpack.c.l.b16 %v366
      %v545 = vunpack.c.l.b16 %v367
      %v546 = vunpack.c.l.b16 %v368
      %v547 = vunpack.c.l.b16 %v369
      %v548 = vunpack.c.l.b16 %v370
      %v549 = vunpack.c.l.b16 %v371
      %v550 = vunpack.c.l.b16 %v372
      %v551 = vunpack.c.l.b16 %v373
      %v552 = vpack.c.b16 %v545, %v544
      %v553 = vpack.c.b16 %v547, %v546
      %v554 = vpack.c.b16 %v549, %v548
      %v555 = vpack.c.b16 %v551, %v550
      %v564 = vunpack.c.l.b16 %v382
      %v565 = vunpack.c.l.b16 %v383
      %v566 = vunpack.c.l.b16 %v384
      %v567 = vunpack.c.l.b16 %v385
      %v568 = vunpack.c.l.b16 %v386
      %v569 = vunpack.c.l.b16 %v387
      %v570 = vunpack.c.l.b16 %v388
      %v571 = vunpack.c.l.b16 %v389
      %v572 = vpack.c.b16 %v565, %v564
      %v573 = vpack.c.b16 %v567, %v566
      %v574 = vpack.c.b16 %v569, %v568
      %v575 = vpack.c.b16 %v571, %v570
      %v577 = vsel %vm446, %v552, 0
      %v580 = vsel %vm446, %v553, 0
      %v583 = vsel %vm446, %v554, 0
      %v586 = vsel %vm446, %v555, 0
      %v589 = vsel %vm446, %v572, 0
      %v592 = vsel %vm446, %v573, 0
      %v595 = vsel %vm446, %v574, 0
      %v598 = vsel %vm446, %v575, 0
      %600 = vmatprep.subr.bf16.mxu0 0
      %601 = vmatpush1.bf16.xpose.msra.mxu0 0
      %602 = vmatprep.subr.bf16.mxu0 0
      %603 = vmatpush1.bf16.xpose.msra.mxu0 0
      %604 = vmatprep.subr.bf16.mxu0 0
      %605 = vmatpush1.bf16.xpose.msra.mxu0 0
      %606 = vmatprep.subr.bf16.mxu0 0
      %607 = vmatpush1.bf16.xpose.msra.mxu0 0
      %608 = vmatprep.subr.bf16.mxu0 0
      %609 = vmatpush1.bf16.xpose.msra.mxu0 %v598
      %610 = vmatprep.subr.bf16.mxu0 0
      %611 = vmatpush1.bf16.xpose.msra.mxu0 %v595
      %612 = vmatprep.subr.bf16.mxu0 0
      %613 = vmatpush1.bf16.xpose.msra.mxu0 %v592
      %614 = vmatprep.subr.bf16.mxu0 0
      %615 = vmatpush1.bf16.xpose.msra.mxu0 %v589
      %616 = vmatprep.subr.bf16.mxu0 0
      %617 = vmatpush2.bf16.xpose.msra.mxu0 0
      %618 = vmatprep.subr.bf16.mxu0 0
      %619 = vmatpush2.bf16.xpose.msra.mxu0 0
      %620 = vmatprep.subr.bf16.mxu0 0
      %621 = vmatpush2.bf16.xpose.msra.mxu0 0
      %622 = vmatprep.subr.bf16.mxu0 0
      %623 = vmatpush2.bf16.xpose.msra.mxu0 0
      %624 = vmatprep.subr.bf16.mxu0 0
      %625 = vmatpush2.bf16.xpose.msra.mxu0 0
      %626 = vmatprep.subr.bf16.mxu0 0
      %627 = vmatpush2.bf16.xpose.msra.mxu0 0
      %628 = vmatprep.subr.bf16.mxu0 0
      %629 = vmatpush2.bf16.xpose.msra.mxu0 0
      %630 = vmatprep.subr.bf16.mxu0 0
      %631 = vmatpush2.bf16.xpose.msra.mxu0 0
      %632 = vmatprep.mubr.bf16.mxu0 0
      %633 = vmatmul.mubr.bf16.gmra.mxu0 %v577
      %v634 = vpop.f32.mrf.mxu0
      %v635 = vadd.f32 0.0, %v634
      %v636 = vpop.f32.mrf.mxu0
      %v637 = vpop.f32.mrf.mxu0
      %v638 = vadd.f32 0.0, %v637
      %v639 = vpop.f32.mrf.mxu0
      %640 = vmatprep.mubr.bf16.mxu0 0
      %641 = vmatmul.mubr.bf16.gmra.mxu0 %v580
      %v642 = vpop.f32.mrf.mxu0
      %v643 = vadd.f32 0.0, %v642
      %v644 = vpop.f32.mrf.mxu0
      %v645 = vpop.f32.mrf.mxu0
      %v646 = vadd.f32 0.0, %v645
      %v647 = vpop.f32.mrf.mxu0
      %648 = vmatprep.mubr.bf16.mxu0 0
      %649 = vmatmul.mubr.bf16.gmra.mxu0 %v583
      %v650 = vpop.f32.mrf.mxu0
      %v651 = vadd.f32 0.0, %v650
      %v652 = vpop.f32.mrf.mxu0
      %v653 = vpop.f32.mrf.mxu0
      %v654 = vadd.f32 0.0, %v653
      %v655 = vpop.f32.mrf.mxu0
      %656 = vmatprep.mubr.bf16.mxu0 0
      %657 = vmatmul.mubr.bf16.gmra.mxu0 %v586
      %v658 = vpop.f32.mrf.mxu0
      %v659 = vadd.f32 0.0, %v658
      %v660 = vpop.f32.mrf.mxu0
      %v661 = vpop.f32.mrf.mxu0
      %v662 = vadd.f32 0.0, %v661
      %v663 = vpop.f32.mrf.mxu0
      %664 = vdwg.mxu0
      %v665 = vld [vmem:[#allocation2] sm:$0xff]
      %v666 = vld [vmem:[#allocation2 + $0x8] sm:$0xff]
      %v667 = vld [vmem:[#allocation2 + $0x10] sm:$0xff]
      %v668 = vld [vmem:[#allocation2 + $0x18] sm:$0xff]
      %v669 = vld [vmem:[#allocation2 + $0x20] sm:$0xff]
      %v670 = vld [vmem:[#allocation2 + $0x28] sm:$0xff]
      %v671 = vld [vmem:[#allocation2 + $0x30] sm:$0xff]
      %v672 = vld [vmem:[#allocation2 + $0x38] sm:$0xff]
      %v673 = vld [vmem:[#allocation2 + $0x40] sm:$0xff]
      %v674 = vld [vmem:[#allocation2 + $0x48] sm:$0xff]
      %v675 = vld [vmem:[#allocation2 + $0x50] sm:$0xff]
      %v676 = vld [vmem:[#allocation2 + $0x58] sm:$0xff]
      %v677 = vld [vmem:[#allocation2 + $0x60] sm:$0xff]
      %v678 = vld [vmem:[#allocation2 + $0x68] sm:$0xff]
      %v679 = vld [vmem:[#allocation2 + $0x70] sm:$0xff]
      %v680 = vld [vmem:[#allocation2 + $0x78] sm:$0xff]
      %vm681 = vcmask 523264
      %v682 = vsel %vm681, %v506, -inf
      %683 = vmax.xlane.f32.xlu0 %v682
      %v684 = vpop.xlane.xlu0 %683
      %v685 = vsel %vm681, %v509, -inf
      %686 = vmax.xlane.f32.xlu0 %v685
      %v687 = vpop.xlane.xlu0 %686
      %v688 = vsel %vm681, %v514, -inf
      %689 = vmax.xlane.f32.xlu0 %v688
      %v690 = vpop.xlane.xlu0 %689
      %v691 = vsel %vm681, %v517, -inf
      %692 = vmax.xlane.f32.xlu0 %v691
      %v693 = vpop.xlane.xlu0 %692
      %v694 = vsel %vm681, %v522, -inf
      %695 = vmax.xlane.f32.xlu0 %v694
      %v696 = vpop.xlane.xlu0 %695
      %v697 = vsel %vm681, %v525, -inf
      %698 = vmax.xlane.f32.xlu0 %v697
      %v699 = vpop.xlane.xlu0 %698
      %v700 = vsel %vm681, %v530, -inf
      %701 = vmax.xlane.f32.xlu0 %v700
      %v702 = vpop.xlane.xlu0 %701
      %v703 = vsel %vm681, %v533, -inf
      %704 = vmax.xlane.f32.xlu0 %v703
      %v705 = vpop.xlane.xlu0 %704
      %v706 = vsel %vm681, %v635, -inf
      %707 = vmax.xlane.f32.xlu0 %v706
      %v708 = vpop.xlane.xlu0 %707
      %v709 = vsel %vm681, %v638, -inf
      %710 = vmax.xlane.f32.xlu0 %v709
      %v711 = vpop.xlane.xlu0 %710
      %v712 = vsel %vm681, %v643, -inf
      %713 = vmax.xlane.f32.xlu0 %v712
      %v714 = vpop.xlane.xlu0 %713
      %v715 = vsel %vm681, %v646, -inf
      %716 = vmax.xlane.f32.xlu0 %v715
      %v717 = vpop.xlane.xlu0 %716
      %v718 = vsel %vm681, %v651, -inf
      %719 = vmax.xlane.f32.xlu0 %v718
      %v720 = vpop.xlane.xlu0 %719
      %v721 = vsel %vm681, %v654, -inf
      %722 = vmax.xlane.f32.xlu0 %v721
      %v723 = vpop.xlane.xlu0 %722
      %v724 = vsel %vm681, %v659, -inf
      %725 = vmax.xlane.f32.xlu0 %v724
      %v726 = vpop.xlane.xlu0 %725
      %v727 = vsel %vm681, %v662, -inf
      %728 = vmax.xlane.f32.xlu0 %v727
      %v729 = vpop.xlane.xlu0 %728
      %v730 = vmax.f32 %v665, %v684
      %v731 = vmax.f32 %v666, %v687
      %v732 = vmax.f32 %v667, %v690
      %v733 = vmax.f32 %v668, %v693
      %v734 = vmax.f32 %v669, %v696
      %v735 = vmax.f32 %v670, %v699
      %v736 = vmax.f32 %v671, %v702
      %v737 = vmax.f32 %v672, %v705
      %v738 = vmax.f32 %v673, %v708
      %v739 = vmax.f32 %v674, %v711
      %v740 = vmax.f32 %v675, %v714
      %v741 = vmax.f32 %v676, %v717
      %v742 = vmax.f32 %v677, %v720
      %v743 = vmax.f32 %v678, %v723
      %v744 = vmax.f32 %v679, %v726
      %v745 = vmax.f32 %v680, %v729
      %v746 = vsub.f32 %v665, %v730
      %v747 = vsub.f32 %v666, %v731
      %v748 = vsub.f32 %v667, %v732
      %v749 = vsub.f32 %v668, %v733
      %v750 = vsub.f32 %v669, %v734
      %v751 = vsub.f32 %v670, %v735
      %v752 = vsub.f32 %v671, %v736
      %v753 = vsub.f32 %v672, %v737
      %v754 = vsub.f32 %v673, %v738
      %v755 = vsub.f32 %v674, %v739
      %v756 = vsub.f32 %v675, %v740
      %v757 = vsub.f32 %v676, %v741
      %v758 = vsub.f32 %v677, %v742
      %v759 = vsub.f32 %v678, %v743
      %v760 = vsub.f32 %v679, %v744
      %v761 = vsub.f32 %v680, %v745
      %v762 = vmul.f32 %v746, 1.442695
      %v763 = vpow.pop %v762
      %v764 = vmul.f32 %v747, 1.442695
      %v765 = vpow.pop %v764
      %v766 = vmul.f32 %v748, 1.442695
      %v767 = vpow.pop %v766
      %v768 = vmul.f32 %v749, 1.442695
      %v769 = vpow.pop %v768
      %v770 = vmul.f32 %v750, 1.442695
      %v771 = vpow.pop %v770
      %v772 = vmul.f32 %v751, 1.442695
      %v773 = vpow.pop %v772
      %v774 = vmul.f32 %v752, 1.442695
      %v775 = vpow.pop %v774
      %v776 = vmul.f32 %v753, 1.442695
      %v777 = vpow.pop %v776
      %v778 = vmul.f32 %v754, 1.442695
      %v779 = vpow.pop %v778
      %v780 = vmul.f32 %v755, 1.442695
      %v781 = vpow.pop %v780
      %v782 = vmul.f32 %v756, 1.442695
      %v783 = vpow.pop %v782
      %v784 = vmul.f32 %v757, 1.442695
      %v785 = vpow.pop %v784
      %v786 = vmul.f32 %v758, 1.442695
      %v787 = vpow.pop %v786
      %v788 = vmul.f32 %v759, 1.442695
      %v789 = vpow.pop %v788
      %v790 = vmul.f32 %v760, 1.442695
      %v791 = vpow.pop %v790
      %v792 = vmul.f32 %v761, 1.442695
      %v793 = vpow.pop %v792
      %795 = vset.pattern.permute.xlu0 0
      %796 = vperm.xlu0 %795, %v730
      %v797 = vpop.permute.xlu0 %796
      %800 = vset.pattern.permute.xlu0 0
      %801 = vperm.xlu0 %800, %v731
      %v802 = vpop.permute.xlu0 %801
      %805 = vset.pattern.permute.xlu0 0
      %806 = vperm.xlu0 %805, %v732
      %v807 = vpop.permute.xlu0 %806
      %810 = vset.pattern.permute.xlu0 0
      %811 = vperm.xlu0 %810, %v733
      %v812 = vpop.permute.xlu0 %811
      %815 = vset.pattern.permute.xlu0 0
      %816 = vperm.xlu0 %815, %v734
      %v817 = vpop.permute.xlu0 %816
      %820 = vset.pattern.permute.xlu0 0
      %821 = vperm.xlu0 %820, %v735
      %v822 = vpop.permute.xlu0 %821
      %825 = vset.pattern.permute.xlu0 0
      %826 = vperm.xlu0 %825, %v736
      %v827 = vpop.permute.xlu0 %826
      %830 = vset.pattern.permute.xlu0 0
      %831 = vperm.xlu0 %830, %v737
      %v832 = vpop.permute.xlu0 %831
      %835 = vset.pattern.permute.xlu0 0
      %836 = vperm.xlu0 %835, %v738
      %v837 = vpop.permute.xlu0 %836
      %840 = vset.pattern.permute.xlu0 0
      %841 = vperm.xlu0 %840, %v739
      %v842 = vpop.permute.xlu0 %841
      %845 = vset.pattern.permute.xlu0 0
      %846 = vperm.xlu0 %845, %v740
      %v847 = vpop.permute.xlu0 %846
      %850 = vset.pattern.permute.xlu0 0
      %851 = vperm.xlu0 %850, %v741
      %v852 = vpop.permute.xlu0 %851
      %855 = vset.pattern.permute.xlu0 0
      %856 = vperm.xlu0 %855, %v742
      %v857 = vpop.permute.xlu0 %856
      %860 = vset.pattern.permute.xlu0 0
      %861 = vperm.xlu0 %860, %v743
      %v862 = vpop.permute.xlu0 %861
      %865 = vset.pattern.permute.xlu0 0
      %866 = vperm.xlu0 %865, %v744
      %v867 = vpop.permute.xlu0 %866
      %870 = vset.pattern.permute.xlu0 0
      %871 = vperm.xlu0 %870, %v745
      %v872 = vpop.permute.xlu0 %871
      %v874 = vsub.f32 %v506, %v797
      %v875 = vsub.f32 %v509, %v802
      %v876 = vsub.f32 %v514, %v807
      %v877 = vsub.f32 %v517, %v812
      %v878 = vsub.f32 %v522, %v817
      %v879 = vsub.f32 %v525, %v822
      %v880 = vsub.f32 %v530, %v827
      %v881 = vsub.f32 %v533, %v832
      %v882 = vsub.f32 %v635, %v837
      %v883 = vsub.f32 %v638, %v842
      %v884 = vsub.f32 %v643, %v847
      %v885 = vsub.f32 %v646, %v852
      %v886 = vsub.f32 %v651, %v857
      %v887 = vsub.f32 %v654, %v862
      %v888 = vsub.f32 %v659, %v867
      %v889 = vsub.f32 %v662, %v872
      %v890 = vmul.f32 %v874, 1.442695
      %v891 = vpow.pop %v890
      %v892 = vmul.f32 %v875, 1.442695
      %v893 = vpow.pop %v892
      %v894 = vmul.f32 %v876, 1.442695
      %v895 = vpow.pop %v894
      %v896 = vmul.f32 %v877, 1.442695
      %v897 = vpow.pop %v896
      %v898 = vmul.f32 %v878, 1.442695
      %v899 = vpow.pop %v898
      %v900 = vmul.f32 %v879, 1.442695
      %v901 = vpow.pop %v900
      %v902 = vmul.f32 %v880, 1.442695
      %v903 = vpow.pop %v902
      %v904 = vmul.f32 %v881, 1.442695
      %v905 = vpow.pop %v904
      %v906 = vmul.f32 %v882, 1.442695
      %v907 = vpow.pop %v906
      %v908 = vmul.f32 %v883, 1.442695
      %v909 = vpow.pop %v908
      %v910 = vmul.f32 %v884, 1.442695
      %v911 = vpow.pop %v910
      %v912 = vmul.f32 %v885, 1.442695
      %v913 = vpow.pop %v912
      %v914 = vmul.f32 %v886, 1.442695
      %v915 = vpow.pop %v914
      %v916 = vmul.f32 %v887, 1.442695
      %v917 = vpow.pop %v916
      %v918 = vmul.f32 %v888, 1.442695
      %v919 = vpow.pop %v918
      %v920 = vmul.f32 %v889, 1.442695
      %v921 = vpow.pop %v920
      %v922 = vld [vmem:[#allocation3] sm:$0xff]
      %v923 = vld [vmem:[#allocation3 + $0x8] sm:$0xff]
      %v924 = vld [vmem:[#allocation3 + $0x10] sm:$0xff]
      %v925 = vld [vmem:[#allocation3 + $0x18] sm:$0xff]
      %v926 = vld [vmem:[#allocation3 + $0x20] sm:$0xff]
      %v927 = vld [vmem:[#allocation3 + $0x28] sm:$0xff]
      %v928 = vld [vmem:[#allocation3 + $0x30] sm:$0xff]
      %v929 = vld [vmem:[#allocation3 + $0x38] sm:$0xff]
      %v930 = vld [vmem:[#allocation3 + $0x40] sm:$0xff]
      %v931 = vld [vmem:[#allocation3 + $0x48] sm:$0xff]
      %v932 = vld [vmem:[#allocation3 + $0x50] sm:$0xff]
      %v933 = vld [vmem:[#allocation3 + $0x58] sm:$0xff]
      %v934 = vld [vmem:[#allocation3 + $0x60] sm:$0xff]
      %v935 = vld [vmem:[#allocation3 + $0x68] sm:$0xff]
      %v936 = vld [vmem:[#allocation3 + $0x70] sm:$0xff]
      %v937 = vld [vmem:[#allocation3 + $0x78] sm:$0xff]
      %v938 = vmul.f32 %v763, %v922
      %v939 = vmul.f32 %v765, %v923
      %v940 = vmul.f32 %v767, %v924
      %v941 = vmul.f32 %v769, %v925
      %v942 = vmul.f32 %v771, %v926
      %v943 = vmul.f32 %v773, %v927
      %v944 = vmul.f32 %v775, %v928
      %v945 = vmul.f32 %v777, %v929
      %v946 = vmul.f32 %v779, %v930
      %v947 = vmul.f32 %v781, %v931
      %v948 = vmul.f32 %v783, %v932
      %v949 = vmul.f32 %v785, %v933
      %v950 = vmul.f32 %v787, %v934
      %v951 = vmul.f32 %v789, %v935
      %v952 = vmul.f32 %v791, %v936
      %v953 = vmul.f32 %v793, %v937
      %v954 = vsel %vm681, %v891, 0.0
      %955 = vadd.xlane.f32.xlu0 %v954
      %v956 = vpop.xlane.xlu0 %955
      %v957 = vsel %vm681, %v893, 0.0
      %958 = vadd.xlane.f32.xlu0 %v957
      %v959 = vpop.xlane.xlu0 %958
      %v960 = vsel %vm681, %v895, 0.0
      %961 = vadd.xlane.f32.xlu0 %v960
      %v962 = vpop.xlane.xlu0 %961
      %v963 = vsel %vm681, %v897, 0.0
      %964 = vadd.xlane.f32.xlu0 %v963
      %v965 = vpop.xlane.xlu0 %964
      %v966 = vsel %vm681, %v899, 0.0
      %967 = vadd.xlane.f32.xlu0 %v966
      %v968 = vpop.xlane.xlu0 %967
      %v969 = vsel %vm681, %v901, 0.0
      %970 = vadd.xlane.f32.xlu0 %v969
      %v971 = vpop.xlane.xlu0 %970
      %v972 = vsel %vm681, %v903, 0.0
      %973 = vadd.xlane.f32.xlu0 %v972
      %v974 = vpop.xlane.xlu0 %973
      %v975 = vsel %vm681, %v905, 0.0
      %976 = vadd.xlane.f32.xlu0 %v975
      %v977 = vpop.xlane.xlu0 %976
      %v978 = vsel %vm681, %v907, 0.0
      %979 = vadd.xlane.f32.xlu0 %v978
      %v980 = vpop.xlane.xlu0 %979
      %v981 = vsel %vm681, %v909, 0.0
      %982 = vadd.xlane.f32.xlu0 %v981
      %v983 = vpop.xlane.xlu0 %982
      %v984 = vsel %vm681, %v911, 0.0
      %985 = vadd.xlane.f32.xlu0 %v984
      %v986 = vpop.xlane.xlu0 %985
      %v987 = vsel %vm681, %v913, 0.0
      %988 = vadd.xlane.f32.xlu0 %v987
      %v989 = vpop.xlane.xlu0 %988
      %v990 = vsel %vm681, %v915, 0.0
      %991 = vadd.xlane.f32.xlu0 %v990
      %v992 = vpop.xlane.xlu0 %991
      %v993 = vsel %vm681, %v917, 0.0
      %994 = vadd.xlane.f32.xlu0 %v993
      %v995 = vpop.xlane.xlu0 %994
      %v996 = vsel %vm681, %v919, 0.0
      %997 = vadd.xlane.f32.xlu0 %v996
      %v998 = vpop.xlane.xlu0 %997
      %v999 = vsel %vm681, %v921, 0.0
      %1000 = vadd.xlane.f32.xlu0 %v999
      %v1001 = vpop.xlane.xlu0 %1000
      %v1002 = vadd.f32 %v938, %v956
      %v1003 = vadd.f32 %v939, %v959
      %v1004 = vadd.f32 %v940, %v962
      %v1005 = vadd.f32 %v941, %v965
      %v1006 = vadd.f32 %v942, %v968
      %v1007 = vadd.f32 %v943, %v971
      %v1008 = vadd.f32 %v944, %v974
      %v1009 = vadd.f32 %v945, %v977
      %v1010 = vadd.f32 %v946, %v980
      %v1011 = vadd.f32 %v947, %v983
      %v1012 = vadd.f32 %v948, %v986
      %v1013 = vadd.f32 %v949, %v989
      %v1014 = vadd.f32 %v950, %v992
      %v1015 = vadd.f32 %v951, %v995
      %v1016 = vadd.f32 %v952, %v998
      %v1017 = vadd.f32 %v953, %v1001
      %vm1018 = vcmask 7168
      %1019 = vst.msk [vmem:[#allocation3] sm:$0xff] %vm1018, %v1002
      %1020 = vst.msk [vmem:[#allocation3 + $0x8] sm:$0xff] %vm1018, %v1003
      %1021 = vst.msk [vmem:[#allocation3 + $0x10] sm:$0xff] %vm1018, %v1004
      %1022 = vst.msk [vmem:[#allocation3 + $0x18] sm:$0xff] %vm1018, %v1005
      %1023 = vst.msk [vmem:[#allocation3 + $0x20] sm:$0xff] %vm1018, %v1006
      %1024 = vst.msk [vmem:[#allocation3 + $0x28] sm:$0xff] %vm1018, %v1007
      %1025 = vst.msk [vmem:[#allocation3 + $0x30] sm:$0xff] %vm1018, %v1008
      %1026 = vst.msk [vmem:[#allocation3 + $0x38] sm:$0xff] %vm1018, %v1009
      %1027 = vst.msk [vmem:[#allocation3 + $0x40] sm:$0xff] %vm1018, %v1010
      %1028 = vst.msk [vmem:[#allocation3 + $0x48] sm:$0xff] %vm1018, %v1011
      %1029 = vst.msk [vmem:[#allocation3 + $0x50] sm:$0xff] %vm1018, %v1012
      %1030 = vst.msk [vmem:[#allocation3 + $0x58] sm:$0xff] %vm1018, %v1013
      %1031 = vst.msk [vmem:[#allocation3 + $0x60] sm:$0xff] %vm1018, %v1014
      %1032 = vst.msk [vmem:[#allocation3 + $0x68] sm:$0xff] %vm1018, %v1015
      %1033 = vst.msk [vmem:[#allocation3 + $0x70] sm:$0xff] %vm1018, %v1016
      %1034 = vst.msk [vmem:[#allocation3 + $0x78] sm:$0xff] %vm1018, %v1017
      %v1035 = vld [vmem:[#allocation4] sm:$0xff]
      %v1036 = vld [vmem:[#allocation4 + $0x8] sm:$0xff]
      %v1037 = vld [vmem:[#allocation4 + $0x10] sm:$0xff]
      %v1038 = vld [vmem:[#allocation4 + $0x18] sm:$0xff]
      %v1039 = vld [vmem:[#allocation4 + $0x20] sm:$0xff]
      %v1040 = vld [vmem:[#allocation4 + $0x28] sm:$0xff]
      %v1041 = vld [vmem:[#allocation4 + $0x30] sm:$0xff]
      %v1042 = vld [vmem:[#allocation4 + $0x38] sm:$0xff]
      %v1043 = vld [vmem:[#allocation4 + $0x40] sm:$0xff]
      %v1044 = vld [vmem:[#allocation4 + $0x48] sm:$0xff]
      %v1045 = vld [vmem:[#allocation4 + $0x50] sm:$0xff]
      %v1046 = vld [vmem:[#allocation4 + $0x58] sm:$0xff]
      %v1047 = vld [vmem:[#allocation4 + $0x60] sm:$0xff]
      %v1048 = vld [vmem:[#allocation4 + $0x68] sm:$0xff]
      %v1049 = vld [vmem:[#allocation4 + $0x70] sm:$0xff]
      %v1050 = vld [vmem:[#allocation4 + $0x78] sm:$0xff]
      %1052 = vset.pattern.permute.xlu0 0
      %1053 = vperm.xlu0 %1052, %v763
      %v1054 = vpop.permute.xlu0 %1053
      %1057 = vset.pattern.permute.xlu0 0
      %1058 = vperm.xlu0 %1057, %v765
      %v1059 = vpop.permute.xlu0 %1058
      %1062 = vset.pattern.permute.xlu0 0
      %1063 = vperm.xlu0 %1062, %v767
      %v1064 = vpop.permute.xlu0 %1063
      %1067 = vset.pattern.permute.xlu0 0
      %1068 = vperm.xlu0 %1067, %v769
      %v1069 = vpop.permute.xlu0 %1068
      %1072 = vset.pattern.permute.xlu0 0
      %1073 = vperm.xlu0 %1072, %v771
      %v1074 = vpop.permute.xlu0 %1073
      %1077 = vset.pattern.permute.xlu0 0
      %1078 = vperm.xlu0 %1077, %v773
      %v1079 = vpop.permute.xlu0 %1078
      %1082 = vset.pattern.permute.xlu0 0
      %1083 = vperm.xlu0 %1082, %v775
      %v1084 = vpop.permute.xlu0 %1083
      %1087 = vset.pattern.permute.xlu0 0
      %1088 = vperm.xlu0 %1087, %v777
      %v1089 = vpop.permute.xlu0 %1088
      %1092 = vset.pattern.permute.xlu0 0
      %1093 = vperm.xlu0 %1092, %v779
      %v1094 = vpop.permute.xlu0 %1093
      %1097 = vset.pattern.permute.xlu0 0
      %1098 = vperm.xlu0 %1097, %v781
      %v1099 = vpop.permute.xlu0 %1098
      %1102 = vset.pattern.permute.xlu0 0
      %1103 = vperm.xlu0 %1102, %v783
      %v1104 = vpop.permute.xlu0 %1103
      %1107 = vset.pattern.permute.xlu0 0
      %1108 = vperm.xlu0 %1107, %v785
      %v1109 = vpop.permute.xlu0 %1108
      %1112 = vset.pattern.permute.xlu0 0
      %1113 = vperm.xlu0 %1112, %v787
      %v1114 = vpop.permute.xlu0 %1113
      %1117 = vset.pattern.permute.xlu0 0
      %1118 = vperm.xlu0 %1117, %v789
      %v1119 = vpop.permute.xlu0 %1118
      %1122 = vset.pattern.permute.xlu0 0
      %1123 = vperm.xlu0 %1122, %v791
      %v1124 = vpop.permute.xlu0 %1123
      %1127 = vset.pattern.permute.xlu0 0
      %1128 = vperm.xlu0 %1127, %v793
      %v1129 = vpop.permute.xlu0 %1128
      %v1131 = vmul.f32 %v1054, %v1035
      %v1132 = vmul.f32 %v1059, %v1036
      %v1133 = vmul.f32 %v1064, %v1037
      %v1134 = vmul.f32 %v1069, %v1038
      %v1135 = vmul.f32 %v1074, %v1039
      %v1136 = vmul.f32 %v1079, %v1040
      %v1137 = vmul.f32 %v1084, %v1041
      %v1138 = vmul.f32 %v1089, %v1042
      %v1139 = vmul.f32 %v1094, %v1043
      %v1140 = vmul.f32 %v1099, %v1044
      %v1141 = vmul.f32 %v1104, %v1045
      %v1142 = vmul.f32 %v1109, %v1046
      %v1143 = vmul.f32 %v1114, %v1047
      %v1144 = vmul.f32 %v1119, %v1048
      %v1145 = vmul.f32 %v1124, %v1049
      %v1146 = vmul.f32 %v1129, %v1050
      %v1147 = vpack.c.bf16 %v893, %v891
      %v1148 = vpack.c.bf16 %v897, %v895
      %v1149 = vpack.c.bf16 %v901, %v899
      %v1150 = vpack.c.bf16 %v905, %v903
      %v1151 = vpack.c.bf16 %v909, %v907
      %v1152 = vpack.c.bf16 %v913, %v911
      %v1153 = vpack.c.bf16 %v917, %v915
      %v1154 = vpack.c.bf16 %v921, %v919
      %v1163 = vunpack.c.l.b16 %v390
      %v1164 = vunpack.c.l.b16 %v391
      %v1165 = vunpack.c.l.b16 %v392
      %v1166 = vunpack.c.l.b16 %v393
      %v1167 = vunpack.c.l.b16 %v394
      %v1168 = vunpack.c.l.b16 %v395
      %v1169 = vunpack.c.l.b16 %v396
      %v1170 = vunpack.c.l.b16 %v397
      %v1171 = vpack.c.b16 %v1164, %v1163
      %v1172 = vpack.c.b16 %v1166, %v1165
      %v1173 = vpack.c.b16 %v1168, %v1167
      %v1174 = vpack.c.b16 %v1170, %v1169
      %v1180 = vsel %vm681, %v1147, 0
      %v1183 = vsel %vm681, %v1148, 0
      %v1186 = vsel %vm681, %v1149, 0
      %v1189 = vsel %vm681, %v1150, 0
      %1191 = vmatprep.subr.bf16.mxu0 0
      %1192 = vmatpush1.bf16.msra.mxu0 0
      %1193 = vmatprep.subr.bf16.mxu0 0
      %1194 = vmatpush1.bf16.msra.mxu0 0
      %1195 = vmatprep.subr.bf16.mxu0 0
      %1196 = vmatpush1.bf16.msra.mxu0 0
      %1197 = vmatprep.subr.bf16.mxu0 0
      %1198 = vmatpush1.bf16.msra.mxu0 0
      %1199 = vmatprep.subr.bf16.mxu0 0
      %1200 = vmatpush1.bf16.msra.mxu0 %v1174
      %1201 = vmatprep.subr.bf16.mxu0 0
      %1202 = vmatpush1.bf16.msra.mxu0 %v1173
      %1203 = vmatprep.subr.bf16.mxu0 0
      %1204 = vmatpush1.bf16.msra.mxu0 %v1172
      %1205 = vmatprep.subr.bf16.mxu0 0
      %1206 = vmatpush1.bf16.msra.mxu0 %v1171
      %1207 = vmatprep.subr.bf16.mxu0 0
      %1208 = vmatpush2.bf16.msra.mxu0 0
      %1209 = vmatprep.subr.bf16.mxu0 0
      %1210 = vmatpush2.bf16.msra.mxu0 0
      %1211 = vmatprep.subr.bf16.mxu0 0
      %1212 = vmatpush2.bf16.msra.mxu0 0
      %1213 = vmatprep.subr.bf16.mxu0 0
      %1214 = vmatpush2.bf16.msra.mxu0 0
      %1215 = vmatprep.subr.bf16.mxu0 0
      %1216 = vmatpush2.bf16.msra.mxu0 0
      %1217 = vmatprep.subr.bf16.mxu0 0
      %1218 = vmatpush2.bf16.msra.mxu0 0
      %1219 = vmatprep.subr.bf16.mxu0 0
      %1220 = vmatpush2.bf16.msra.mxu0 0
      %1221 = vmatprep.subr.bf16.mxu0 0
      %1222 = vmatpush2.bf16.msra.mxu0 0
      %1223 = vmatprep.mubr.bf16.mxu0 0
      %1224 = vmatmul.mubr.bf16.gmra.mxu0 %v1180
      %v1225 = vpop.f32.mrf.mxu0
      %v1226 = vadd.f32 0.0, %v1225
      %v1227 = vpop.f32.mrf.mxu0
      %v1228 = vpop.f32.mrf.mxu0
      %v1229 = vadd.f32 0.0, %v1228
      %v1230 = vpop.f32.mrf.mxu0
      %1231 = vmatprep.mubr.bf16.mxu0 0
      %1232 = vmatmul.mubr.bf16.gmra.mxu0 %v1183
      %v1233 = vpop.f32.mrf.mxu0
      %v1234 = vadd.f32 0.0, %v1233
      %v1235 = vpop.f32.mrf.mxu0
      %v1236 = vpop.f32.mrf.mxu0
      %v1237 = vadd.f32 0.0, %v1236
      %v1238 = vpop.f32.mrf.mxu0
      %1239 = vmatprep.mubr.bf16.mxu0 0
      %1240 = vmatmul.mubr.bf16.gmra.mxu0 %v1186
      %v1241 = vpop.f32.mrf.mxu0
      %v1242 = vadd.f32 0.0, %v1241
      %v1243 = vpop.f32.mrf.mxu0
      %v1244 = vpop.f32.mrf.mxu0
      %v1245 = vadd.f32 0.0, %v1244
      %v1246 = vpop.f32.mrf.mxu0
      %1247 = vmatprep.mubr.bf16.mxu0 0
      %1248 = vmatmul.mubr.bf16.gmra.mxu0 %v1189
      %v1249 = vpop.f32.mrf.mxu0
      %v1250 = vadd.f32 0.0, %v1249
      %v1251 = vpop.f32.mrf.mxu0
      %v1252 = vpop.f32.mrf.mxu0
      %v1253 = vadd.f32 0.0, %v1252
      %v1254 = vpop.f32.mrf.mxu0
      %1255 = vdwg.mxu0
      %v1264 = vunpack.c.l.b16 %v398
      %v1265 = vunpack.c.l.b16 %v399
      %v1266 = vunpack.c.l.b16 %v400
      %v1267 = vunpack.c.l.b16 %v401
      %v1268 = vunpack.c.l.b16 %v402
      %v1269 = vunpack.c.l.b16 %v403
      %v1270 = vunpack.c.l.b16 %v404
      %v1271 = vunpack.c.l.b16 %v405
      %v1272 = vpack.c.b16 %v1265, %v1264
      %v1273 = vpack.c.b16 %v1267, %v1266
      %v1274 = vpack.c.b16 %v1269, %v1268
      %v1275 = vpack.c.b16 %v1271, %v1270
      %v1281 = vsel %vm681, %v1151, 0
      %v1284 = vsel %vm681, %v1152, 0
      %v1287 = vsel %vm681, %v1153, 0
      %v1290 = vsel %vm681, %v1154, 0
      %1292 = vmatprep.subr.bf16.mxu0 0
      %1293 = vmatpush1.bf16.msra.mxu0 0
      %1294 = vmatprep.subr.bf16.mxu0 0
      %1295 = vmatpush1.bf16.msra.mxu0 0
      %1296 = vmatprep.subr.bf16.mxu0 0
      %1297 = vmatpush1.bf16.msra.mxu0 0
      %1298 = vmatprep.subr.bf16.mxu0 0
      %1299 = vmatpush1.bf16.msra.mxu0 0
      %1300 = vmatprep.subr.bf16.mxu0 0
      %1301 = vmatpush1.bf16.msra.mxu0 %v1275
      %1302 = vmatprep.subr.bf16.mxu0 0
      %1303 = vmatpush1.bf16.msra.mxu0 %v1274
      %1304 = vmatprep.subr.bf16.mxu0 0
      %1305 = vmatpush1.bf16.msra.mxu0 %v1273
      %1306 = vmatprep.subr.bf16.mxu0 0
      %1307 = vmatpush1.bf16.msra.mxu0 %v1272
      %1308 = vmatprep.subr.bf16.mxu0 0
      %1309 = vmatpush2.bf16.msra.mxu0 0
      %1310 = vmatprep.subr.bf16.mxu0 0
      %1311 = vmatpush2.bf16.msra.mxu0 0
      %1312 = vmatprep.subr.bf16.mxu0 0
      %1313 = vmatpush2.bf16.msra.mxu0 0
      %1314 = vmatprep.subr.bf16.mxu0 0
      %1315 = vmatpush2.bf16.msra.mxu0 0
      %1316 = vmatprep.subr.bf16.mxu0 0
      %1317 = vmatpush2.bf16.msra.mxu0 0
      %1318 = vmatprep.subr.bf16.mxu0 0
      %1319 = vmatpush2.bf16.msra.mxu0 0
      %1320 = vmatprep.subr.bf16.mxu0 0
      %1321 = vmatpush2.bf16.msra.mxu0 0
      %1322 = vmatprep.subr.bf16.mxu0 0
      %1323 = vmatpush2.bf16.msra.mxu0 0
      %1324 = vmatprep.mubr.bf16.mxu0 0
      %1325 = vmatmul.mubr.bf16.gmra.mxu0 %v1281
      %v1326 = vpop.f32.mrf.mxu0
      %v1327 = vadd.f32 0.0, %v1326
      %v1328 = vpop.f32.mrf.mxu0
      %v1329 = vpop.f32.mrf.mxu0
      %v1330 = vadd.f32 0.0, %v1329
      %v1331 = vpop.f32.mrf.mxu0
      %1332 = vmatprep.mubr.bf16.mxu0 0
      %1333 = vmatmul.mubr.bf16.gmra.mxu0 %v1284
      %v1334 = vpop.f32.mrf.mxu0
      %v1335 = vadd.f32 0.0, %v1334
      %v1336 = vpop.f32.mrf.mxu0
      %v1337 = vpop.f32.mrf.mxu0
      %v1338 = vadd.f32 0.0, %v1337
      %v1339 = vpop.f32.mrf.mxu0
      %1340 = vmatprep.mubr.bf16.mxu0 0
      %1341 = vmatmul.mubr.bf16.gmra.mxu0 %v1287
      %v1342 = vpop.f32.mrf.mxu0
      %v1343 = vadd.f32 0.0, %v1342
      %v1344 = vpop.f32.mrf.mxu0
      %v1345 = vpop.f32.mrf.mxu0
      %v1346 = vadd.f32 0.0, %v1345
      %v1347 = vpop.f32.mrf.mxu0
      %1348 = vmatprep.mubr.bf16.mxu0 0
      %1349 = vmatmul.mubr.bf16.gmra.mxu0 %v1290
      %v1350 = vpop.f32.mrf.mxu0
      %v1351 = vadd.f32 0.0, %v1350
      %v1352 = vpop.f32.mrf.mxu0
      %v1353 = vpop.f32.mrf.mxu0
      %v1354 = vadd.f32 0.0, %v1353
      %v1355 = vpop.f32.mrf.mxu0
      %1356 = vdwg.mxu0
      %v1357 = vadd.f32 %v1131, %v1226
      %v1358 = vadd.f32 %v1132, %v1229
      %v1359 = vadd.f32 %v1133, %v1234
      %v1360 = vadd.f32 %v1134, %v1237
      %v1361 = vadd.f32 %v1135, %v1242
      %v1362 = vadd.f32 %v1136, %v1245
      %v1363 = vadd.f32 %v1137, %v1250
      %v1364 = vadd.f32 %v1138, %v1253
      %v1365 = vadd.f32 %v1139, %v1327
      %v1366 = vadd.f32 %v1140, %v1330
      %v1367 = vadd.f32 %v1141, %v1335
      %v1368 = vadd.f32 %v1142, %v1338
      %v1369 = vadd.f32 %v1143, %v1343
      %v1370 = vadd.f32 %v1144, %v1346
      %v1371 = vadd.f32 %v1145, %v1351
      %v1372 = vadd.f32 %v1146, %v1354
      %1373 = vst.msk [vmem:[#allocation4] sm:$0xff] %vm446, %v1357
      %1374 = vst.msk [vmem:[#allocation4 + $0x8] sm:$0xff] %vm446, %v1358
      %1375 = vst.msk [vmem:[#allocation4 + $0x10] sm:$0xff] %vm446, %v1359
      %1376 = vst.msk [vmem:[#allocation4 + $0x18] sm:$0xff] %vm446, %v1360
      %1377 = vst.msk [vmem:[#allocation4 + $0x20] sm:$0xff] %vm446, %v1361
      %1378 = vst.msk [vmem:[#allocation4 + $0x28] sm:$0xff] %vm446, %v1362
      %1379 = vst.msk [vmem:[#allocation4 + $0x30] sm:$0xff] %vm446, %v1363
      %1380 = vst.msk [vmem:[#allocation4 + $0x38] sm:$0xff] %vm446, %v1364
      %1381 = vst.msk [vmem:[#allocation4 + $0x40] sm:$0xff] %vm446, %v1365
      %1382 = vst.msk [vmem:[#allocation4 + $0x48] sm:$0xff] %vm446, %v1366
      %1383 = vst.msk [vmem:[#allocation4 + $0x50] sm:$0xff] %vm446, %v1367
      %1384 = vst.msk [vmem:[#allocation4 + $0x58] sm:$0xff] %vm446, %v1368
      %1385 = vst.msk [vmem:[#allocation4 + $0x60] sm:$0xff] %vm446, %v1369
      %1386 = vst.msk [vmem:[#allocation4 + $0x68] sm:$0xff] %vm446, %v1370
      %1387 = vst.msk [vmem:[#allocation4 + $0x70] sm:$0xff] %vm446, %v1371
      %1388 = vst.msk [vmem:[#allocation4 + $0x78] sm:$0xff] %vm446, %v1372
      %1389 = vst.msk [vmem:[#allocation2] sm:$0xff] %vm1018, %v730
      %1390 = vst.msk [vmem:[#allocation2 + $0x8] sm:$0xff] %vm1018, %v731
      %1391 = vst.msk [vmem:[#allocation2 + $0x10] sm:$0xff] %vm1018, %v732
      %1392 = vst.msk [vmem:[#allocation2 + $0x18] sm:$0xff] %vm1018, %v733
      %1393 = vst.msk [vmem:[#allocation2 + $0x20] sm:$0xff] %vm1018, %v734
      %1394 = vst.msk [vmem:[#allocation2 + $0x28] sm:$0xff] %vm1018, %v735
      %1395 = vst.msk [vmem:[#allocation2 + $0x30] sm:$0xff] %vm1018, %v736
      %1396 = vst.msk [vmem:[#allocation2 + $0x38] sm:$0xff] %vm1018, %v737
      %1397 = vst.msk [vmem:[#allocation2 + $0x40] sm:$0xff] %vm1018, %v738
      %1398 = vst.msk [vmem:[#allocation2 + $0x48] sm:$0xff] %vm1018, %v739
      %1399 = vst.msk [vmem:[#allocation2 + $0x50] sm:$0xff] %vm1018, %v740
      %1400 = vst.msk [vmem:[#allocation2 + $0x58] sm:$0xff] %vm1018, %v741
      %1401 = vst.msk [vmem:[#allocation2 + $0x60] sm:$0xff] %vm1018, %v742
      %1402 = vst.msk [vmem:[#allocation2 + $0x68] sm:$0xff] %vm1018, %v743
      %1403 = vst.msk [vmem:[#allocation2 + $0x70] sm:$0xff] %vm1018, %v744
      %1404 = vst.msk [vmem:[#allocation2 + $0x78] sm:$0xff] %vm1018, %v745
      // Predicated region
      $region37: #{spatial_transformer.14} parent=31 // pred_check
        %p1405 = pneg %p304
      $region38: #{spatial_transformer.14} parent=31 // pred_check_branch
        %1407 = sbr.rel (%p1405) target = $region40
      $region39: #{spatial_transformer.14} parent=31 // pred_region
        %v1408 = vld [vmem:[#allocation3] sm:$0xff]
        %v1409 = vld [vmem:[#allocation3 + $0x8] sm:$0xff]
        %v1410 = vld [vmem:[#allocation3 + $0x10] sm:$0xff]
        %v1411 = vld [vmem:[#allocation3 + $0x18] sm:$0xff]
        %v1412 = vld [vmem:[#allocation3 + $0x20] sm:$0xff]
        %v1413 = vld [vmem:[#allocation3 + $0x28] sm:$0xff]
        %v1414 = vld [vmem:[#allocation3 + $0x30] sm:$0xff]
        %v1415 = vld [vmem:[#allocation3 + $0x38] sm:$0xff]
        %v1416 = vld [vmem:[#allocation3 + $0x40] sm:$0xff]
        %v1417 = vld [vmem:[#allocation3 + $0x48] sm:$0xff]
        %v1418 = vld [vmem:[#allocation3 + $0x50] sm:$0xff]
        %v1419 = vld [vmem:[#allocation3 + $0x58] sm:$0xff]
        %v1420 = vld [vmem:[#allocation3 + $0x60] sm:$0xff]
        %v1421 = vld [vmem:[#allocation3 + $0x68] sm:$0xff]
        %v1422 = vld [vmem:[#allocation3 + $0x70] sm:$0xff]
        %v1423 = vld [vmem:[#allocation3 + $0x78] sm:$0xff]
        %v1424 = vrcp.pop %v1408
        %v1425 = vrcp.pop %v1409
        %v1426 = vrcp.pop %v1410
        %v1427 = vrcp.pop %v1411
        %v1428 = vrcp.pop %v1412
        %v1429 = vrcp.pop %v1413
        %v1430 = vrcp.pop %v1414
        %v1431 = vrcp.pop %v1415
        %v1432 = vrcp.pop %v1416
        %v1433 = vrcp.pop %v1417
        %v1434 = vrcp.pop %v1418
        %v1435 = vrcp.pop %v1419
        %v1436 = vrcp.pop %v1420
        %v1437 = vrcp.pop %v1421
        %v1438 = vrcp.pop %v1422
        %v1439 = vrcp.pop %v1423
        %v1440 = vld [vmem:[#allocation4] sm:$0xff]
        %v1441 = vld [vmem:[#allocation4 + $0x8] sm:$0xff]
        %v1442 = vld [vmem:[#allocation4 + $0x10] sm:$0xff]
        %v1443 = vld [vmem:[#allocation4 + $0x18] sm:$0xff]
        %v1444 = vld [vmem:[#allocation4 + $0x20] sm:$0xff]
        %v1445 = vld [vmem:[#allocation4 + $0x28] sm:$0xff]
        %v1446 = vld [vmem:[#allocation4 + $0x30] sm:$0xff]
        %v1447 = vld [vmem:[#allocation4 + $0x38] sm:$0xff]
        %v1448 = vld [vmem:[#allocation4 + $0x40] sm:$0xff]
        %v1449 = vld [vmem:[#allocation4 + $0x48] sm:$0xff]
        %v1450 = vld [vmem:[#allocation4 + $0x50] sm:$0xff]
        %v1451 = vld [vmem:[#allocation4 + $0x58] sm:$0xff]
        %v1452 = vld [vmem:[#allocation4 + $0x60] sm:$0xff]
        %v1453 = vld [vmem:[#allocation4 + $0x68] sm:$0xff]
        %v1454 = vld [vmem:[#allocation4 + $0x70] sm:$0xff]
        %v1455 = vld [vmem:[#allocation4 + $0x78] sm:$0xff]
        %1457 = vset.pattern.permute.xlu0 0
        %1458 = vperm.xlu0 %1457, %v1424
        %v1459 = vpop.permute.xlu0 %1458
        %1462 = vset.pattern.permute.xlu0 0
        %1463 = vperm.xlu0 %1462, %v1425
        %v1464 = vpop.permute.xlu0 %1463
        %1467 = vset.pattern.permute.xlu0 0
        %1468 = vperm.xlu0 %1467, %v1426
        %v1469 = vpop.permute.xlu0 %1468
        %1472 = vset.pattern.permute.xlu0 0
        %1473 = vperm.xlu0 %1472, %v1427
        %v1474 = vpop.permute.xlu0 %1473
        %1477 = vset.pattern.permute.xlu0 0
        %1478 = vperm.xlu0 %1477, %v1428
        %v1479 = vpop.permute.xlu0 %1478
        %1482 = vset.pattern.permute.xlu0 0
        %1483 = vperm.xlu0 %1482, %v1429
        %v1484 = vpop.permute.xlu0 %1483
        %1487 = vset.pattern.permute.xlu0 0
        %1488 = vperm.xlu0 %1487, %v1430
        %v1489 = vpop.permute.xlu0 %1488
        %1492 = vset.pattern.permute.xlu0 0
        %1493 = vperm.xlu0 %1492, %v1431
        %v1494 = vpop.permute.xlu0 %1493
        %1497 = vset.pattern.permute.xlu0 0
        %1498 = vperm.xlu0 %1497, %v1432
        %v1499 = vpop.permute.xlu0 %1498
        %1502 = vset.pattern.permute.xlu0 0
        %1503 = vperm.xlu0 %1502, %v1433
        %v1504 = vpop.permute.xlu0 %1503
        %1507 = vset.pattern.permute.xlu0 0
        %1508 = vperm.xlu0 %1507, %v1434
        %v1509 = vpop.permute.xlu0 %1508
        %1512 = vset.pattern.permute.xlu0 0
        %1513 = vperm.xlu0 %1512, %v1435
        %v1514 = vpop.permute.xlu0 %1513
        %1517 = vset.pattern.permute.xlu0 0
        %1518 = vperm.xlu0 %1517, %v1436
        %v1519 = vpop.permute.xlu0 %1518
        %1522 = vset.pattern.permute.xlu0 0
        %1523 = vperm.xlu0 %1522, %v1437
        %v1524 = vpop.permute.xlu0 %1523
        %1527 = vset.pattern.permute.xlu0 0
        %1528 = vperm.xlu0 %1527, %v1438
        %v1529 = vpop.permute.xlu0 %1528
        %1532 = vset.pattern.permute.xlu0 0
        %1533 = vperm.xlu0 %1532, %v1439
        %v1534 = vpop.permute.xlu0 %1533
        %v1536 = vmul.f32 %v1440, %v1459
        %v1537 = vmul.f32 %v1441, %v1464
        %v1538 = vmul.f32 %v1442, %v1469
        %v1539 = vmul.f32 %v1443, %v1474
        %v1540 = vmul.f32 %v1444, %v1479
        %v1541 = vmul.f32 %v1445, %v1484
        %v1542 = vmul.f32 %v1446, %v1489
        %v1543 = vmul.f32 %v1447, %v1494
        %v1544 = vmul.f32 %v1448, %v1499
        %v1545 = vmul.f32 %v1449, %v1504
        %v1546 = vmul.f32 %v1450, %v1509
        %v1547 = vmul.f32 %v1451, %v1514
        %v1548 = vmul.f32 %v1452, %v1519
        %v1549 = vmul.f32 %v1453, %v1524
        %v1550 = vmul.f32 %v1454, %v1529
        %v1551 = vmul.f32 %v1455, %v1534
        %v1552 = vpack.c.bf16 %v1537, %v1536
        %v1553 = vpack.c.bf16 %v1539, %v1538
        %v1554 = vpack.c.bf16 %v1541, %v1540
        %v1555 = vpack.c.bf16 %v1543, %v1542
        %v1556 = vpack.c.bf16 %v1545, %v1544
        %v1557 = vpack.c.bf16 %v1547, %v1546
        %v1558 = vpack.c.bf16 %v1549, %v1548
        %v1559 = vpack.c.bf16 %v1551, %v1550
        %v1568 = vunpack.c.l.b16 %v1552
        %v1569 = vunpack.c.h.b16 %v1552
        %v1570 = vunpack.c.l.b16 %v1553
        %v1571 = vunpack.c.h.b16 %v1553
        %v1572 = vunpack.c.l.b16 %v1554
        %v1573 = vunpack.c.h.b16 %v1554
        %v1574 = vunpack.c.l.b16 %v1555
        %v1575 = vunpack.c.h.b16 %v1555
        %v1576 = vunpack.c.l.b16 %v1556
        %v1577 = vunpack.c.h.b16 %v1556
        %v1578 = vunpack.c.l.b16 %v1557
        %v1579 = vunpack.c.h.b16 %v1557
        %v1580 = vunpack.c.l.b16 %v1558
        %v1581 = vunpack.c.h.b16 %v1558
        %v1582 = vunpack.c.l.b16 %v1559
        %v1583 = vunpack.c.h.b16 %v1559
        %v1584 = vpack.c.b16 %v1568, %v1568
        %v1585 = vpack.c.b16 %v1569, %v1569
        %v1586 = vpack.c.b16 %v1570, %v1570
        %v1587 = vpack.c.b16 %v1571, %v1571
        %v1588 = vpack.c.b16 %v1572, %v1572
        %v1589 = vpack.c.b16 %v1573, %v1573
        %v1590 = vpack.c.b16 %v1574, %v1574
        %v1591 = vpack.c.b16 %v1575, %v1575
        %v1592 = vpack.c.b16 %v1576, %v1576
        %v1593 = vpack.c.b16 %v1577, %v1577
        %v1594 = vpack.c.b16 %v1578, %v1578
        %v1595 = vpack.c.b16 %v1579, %v1579
        %v1596 = vpack.c.b16 %v1580, %v1580
        %v1597 = vpack.c.b16 %v1581, %v1581
        %v1598 = vpack.c.b16 %v1582, %v1582
        %v1599 = vpack.c.b16 %v1583, %v1583
        %vm1616 = vcmask 125952
        %1617 = vst.msk [vmem:[%s301] sm:$0xf] %vm1616, %v1584
        %1618 = vst.msk [vmem:[%s301 + $0x4] sm:$0xf] %vm1616, %v1585
        %1619 = vst.msk [vmem:[%s301 + $0x8] sm:$0xf] %vm1616, %v1586
        %1620 = vst.msk [vmem:[%s301 + $0xc] sm:$0xf] %vm1616, %v1587
        %1621 = vst.msk [vmem:[%s301 + $0x10] sm:$0xf] %vm1616, %v1588
        %1622 = vst.msk [vmem:[%s301 + $0x14] sm:$0xf] %vm1616, %v1589
        %1623 = vst.msk [vmem:[%s301 + $0x18] sm:$0xf] %vm1616, %v1590
        %1624 = vst.msk [vmem:[%s301 + $0x1c] sm:$0xf] %vm1616, %v1591
        %1625 = vst.msk [vmem:[%s301 + $0x20] sm:$0xf] %vm1616, %v1592
        %1626 = vst.msk [vmem:[%s301 + $0x24] sm:$0xf] %vm1616, %v1593
        %1627 = vst.msk [vmem:[%s301 + $0x28] sm:$0xf] %vm1616, %v1594
        %1628 = vst.msk [vmem:[%s301 + $0x2c] sm:$0xf] %vm1616, %v1595
        %1629 = vst.msk [vmem:[%s301 + $0x30] sm:$0xf] %vm1616, %v1596
        %1630 = vst.msk [vmem:[%s301 + $0x34] sm:$0xf] %vm1616, %v1597
        %1631 = vst.msk [vmem:[%s301 + $0x38] sm:$0xf] %vm1616, %v1598
        %1632 = vst.msk [vmem:[%s301 + $0x3c] sm:$0xf] %vm1616, %v1599
      $region40: #{spatial_transformer.14} parent=31 // pred_fallthru
        _
      %s1633 = smul.u32 8, %s20
      %p1634 = scmp.lt.s32.totalorder %s19, 1
      %s1635 = scalar_select %p1634, %s19, 1
      %p1636 = scmp.lt.s32.totalorder %s1633, 7
      %s1637 = scalar_select %p1636, %s1633, 7
      %s1638 = smul.addr %s1635, 16
      %s1639 = sadd.s32 %s1637, %s1638
      %s1640 = smul.addr %s1639, 4
      %s1641 = scalar_lea.vmem %s3, %s1640
      // Predicated region
      $region41: #{spatial_transformer.14} parent=31 // pred_check
        %p1642 = pneg %p141
      $region42: #{spatial_transformer.14} parent=31 // pred_check_branch
        %1644 = sbr.rel (%p1642) target = $region44
      $region43: #{spatial_transformer.14} parent=31 // pred_region
        %s1645 = smul.u32 8, %s20
      $region44: #{spatial_transformer.14} parent=31 // pred_fallthru
        _
    $region32: #{spatial_transformer.14} parent=5 // pred_fallthru
      _
    %p1646 = scmp.le.s32.totalorder 2, %s9
    // Predicated region
    $region45: #{spatial_transformer.14} parent=5 // pred_check
      %p1647 = pneg %p1646
    $region46: #{spatial_transformer.14} parent=5 // pred_check_branch
      %1649 = sbr.rel (%p1647) target = $region48
    $region47: #{spatial_transformer.14} parent=5 // pred_region
      %s1650 = ssub.s32 %s9, 2
      // Predicated region
      $region49: #{spatial_transformer.14} parent=47 // pred_check
        %p1651 = pneg %p147
      $region50: #{spatial_transformer.14} parent=47 // pred_check_branch
        %1653 = sbr.rel (%p1651) target = $region52
      $region51: #{spatial_transformer.14} parent=47 // pred_region
        %s1654 = smul.u32 8, %s23
        %p1655 = scmp.lt.s32.totalorder %s22, 1
        %s1656 = scalar_select %p1655, %s22, 1
        %p1657 = scmp.lt.s32.totalorder %s1654, 7
        %s1658 = scalar_select %p1657, %s1654, 7
        %s1659 = smul.addr %s1656, 16
        %s1660 = sadd.s32 %s1658, %s1659
        %s1661 = smul.addr %s1660, 4
        %s1662 = scalar_lea.vmem %s3, %s1661
      $region52: #{spatial_transformer.14} parent=47 // pred_fallthru
        _
    $region48: #{spatial_transformer.14} parent=5 // pred_fallthru
      _
  $region6: #{spatial_transformer.14} parent=0 // loop_footer
    %s13 = sadd.s32 1, %s9
  $region7: #{spatial_transformer.14} parent=0 // loop_footer_branch
    %8 = sbr.rel target = $region3
  $region8: #{spatial_transformer.14} parent=0 // loop_exit
    _

// kernel: spatial_transformer.21
$region0: #{spatial_transformer.21}
  #allocation0 [shape = 'u32[]', space=smem, size = 0x4, offset = 0x4, fixed_abs, tag = 'smem constant byte address 0x4 - core index']
  #allocation1 [shape = 'u32[144,128]{1,0:T(1,128)}', space=vmem, size = 0x12000, scoped, tag = 'internal scratch']
  #allocation2 [shape = 'f32[128,32]{1,0:T(8,128)}', space=vmem, size = 0x10000, scoped, tag = 'scratch operand']
  %s0 = inlined_call_operand.vmem [shape: f32[128,32], index: 0, kind: input, shape index: {}]
  %s1 = inlined_call_operand.vmem [shape: bf16[32,32], index: 1, kind: input, shape index: {}]
  %s2 = inlined_call_operand.vmem [shape: f32[1,32], index: 2, kind: input, shape index: {}]
  %s3 = inlined_call_operand.vmem [shape: f32[128,32], index: 3, kind: output, shape index: {}]
  %s4 = sld [smem:[#allocation0]]
  $region30: #{spatial_transformer.21} parent=0
    _
  %s6 = ssub.s32 1, %s4
  %s7 = scalar_select 0, %s6, %s4
  // Predicated region
  $region2: #{spatial_transformer.21} parent=0 // pred_check
    _
  $region3: #{spatial_transformer.21} parent=0 // pred_check_branch
    %9 = sbr.rel (0) target = $region5
  $region4: #{spatial_transformer.21} parent=0 // pred_region
    _
  $region5: #{spatial_transformer.21} parent=0 // pred_fallthru
    _
  // Predicated region
  $region6: #{spatial_transformer.21} parent=0 // pred_check
    _
  $region7: #{spatial_transformer.21} parent=0 // pred_check_branch
    %11 = sbr.rel (0) target = $region9
  $region8: #{spatial_transformer.21} parent=0 // pred_region
    _
  $region9: #{spatial_transformer.21} parent=0 // pred_fallthru
    _
  // Predicated region
  $region10: #{spatial_transformer.21} parent=0 // pred_check
    _
  $region11: #{spatial_transformer.21} parent=0 // pred_check_branch
    %13 = sbr.rel (0) target = $region13
  $region12: #{spatial_transformer.21} parent=0 // pred_region
    _
  $region13: #{spatial_transformer.21} parent=0 // pred_fallthru
    _
  %p15 = scmp.eq.s32.totalorder 0, 0
  // Predicated region
  $region14: #{spatial_transformer.21} parent=0 // pred_check
    %p16 = pneg %p15
  $region15: #{spatial_transformer.21} parent=0 // pred_check_branch
    %18 = sbr.rel (%p16) target = $region17
  $region16: #{spatial_transformer.21} parent=0 // pred_region
    %vm19 = vcmask 261120
    %20 = vst.msk [vmem:[#allocation2] sm:$0xff] %vm19, 0.0
    %21 = vst.msk [vmem:[#allocation2 + $0x8] sm:$0xff] %vm19, 0.0
    %22 = vst.msk [vmem:[#allocation2 + $0x10] sm:$0xff] %vm19, 0.0
    %23 = vst.msk [vmem:[#allocation2 + $0x18] sm:$0xff] %vm19, 0.0
    %24 = vst.msk [vmem:[#allocation2 + $0x20] sm:$0xff] %vm19, 0.0
    %25 = vst.msk [vmem:[#allocation2 + $0x28] sm:$0xff] %vm19, 0.0
    %26 = vst.msk [vmem:[#allocation2 + $0x30] sm:$0xff] %vm19, 0.0
    %27 = vst.msk [vmem:[#allocation2 + $0x38] sm:$0xff] %vm19, 0.0
    %28 = vst.msk [vmem:[#allocation2 + $0x40] sm:$0xff] %vm19, 0.0
    %29 = vst.msk [vmem:[#allocation2 + $0x48] sm:$0xff] %vm19, 0.0
    %30 = vst.msk [vmem:[#allocation2 + $0x50] sm:$0xff] %vm19, 0.0
    %31 = vst.msk [vmem:[#allocation2 + $0x58] sm:$0xff] %vm19, 0.0
    %32 = vst.msk [vmem:[#allocation2 + $0x60] sm:$0xff] %vm19, 0.0
    %33 = vst.msk [vmem:[#allocation2 + $0x68] sm:$0xff] %vm19, 0.0
    %34 = vst.msk [vmem:[#allocation2 + $0x70] sm:$0xff] %vm19, 0.0
    %35 = vst.msk [vmem:[#allocation2 + $0x78] sm:$0xff] %vm19, 0.0
  $region17: #{spatial_transformer.21} parent=0 // pred_fallthru
    _
  %v36 = vld [vmem:[#allocation2] sm:$0xff]
  %v37 = vld [vmem:[#allocation2 + $0x8] sm:$0xff]
  %v38 = vld [vmem:[#allocation2 + $0x10] sm:$0xff]
  %v39 = vld [vmem:[#allocation2 + $0x18] sm:$0xff]
  %v40 = vld [vmem:[#allocation2 + $0x20] sm:$0xff]
  %v41 = vld [vmem:[#allocation2 + $0x28] sm:$0xff]
  %v42 = vld [vmem:[#allocation2 + $0x30] sm:$0xff]
  %v43 = vld [vmem:[#allocation2 + $0x38] sm:$0xff]
  %v44 = vld [vmem:[#allocation2 + $0x40] sm:$0xff]
  %v45 = vld [vmem:[#allocation2 + $0x48] sm:$0xff]
  %v46 = vld [vmem:[#allocation2 + $0x50] sm:$0xff]
  %v47 = vld [vmem:[#allocation2 + $0x58] sm:$0xff]
  %v48 = vld [vmem:[#allocation2 + $0x60] sm:$0xff]
  %v49 = vld [vmem:[#allocation2 + $0x68] sm:$0xff]
  %v50 = vld [vmem:[#allocation2 + $0x70] sm:$0xff]
  %v51 = vld [vmem:[#allocation2 + $0x78] sm:$0xff]
  %v52 = vld [vmem:[%s0] sm:$0xff]
  %v53 = vld [vmem:[%s0 + $0x8] sm:$0xff]
  %v54 = vld [vmem:[%s0 + $0x10] sm:$0xff]
  %v55 = vld [vmem:[%s0 + $0x18] sm:$0xff]
  %v56 = vld [vmem:[%s0 + $0x20] sm:$0xff]
  %v57 = vld [vmem:[%s0 + $0x28] sm:$0xff]
  %v58 = vld [vmem:[%s0 + $0x30] sm:$0xff]
  %v59 = vld [vmem:[%s0 + $0x38] sm:$0xff]
  %v60 = vld [vmem:[%s0 + $0x40] sm:$0xff]
  %v61 = vld [vmem:[%s0 + $0x48] sm:$0xff]
  %v62 = vld [vmem:[%s0 + $0x50] sm:$0xff]
  %v63 = vld [vmem:[%s0 + $0x58] sm:$0xff]
  %v64 = vld [vmem:[%s0 + $0x60] sm:$0xff]
  %v65 = vld [vmem:[%s0 + $0x68] sm:$0xff]
  %v66 = vld [vmem:[%s0 + $0x70] sm:$0xff]
  %v67 = vld [vmem:[%s0 + $0x78] sm:$0xff]
  %v68 = vpack.c.bf16 %v53, %v52
  %v69 = vpack.c.bf16 %v55, %v54
  %v70 = vpack.c.bf16 %v57, %v56
  %v71 = vpack.c.bf16 %v59, %v58
  %v72 = vpack.c.bf16 %v61, %v60
  %v73 = vpack.c.bf16 %v63, %v62
  %v74 = vpack.c.bf16 %v65, %v64
  %v75 = vpack.c.bf16 %v67, %v66
  %v76 = vld [vmem:[%s1] sm:$0xf]
  %v77 = vld [vmem:[%s1 + $0x4] sm:$0xf]
  %v78 = vld [vmem:[%s1 + $0x8] sm:$0xf]
  %v79 = vld [vmem:[%s1 + $0xc] sm:$0xf]
  %v84 = vunpack.c.l.b16 %v76
  %v85 = vunpack.c.l.b16 %v77
  %v86 = vunpack.c.l.b16 %v78
  %v87 = vunpack.c.l.b16 %v79
  %v88 = vpack.c.b16 %v85, %v84
  %v89 = vpack.c.b16 %v87, %v86
  %vm92 = vcmask 261120
  %v94 = vsel %vm92, %v68, 0
  %v97 = vsel %vm92, %v69, 0
  %v100 = vsel %vm92, %v70, 0
  %v103 = vsel %vm92, %v71, 0
  %v106 = vsel %vm92, %v72, 0
  %v109 = vsel %vm92, %v73, 0
  %v112 = vsel %vm92, %v74, 0
  %v115 = vsel %vm92, %v75, 0
  %117 = vmatprep.subr.bf16.mxu0 0
  %118 = vmatpush1.bf16.msra.mxu0 0
  %119 = vmatprep.subr.bf16.mxu0 0
  %120 = vmatpush1.bf16.msra.mxu0 0
  %121 = vmatprep.subr.bf16.mxu0 0
  %122 = vmatpush1.bf16.msra.mxu0 0
  %123 = vmatprep.subr.bf16.mxu0 0
  %124 = vmatpush1.bf16.msra.mxu0 0
  %125 = vmatprep.subr.bf16.mxu0 0
  %126 = vmatpush1.bf16.msra.mxu0 0
  %127 = vmatprep.subr.bf16.mxu0 0
  %128 = vmatpush1.bf16.msra.mxu0 0
  %129 = vmatprep.subr.bf16.mxu0 0
  %130 = vmatpush1.bf16.msra.mxu0 %v89
  %131 = vmatprep.subr.bf16.mxu0 0
  %132 = vmatpush1.bf16.msra.mxu0 %v88
  %133 = vmatprep.subr.bf16.mxu0 0
  %134 = vmatpush2.bf16.msra.mxu0 0
  %135 = vmatprep.subr.bf16.mxu0 0
  %136 = vmatpush2.bf16.msra.mxu0 0
  %137 = vmatprep.subr.bf16.mxu0 0
  %138 = vmatpush2.bf16.msra.mxu0 0
  %139 = vmatprep.subr.bf16.mxu0 0
  %140 = vmatpush2.bf16.msra.mxu0 0
  %141 = vmatprep.subr.bf16.mxu0 0
  %142 = vmatpush2.bf16.msra.mxu0 0
  %143 = vmatprep.subr.bf16.mxu0 0
  %144 = vmatpush2.bf16.msra.mxu0 0
  %145 = vmatprep.subr.bf16.mxu0 0
  %146 = vmatpush2.bf16.msra.mxu0 0
  %147 = vmatprep.subr.bf16.mxu0 0
  %148 = vmatpush2.bf16.msra.mxu0 0
  %149 = vmatprep.mubr.bf16.mxu0 0
  %150 = vmatmul.mubr.bf16.gmra.mxu0 %v94
  %v151 = vpop.f32.mrf.mxu0
  %v152 = vadd.f32 0.0, %v151
  %v153 = vpop.f32.mrf.mxu0
  %v154 = vpop.f32.mrf.mxu0
  %v155 = vadd.f32 0.0, %v154
  %v156 = vpop.f32.mrf.mxu0
  %157 = vmatprep.mubr.bf16.mxu0 0
  %158 = vmatmul.mubr.bf16.gmra.mxu0 %v97
  %v159 = vpop.f32.mrf.mxu0
  %v160 = vadd.f32 0.0, %v159
  %v161 = vpop.f32.mrf.mxu0
  %v162 = vpop.f32.mrf.mxu0
  %v163 = vadd.f32 0.0, %v162
  %v164 = vpop.f32.mrf.mxu0
  %165 = vmatprep.mubr.bf16.mxu0 0
  %166 = vmatmul.mubr.bf16.gmra.mxu0 %v100
  %v167 = vpop.f32.mrf.mxu0
  %v168 = vadd.f32 0.0, %v167
  %v169 = vpop.f32.mrf.mxu0
  %v170 = vpop.f32.mrf.mxu0
  %v171 = vadd.f32 0.0, %v170
  %v172 = vpop.f32.mrf.mxu0
  %173 = vmatprep.mubr.bf16.mxu0 0
  %174 = vmatmul.mubr.bf16.gmra.mxu0 %v103
  %v175 = vpop.f32.mrf.mxu0
  %v176 = vadd.f32 0.0, %v175
  %v177 = vpop.f32.mrf.mxu0
  %v178 = vpop.f32.mrf.mxu0
  %v179 = vadd.f32 0.0, %v178
  %v180 = vpop.f32.mrf.mxu0
  %181 = vmatprep.mubr.bf16.mxu0 0
  %182 = vmatmul.mubr.bf16.gmra.mxu0 %v106
  %v183 = vpop.f32.mrf.mxu0
  %v184 = vadd.f32 0.0, %v183
  %v185 = vpop.f32.mrf.mxu0
  %v186 = vpop.f32.mrf.mxu0
  %v187 = vadd.f32 0.0, %v186
  %v188 = vpop.f32.mrf.mxu0
  %189 = vmatprep.mubr.bf16.mxu0 0
  %190 = vmatmul.mubr.bf16.gmra.mxu0 %v109
  %v191 = vpop.f32.mrf.mxu0
  %v192 = vadd.f32 0.0, %v191
  %v193 = vpop.f32.mrf.mxu0
  %v194 = vpop.f32.mrf.mxu0
  %v195 = vadd.f32 0.0, %v194
  %v196 = vpop.f32.mrf.mxu0
  %197 = vmatprep.mubr.bf16.mxu0 0
  %198 = vmatmul.mubr.bf16.gmra.mxu0 %v112
  %v199 = vpop.f32.mrf.mxu0
  %v200 = vadd.f32 0.0, %v199
  %v201 = vpop.f32.mrf.mxu0
  %v202 = vpop.f32.mrf.mxu0
  %v203 = vadd.f32 0.0, %v202
  %v204 = vpop.f32.mrf.mxu0
  %205 = vmatprep.mubr.bf16.mxu0 0
  %206 = vmatmul.mubr.bf16.gmra.mxu0 %v115
  %v207 = vpop.f32.mrf.mxu0
  %v208 = vadd.f32 0.0, %v207
  %v209 = vpop.f32.mrf.mxu0
  %v210 = vpop.f32.mrf.mxu0
  %v211 = vadd.f32 0.0, %v210
  %v212 = vpop.f32.mrf.mxu0
  %213 = vdwg.mxu0
  %v214 = vadd.f32 %v36, %v152
  %v215 = vadd.f32 %v37, %v155
  %v216 = vadd.f32 %v38, %v160
  %v217 = vadd.f32 %v39, %v163
  %v218 = vadd.f32 %v40, %v168
  %v219 = vadd.f32 %v41, %v171
  %v220 = vadd.f32 %v42, %v176
  %v221 = vadd.f32 %v43, %v179
  %v222 = vadd.f32 %v44, %v184
  %v223 = vadd.f32 %v45, %v187
  %v224 = vadd.f32 %v46, %v192
  %v225 = vadd.f32 %v47, %v195
  %v226 = vadd.f32 %v48, %v200
  %v227 = vadd.f32 %v49, %v203
  %v228 = vadd.f32 %v50, %v208
  %v229 = vadd.f32 %v51, %v211
  %230 = vst.msk [vmem:[#allocation2] sm:$0xff] %vm92, %v214
  %231 = vst.msk [vmem:[#allocation2 + $0x8] sm:$0xff] %vm92, %v215
  %232 = vst.msk [vmem:[#allocation2 + $0x10] sm:$0xff] %vm92, %v216
  %233 = vst.msk [vmem:[#allocation2 + $0x18] sm:$0xff] %vm92, %v217
  %234 = vst.msk [vmem:[#allocation2 + $0x20] sm:$0xff] %vm92, %v218
  %235 = vst.msk [vmem:[#allocation2 + $0x28] sm:$0xff] %vm92, %v219
  %236 = vst.msk [vmem:[#allocation2 + $0x30] sm:$0xff] %vm92, %v220
  %237 = vst.msk [vmem:[#allocation2 + $0x38] sm:$0xff] %vm92, %v221
  %238 = vst.msk [vmem:[#allocation2 + $0x40] sm:$0xff] %vm92, %v222
  %239 = vst.msk [vmem:[#allocation2 + $0x48] sm:$0xff] %vm92, %v223
  %240 = vst.msk [vmem:[#allocation2 + $0x50] sm:$0xff] %vm92, %v224
  %241 = vst.msk [vmem:[#allocation2 + $0x58] sm:$0xff] %vm92, %v225
  %242 = vst.msk [vmem:[#allocation2 + $0x60] sm:$0xff] %vm92, %v226
  %243 = vst.msk [vmem:[#allocation2 + $0x68] sm:$0xff] %vm92, %v227
  %244 = vst.msk [vmem:[#allocation2 + $0x70] sm:$0xff] %vm92, %v228
  %245 = vst.msk [vmem:[#allocation2 + $0x78] sm:$0xff] %vm92, %v229
  // Predicated region
  $region18: #{spatial_transformer.21} parent=0 // pred_check
    %p246 = pneg %p15
  $region19: #{spatial_transformer.21} parent=0 // pred_check_branch
    %248 = sbr.rel (%p246) target = $region21
  $region20: #{spatial_transformer.21} parent=0 // pred_region
    %v249 = vld [vmem:[#allocation2] sm:$0xff]
    %v250 = vld [vmem:[#allocation2 + $0x8] sm:$0xff]
    %v251 = vld [vmem:[#allocation2 + $0x10] sm:$0xff]
    %v252 = vld [vmem:[#allocation2 + $0x18] sm:$0xff]
    %v253 = vld [vmem:[#allocation2 + $0x20] sm:$0xff]
    %v254 = vld [vmem:[#allocation2 + $0x28] sm:$0xff]
    %v255 = vld [vmem:[#allocation2 + $0x30] sm:$0xff]
    %v256 = vld [vmem:[#allocation2 + $0x38] sm:$0xff]
    %v257 = vld [vmem:[#allocation2 + $0x40] sm:$0xff]
    %v258 = vld [vmem:[#allocation2 + $0x48] sm:$0xff]
    %v259 = vld [vmem:[#allocation2 + $0x50] sm:$0xff]
    %v260 = vld [vmem:[#allocation2 + $0x58] sm:$0xff]
    %v261 = vld [vmem:[#allocation2 + $0x60] sm:$0xff]
    %v262 = vld [vmem:[#allocation2 + $0x68] sm:$0xff]
    %v263 = vld [vmem:[#allocation2 + $0x70] sm:$0xff]
    %v264 = vld [vmem:[#allocation2 + $0x78] sm:$0xff]
    %v265 = vld [vmem:[%s2] sm:$0x1]
    %v267 = vlaneseq
    %v268 = vshrl.u32 %v267, 7
    %v269 = vsub.s32 0, %v268
    %v270 = vrot.slane %v265, %v269
    %v272 = vadd.f32 %v249, %v270
    %v273 = vadd.f32 %v250, %v270
    %v274 = vadd.f32 %v251, %v270
    %v275 = vadd.f32 %v252, %v270
    %v276 = vadd.f32 %v253, %v270
    %v277 = vadd.f32 %v254, %v270
    %v278 = vadd.f32 %v255, %v270
    %v279 = vadd.f32 %v256, %v270
    %v280 = vadd.f32 %v257, %v270
    %v281 = vadd.f32 %v258, %v270
    %v282 = vadd.f32 %v259, %v270
    %v283 = vadd.f32 %v260, %v270
    %v284 = vadd.f32 %v261, %v270
    %v285 = vadd.f32 %v262, %v270
    %v286 = vadd.f32 %v263, %v270
    %v287 = vadd.f32 %v264, %v270
    %288 = vst.msk [vmem:[%s3] sm:$0xff] %vm92, %v272
    %289 = vst.msk [vmem:[%s3 + $0x8] sm:$0xff] %vm92, %v273
    %290 = vst.msk [vmem:[%s3 + $0x10] sm:$0xff] %vm92, %v274
    %291 = vst.msk [vmem:[%s3 + $0x18] sm:$0xff] %vm92, %v275
    %292 = vst.msk [vmem:[%s3 + $0x20] sm:$0xff] %vm92, %v276
    %293 = vst.msk [vmem:[%s3 + $0x28] sm:$0xff] %vm92, %v277
    %294 = vst.msk [vmem:[%s3 + $0x30] sm:$0xff] %vm92, %v278
    %295 = vst.msk [vmem:[%s3 + $0x38] sm:$0xff] %vm92, %v279
    %296 = vst.msk [vmem:[%s3 + $0x40] sm:$0xff] %vm92, %v280
    %297 = vst.msk [vmem:[%s3 + $0x48] sm:$0xff] %vm92, %v281
    %298 = vst.msk [vmem:[%s3 + $0x50] sm:$0xff] %vm92, %v282
    %299 = vst.msk [vmem:[%s3 + $0x58] sm:$0xff] %vm92, %v283
    %300 = vst.msk [vmem:[%s3 + $0x60] sm:$0xff] %vm92, %v284
    %301 = vst.msk [vmem:[%s3 + $0x68] sm:$0xff] %vm92, %v285
    %302 = vst.msk [vmem:[%s3 + $0x70] sm:$0xff] %vm92, %v286
    %303 = vst.msk [vmem:[%s3 + $0x78] sm:$0xff] %vm92, %v287
  $region21: #{spatial_transformer.21} parent=0 // pred_fallthru
    _
  // Predicated region
  $region22: #{spatial_transformer.21} parent=0 // pred_check
    _
  $region23: #{spatial_transformer.21} parent=0 // pred_check_branch
    %305 = sbr.rel (0) target = $region25
  $region24: #{spatial_transformer.21} parent=0 // pred_region
    _
  $region25: #{spatial_transformer.21} parent=0 // pred_fallthru
    _
  // Predicated region
  $region26: #{spatial_transformer.21} parent=0 // pred_check
    _
  $region27: #{spatial_transformer.21} parent=0 // pred_check_branch
    %307 = sbr.rel (0) target = $region29
  $region28: #{spatial_transformer.21} parent=0 // pred_region
    _
  $region29: #{spatial_transformer.21} parent=0 // pred_fallthru
    _

</llo_original>
